<compile_context>
chip_gen: v7x
topology: tpu7x:2x2x1
jax: 0.10.0
libtpu: 0.0.40
codegen_flags: <defaults>
</compile_context>

<pallas_src>
import numpy as np
import jax
import jax.numpy as jnp
from jax import lax
from jax.experimental import pallas as pl
from jax.experimental.pallas import tpu as pltpu

# ---- static config -----------------------------------------------------------
N = 2            # batch
OUTER_NC = 4     # outer_nc (== input_nc, since input_nc defaults to outer_nc)
INNER_NC = 8     # inner_nc
H = W = 16       # input spatial size
HD = H // 2      # spatial size after the stride-2 down conv
KD = 4           # downconv kernel size
KU = 3           # upconv kernel size
EPS = 1e-5       # BatchNorm2d eps

HW = H * W                     # 256
DIN = OUTER_NC * H * W         # 1024  (NCHW-flat input / output width)
DMID = INNER_NC * HD * HD      # 512   (NCHW-flat bottleneck width)


# ---- host-side constant construction -----------------------------------------
def _bilinear_matrix(n_in, n_out):
    """1-D bilinear interpolation matrix, align_corners=True: (n_out, n_in)."""
    A = np.zeros((n_out, n_in), np.float32)
    for i in range(n_out):
        src = i * (n_in - 1) / (n_out - 1)
        i0 = int(np.floor(src))
        i1 = min(i0 + 1, n_in - 1)
        w = src - i0
        A[i, i0] += 1.0 - w
        A[i, i1] += w
    return A


def _down_select(kd, stride, pad, h_in, h_out):
    """(kd, h_out, h_in) selection matrices folding stride-2 + zero padding."""
    D = np.zeros((kd, h_out, h_in), np.float32)
    for k in range(kd):
        for i in range(h_out):
            src = stride * i + k - pad
            if 0 <= src < h_in:
                D[k, i, src] = 1.0
    return D


def _up_select(ku, pad, h_up, A):
    """(ku, h_up, n_in) matrices folding bilinear upsample + zero pad + 3x3 shift."""
    n_in = A.shape[1]
    B = np.zeros((ku, h_up, n_in), np.float32)
    for k in range(ku):
        for i in range(h_up):
            src = i + k - pad
            if 0 <= src < A.shape[0]:
                B[k, i, :] = A[src, :]
    return B


def _fold_weights(wd_oihw, wu_oihw):
    """Fold selection/interp matrices + conv weights into two dense matrices.

    Wdown[c*H*W + h*W + w, o*HD*HD + i*HD + j]
    Wup  [c*HD*HD + i*HD + j, o*H*W + I*W + J]
    """
    dsel = jnp.asarray(_down_select(KD, 2, 1, H, HD))        # (KD, HD, H)
    A = _bilinear_matrix(HD, H)                              # (H, HD)
    bsel = jnp.asarray(_up_select(KU, 1, H, A))              # (KU, H, HD)
    wd = jnp.asarray(wd_oihw, jnp.float32)                   # (INNER_NC, OUTER_NC, KD, KD)
    wu = jnp.asarray(wu_oihw, jnp.float32)                   # (OUTER_NC, INNER_NC, KU, KU)

    Wdown = jnp.einsum('ocab,aih,bjw->chwoij', wd, dsel, dsel).reshape(DIN, DMID)
    Wup = jnp.einsum('ocab,aIi,bJj->cijoIJ', wu, bsel, bsel).reshape(DMID, DIN)
    return Wdown, Wup


# ---- Pallas kernel -----------------------------------------------------------
def unet_block_kernel(x_ref, wd_ref, wu_ref, gamma_ref, beta_ref, out_ref, xfv_ref):
    # x_ref:     (N, DIN)   VMEM  input, NCHW-flattened (lane-dense)
    # wd_ref:    (DIN, DMID) VMEM folded {LeakyReLU-input 4x4 s2 p1 conv}
    # wu_ref:    (DMID, DIN) VMEM folded {bilinear x2 + pad + 3x3 conv}
    # gamma_ref: (OUTER_NC,) SMEM BatchNorm2d weight
    # beta_ref:  (OUTER_NC,) SMEM BatchNorm2d bias
    # out_ref:   (N, DIN)   VMEM final output, NCHW-flattened
    # xfv_ref:   (N, DMID)  VMEM bottleneck features, NCHW-flattened
    x = x_ref[...]
    x = jnp.where(x > 0, x, 0.2 * x)                                   # LeakyReLU(0.2)

    # down: 4x4 stride-2 pad-1 conv as a single lane-dense MXU matmul
    xfv = jnp.dot(x, wd_ref[...], preferred_element_type=jnp.float32)  # (N, DMID)
    xfv_ref[...] = xfv

    # up: ReLU -> bilinear x2 (align_corners) -> 3x3 pad-1 conv, one matmul
    r = jnp.maximum(xfv, 0.0)
    y = jnp.dot(r, wu_ref[...], preferred_element_type=jnp.float32)    # (N, DIN)

    # BatchNorm2d, training-mode batch statistics (biased variance).
    # Channel o occupies the contiguous, 128-aligned lane block [o*HW, (o+1)*HW).
    inv_count = 1.0 / (N * HW)
    for o in range(OUTER_NC):  # static, 4 iterations
        yc = y[:, o * HW:(o + 1) * HW]                                  # (N, HW)
        m = jnp.sum(yc, axis=(0, 1), keepdims=True) * inv_count         # (1, 1)
        v = jnp.sum((yc - m) ** 2, axis=(0, 1), keepdims=True) * inv_count
        s = gamma_ref[o] * lax.rsqrt(v + EPS)                           # (1, 1)
        out_ref[:, o * HW:(o + 1) * HW] = (yc - m) * s + beta_ref[o]


# ---- wrapper -----------------------------------------------------------------
def unet_innermost_block(x_nchw, wd_oihw, wu_oihw, gamma, beta):
    """Returns (x, x_fv) in NCHW, matching the PyTorch module's forward()."""
    x_flat = jnp.reshape(x_nchw.astype(jnp.float32), (N, DIN))   # NCHW flatten
    Wdown, Wup = _fold_weights(wd_oihw, wu_oihw)
    gamma1 = jnp.asarray(gamma, jnp.float32).reshape(OUTER_NC)
    beta1 = jnp.asarray(beta, jnp.float32).reshape(OUTER_NC)

    vmem = pl.BlockSpec(memory_space=pltpu.MemorySpace.VMEM)
    smem = pl.BlockSpec(memory_space=pltpu.MemorySpace.SMEM)
    out_flat, xfv_flat = pl.pallas_call(
        unet_block_kernel,
        out_shape=(jax.ShapeDtypeStruct((N, DIN), jnp.float32),
                   jax.ShapeDtypeStruct((N, DMID), jnp.float32)),
        in_specs=[vmem, vmem, vmem, smem, smem],
        out_specs=(vmem, vmem),
    )(x_flat, Wdown, Wup, gamma1, beta1)

    return (out_flat.reshape(N, OUTER_NC, H, W),      # x     (N, outer_nc, H, W)
            xfv_flat.reshape(N, INNER_NC, HD, HD))    # x_fv  (N, inner_nc, HD, HD)


# ---- pure-JAX reference for validation ----------------------------------------
def reference(x_nchw, wd_oihw, wu_oihw, gamma, beta):
    x = jnp.transpose(x_nchw, (0, 2, 3, 1))
    lrelu = jnp.where(x > 0, x, 0.2 * x)
    xfv = lax.conv_general_dilated(
        lrelu, jnp.transpose(wd_oihw, (2, 3, 1, 0)),
        window_strides=(2, 2), padding=[(1, 1), (1, 1)],
        dimension_numbers=('NHWC', 'HWIO', 'NHWC'))
    r = jnp.maximum(xfv, 0.0)
    A = jnp.asarray(_bilinear_matrix(HD, H))
    up = jnp.einsum('Hh,nhwc,Ww->nHWc', A, r, A)
    y = lax.conv_general_dilated(
        up, jnp.transpose(wu_oihw, (2, 3, 1, 0)),
        window_strides=(1, 1), padding=[(1, 1), (1, 1)],
        dimension_numbers=('NHWC', 'HWIO', 'NHWC'))
    mean = jnp.mean(y, axis=(0, 1, 2), keepdims=True)
    var = jnp.mean((y - mean) ** 2, axis=(0, 1, 2), keepdims=True)
    yhat = (y - mean) / jnp.sqrt(var + EPS)
    y = yhat * gamma.reshape(1, 1, 1, -1) + beta.reshape(1, 1, 1, -1)
    return jnp.transpose(y, (0, 3, 1, 2)), jnp.transpose(xfv, (0, 3, 1, 2))


if __name__ == "__main__":
    key = jax.random.PRNGKey(0)
    k1, k2, k3 = jax.random.split(key, 3)
    # x_orig in PyTorch NCHW convention
    x = jax.random.normal(k1, (N, OUTER_NC, H, W), jnp.float32)
    # Conv2d(input_nc, inner_nc, 4) weight: (inner_nc, input_nc, 4, 4), no bias
    wd = jax.random.normal(k2, (INNER_NC, OUTER_NC, KD, KD), jnp.float32) * 0.1
    # Conv2d(inner_nc, outer_nc, 3) weight: (outer_nc, inner_nc, 3, 3), no bias
    wu = jax.random.normal(k3, (OUTER_NC, INNER_NC, KU, KU), jnp.float32) * 0.1
    # BatchNorm2d(outer_nc) default init: weight=1, bias=0
    gamma = jnp.ones((OUTER_NC,), jnp.float32)
    beta = jnp.zeros((OUTER_NC,), jnp.float32)

    out, xfv = unet_innermost_block(x, wd, wu, gamma, beta)
    jax.block_until_ready((out, xfv))

    ref_out, ref_xfv = reference(x, wd, wu, gamma, beta)
    assert out.shape == (N, OUTER_NC, H, W) and xfv.shape == (N, INNER_NC, HD, HD)
    assert jnp.allclose(xfv, ref_xfv, atol=1e-3, rtol=1e-3)
    assert jnp.allclose(out, ref_out, atol=1e-3, rtol=1e-3)
    print("KERNEL_OK")
</pallas_src>

<mosaic_0001>
module attributes {stable_mosaic.version = 11 : i64} {
  func.func @unet_block_kernel(%arg0: memref<2x1024xf32, #tpu.memory_space<vmem>>, %arg1: memref<1024x512xf32, #tpu.memory_space<vmem>>, %arg2: memref<512x1024xf32, #tpu.memory_space<vmem>>, %arg3: memref<4xf32, #tpu.memory_space<smem>>, %arg4: memref<4xf32, #tpu.memory_space<smem>>, %arg5: memref<2x1024xf32, #tpu.memory_space<vmem>>, %arg6: memref<2x512xf32, #tpu.memory_space<vmem>>) attributes {dimension_semantics = [], scalar_prefetch = 0 : i64, scratch_operands = 0 : i64, tpu.core_type = #tpu.core_type<tc>} {
    %c0 = arith.constant 0 : index
    %c0_0 = arith.constant 0 : index
    %0 = vector.load %arg0[%c0, %c0_0] : memref<2x1024xf32, #tpu.memory_space<vmem>>, vector<2x1024xf32>
    %cst = arith.constant 0.000000e+00 : f32
    %1 = vector.broadcast %cst : f32 to vector<2x1024xf32>
    %2 = arith.cmpf ogt, %0, %1 : vector<2x1024xf32>
    %cst_1 = arith.constant 2.000000e-01 : f32
    %3 = vector.broadcast %cst_1 : f32 to vector<2x1024xf32>
    %4 = arith.mulf %3, %0 : vector<2x1024xf32>
    %5 = arith.select %2, %0, %4 : vector<2x1024xi1>, vector<2x1024xf32>
    %c0_2 = arith.constant 0 : index
    %c0_3 = arith.constant 0 : index
    %6 = vector.load %arg1[%c0_2, %c0_3] : memref<1024x512xf32, #tpu.memory_space<vmem>>, vector<1024x512xf32>
    %cst_4 = arith.constant dense<0.000000e+00> : vector<2x512xf32>
    %7 = tpu.matmul %5, %6, %cst_4 {dimension_numbers = #tpu.dot_dimension_numbers<[1], [0], [0], [1], [0, 0, 1, 1], [], []>} : vector<2x1024xf32>, vector<1024x512xf32>, vector<2x512xf32> -> vector<2x512xf32>
    %c0_5 = arith.constant 0 : index
    %c0_6 = arith.constant 0 : index
    %8 = vector.load %arg6[%c0_5, %c0_6] : memref<2x512xf32, #tpu.memory_space<vmem>>, vector<2x512xf32>
    tpu.vector_store %arg6[%c0_5, %c0_6], %7 {strides = array<i32>} : memref<2x512xf32, #tpu.memory_space<vmem>>, vector<2x512xf32>,
    %cst_7 = arith.constant 0.000000e+00 : f32
    %9 = vector.broadcast %cst_7 : f32 to vector<2x512xf32>
    %10 = arith.maximumf %7, %9 : vector<2x512xf32>
    %c0_8 = arith.constant 0 : index
    %c0_9 = arith.constant 0 : index
    %11 = vector.load %arg2[%c0_8, %c0_9] : memref<512x1024xf32, #tpu.memory_space<vmem>>, vector<512x1024xf32>
    %cst_10 = arith.constant dense<0.000000e+00> : vector<2x1024xf32>
    %12 = tpu.matmul %10, %11, %cst_10 {dimension_numbers = #tpu.dot_dimension_numbers<[1], [0], [0], [1], [0, 0, 1, 1], [], []>} : vector<2x512xf32>, vector<512x1024xf32>, vector<2x1024xf32> -> vector<2x1024xf32>
    %13 = vector.extract_strided_slice %12 {offsets = [0, 0], sizes = [2, 256], strides = [1, 1]} : vector<2x1024xf32> to vector<2x256xf32>
    %14 = vector.shape_cast %13 : vector<2x256xf32> to vector<1x2x256xf32>
    %cst_11 = arith.constant dense<0.000000e+00> : vector<1xf32>
    %15 = vector.multi_reduction <add>, %14, %cst_11 [1, 2] : vector<1x2x256xf32> to vector<1xf32>
    %16 = vector.shape_cast %15 : vector<1xf32> to vector<1x1x1xf32>
    %17 = vector.extract %16[0, 0, 0] : f32 from vector<1x1x1xf32>
    %18 = vector.broadcast %17 : f32 to vector<1x1xf32>
    %cst_12 = arith.constant 0.001953125 : f32
    %19 = vector.broadcast %cst_12 : f32 to vector<1x1xf32>
    %20 = arith.mulf %18, %19 : vector<1x1xf32>
    %21 = vector.broadcast %20 : vector<1x1xf32> to vector<2x256xf32>
    %22 = arith.subf %13, %21 : vector<2x256xf32>
    %23 = arith.mulf %22, %22 : vector<2x256xf32>
    %24 = vector.shape_cast %23 : vector<2x256xf32> to vector<1x2x256xf32>
    %cst_13 = arith.constant dense<0.000000e+00> : vector<1xf32>
    %25 = vector.multi_reduction <add>, %24, %cst_13 [1, 2] : vector<1x2x256xf32> to vector<1xf32>
    %26 = vector.shape_cast %25 : vector<1xf32> to vector<1x1x1xf32>
    %27 = vector.extract %26[0, 0, 0] : f32 from vector<1x1x1xf32>
    %28 = vector.broadcast %27 : f32 to vector<1x1xf32>
    %cst_14 = arith.constant 0.001953125 : f32
    %29 = vector.broadcast %cst_14 : f32 to vector<1x1xf32>
    %30 = arith.mulf %28, %29 : vector<1x1xf32>
    %c0_15 = arith.constant 0 : index
    %31 = memref.load %arg3[%c0_15] : memref<4xf32, #tpu.memory_space<smem>>
    %cst_16 = arith.constant 9.99999974E-6 : f32
    %32 = vector.broadcast %cst_16 : f32 to vector<1x1xf32>
    %33 = arith.addf %30, %32 : vector<1x1xf32>
    %34 = math.rsqrt %33 : vector<1x1xf32>
    %35 = vector.broadcast %31 : f32 to vector<1x1xf32>
    %36 = arith.mulf %35, %34 : vector<1x1xf32>
    %37 = vector.broadcast %20 : vector<1x1xf32> to vector<2x256xf32>
    %38 = arith.subf %13, %37 : vector<2x256xf32>
    %39 = vector.broadcast %36 : vector<1x1xf32> to vector<2x256xf32>
    %40 = arith.mulf %38, %39 : vector<2x256xf32>
    %c0_17 = arith.constant 0 : index
    %41 = memref.load %arg4[%c0_17] : memref<4xf32, #tpu.memory_space<smem>>
    %42 = vector.broadcast %41 : f32 to vector<2x256xf32>
    %43 = arith.addf %40, %42 : vector<2x256xf32>
    %c0_18 = arith.constant 0 : index
    %c0_19 = arith.constant 0 : index
    %44 = vector.load %arg5[%c0_18, %c0_19] : memref<2x1024xf32, #tpu.memory_space<vmem>>, vector<2x256xf32>
    tpu.vector_store %arg5[%c0_18, %c0_19], %43 {strides = array<i32>} : memref<2x1024xf32, #tpu.memory_space<vmem>>, vector<2x256xf32>,
    %45 = vector.extract_strided_slice %12 {offsets = [0, 256], sizes = [2, 256], strides = [1, 1]} : vector<2x1024xf32> to vector<2x256xf32>
    %46 = vector.shape_cast %45 : vector<2x256xf32> to vector<1x2x256xf32>
    %cst_20 = arith.constant dense<0.000000e+00> : vector<1xf32>
    %47 = vector.multi_reduction <add>, %46, %cst_20 [1, 2] : vector<1x2x256xf32> to vector<1xf32>
    %48 = vector.shape_cast %47 : vector<1xf32> to vector<1x1x1xf32>
    %49 = vector.extract %48[0, 0, 0] : f32 from vector<1x1x1xf32>
    %50 = vector.broadcast %49 : f32 to vector<1x1xf32>
    %cst_21 = arith.constant 0.001953125 : f32
    %51 = vector.broadcast %cst_21 : f32 to vector<1x1xf32>
    %52 = arith.mulf %50, %51 : vector<1x1xf32>
    %53 = vector.broadcast %52 : vector<1x1xf32> to vector<2x256xf32>
    %54 = arith.subf %45, %53 : vector<2x256xf32>
    %55 = arith.mulf %54, %54 : vector<2x256xf32>
    %56 = vector.shape_cast %55 : vector<2x256xf32> to vector<1x2x256xf32>
    %cst_22 = arith.constant dense<0.000000e+00> : vector<1xf32>
    %57 = vector.multi_reduction <add>, %56, %cst_22 [1, 2] : vector<1x2x256xf32> to vector<1xf32>
    %58 = vector.shape_cast %57 : vector<1xf32> to vector<1x1x1xf32>
    %59 = vector.extract %58[0, 0, 0] : f32 from vector<1x1x1xf32>
    %60 = vector.broadcast %59 : f32 to vector<1x1xf32>
    %cst_23 = arith.constant 0.001953125 : f32
    %61 = vector.broadcast %cst_23 : f32 to vector<1x1xf32>
    %62 = arith.mulf %60, %61 : vector<1x1xf32>
    %c1 = arith.constant 1 : index
    %63 = memref.load %arg3[%c1] : memref<4xf32, #tpu.memory_space<smem>>
    %cst_24 = arith.constant 9.99999974E-6 : f32
    %64 = vector.broadcast %cst_24 : f32 to vector<1x1xf32>
    %65 = arith.addf %62, %64 : vector<1x1xf32>
    %66 = math.rsqrt %65 : vector<1x1xf32>
    %67 = vector.broadcast %63 : f32 to vector<1x1xf32>
    %68 = arith.mulf %67, %66 : vector<1x1xf32>
    %69 = vector.broadcast %52 : vector<1x1xf32> to vector<2x256xf32>
    %70 = arith.subf %45, %69 : vector<2x256xf32>
    %71 = vector.broadcast %68 : vector<1x1xf32> to vector<2x256xf32>
    %72 = arith.mulf %70, %71 : vector<2x256xf32>
    %c1_25 = arith.constant 1 : index
    %73 = memref.load %arg4[%c1_25] : memref<4xf32, #tpu.memory_space<smem>>
    %74 = vector.broadcast %73 : f32 to vector<2x256xf32>
    %75 = arith.addf %72, %74 : vector<2x256xf32>
    %c0_26 = arith.constant 0 : index
    %c256 = arith.constant 256 : index
    %76 = vector.load %arg5[%c0_26, %c256] : memref<2x1024xf32, #tpu.memory_space<vmem>>, vector<2x256xf32>
    tpu.vector_store %arg5[%c0_26, %c256], %75 {strides = array<i32>} : memref<2x1024xf32, #tpu.memory_space<vmem>>, vector<2x256xf32>,
    %77 = vector.extract_strided_slice %12 {offsets = [0, 512], sizes = [2, 256], strides = [1, 1]} : vector<2x1024xf32> to vector<2x256xf32>
    %78 = vector.shape_cast %77 : vector<2x256xf32> to vector<1x2x256xf32>
    %cst_27 = arith.constant dense<0.000000e+00> : vector<1xf32>
    %79 = vector.multi_reduction <add>, %78, %cst_27 [1, 2] : vector<1x2x256xf32> to vector<1xf32>
    %80 = vector.shape_cast %79 : vector<1xf32> to vector<1x1x1xf32>
    %81 = vector.extract %80[0, 0, 0] : f32 from vector<1x1x1xf32>
    %82 = vector.broadcast %81 : f32 to vector<1x1xf32>
    %cst_28 = arith.constant 0.001953125 : f32
    %83 = vector.broadcast %cst_28 : f32 to vector<1x1xf32>
    %84 = arith.mulf %82, %83 : vector<1x1xf32>
    %85 = vector.broadcast %84 : vector<1x1xf32> to vector<2x256xf32>
    %86 = arith.subf %77, %85 : vector<2x256xf32>
    %87 = arith.mulf %86, %86 : vector<2x256xf32>
    %88 = vector.shape_cast %87 : vector<2x256xf32> to vector<1x2x256xf32>
    %cst_29 = arith.constant dense<0.000000e+00> : vector<1xf32>
    %89 = vector.multi_reduction <add>, %88, %cst_29 [1, 2] : vector<1x2x256xf32> to vector<1xf32>
    %90 = vector.shape_cast %89 : vector<1xf32> to vector<1x1x1xf32>
    %91 = vector.extract %90[0, 0, 0] : f32 from vector<1x1x1xf32>
    %92 = vector.broadcast %91 : f32 to vector<1x1xf32>
    %cst_30 = arith.constant 0.001953125 : f32
    %93 = vector.broadcast %cst_30 : f32 to vector<1x1xf32>
    %94 = arith.mulf %92, %93 : vector<1x1xf32>
    %c2 = arith.constant 2 : index
    %95 = memref.load %arg3[%c2] : memref<4xf32, #tpu.memory_space<smem>>
    %cst_31 = arith.constant 9.99999974E-6 : f32
    %96 = vector.broadcast %cst_31 : f32 to vector<1x1xf32>
    %97 = arith.addf %94, %96 : vector<1x1xf32>
    %98 = math.rsqrt %97 : vector<1x1xf32>
    %99 = vector.broadcast %95 : f32 to vector<1x1xf32>
    %100 = arith.mulf %99, %98 : vector<1x1xf32>
    %101 = vector.broadcast %84 : vector<1x1xf32> to vector<2x256xf32>
    %102 = arith.subf %77, %101 : vector<2x256xf32>
    %103 = vector.broadcast %100 : vector<1x1xf32> to vector<2x256xf32>
    %104 = arith.mulf %102, %103 : vector<2x256xf32>
    %c2_32 = arith.constant 2 : index
    %105 = memref.load %arg4[%c2_32] : memref<4xf32, #tpu.memory_space<smem>>
    %106 = vector.broadcast %105 : f32 to vector<2x256xf32>
    %107 = arith.addf %104, %106 : vector<2x256xf32>
    %c0_33 = arith.constant 0 : index
    %c512 = arith.constant 512 : index
    %108 = vector.load %arg5[%c0_33, %c512] : memref<2x1024xf32, #tpu.memory_space<vmem>>, vector<2x256xf32>
    tpu.vector_store %arg5[%c0_33, %c512], %107 {strides = array<i32>} : memref<2x1024xf32, #tpu.memory_space<vmem>>, vector<2x256xf32>,
    %109 = vector.extract_strided_slice %12 {offsets = [0, 768], sizes = [2, 256], strides = [1, 1]} : vector<2x1024xf32> to vector<2x256xf32>
    %110 = vector.shape_cast %109 : vector<2x256xf32> to vector<1x2x256xf32>
    %cst_34 = arith.constant dense<0.000000e+00> : vector<1xf32>
    %111 = vector.multi_reduction <add>, %110, %cst_34 [1, 2] : vector<1x2x256xf32> to vector<1xf32>
    %112 = vector.shape_cast %111 : vector<1xf32> to vector<1x1x1xf32>
    %113 = vector.extract %112[0, 0, 0] : f32 from vector<1x1x1xf32>
    %114 = vector.broadcast %113 : f32 to vector<1x1xf32>
    %cst_35 = arith.constant 0.001953125 : f32
    %115 = vector.broadcast %cst_35 : f32 to vector<1x1xf32>
    %116 = arith.mulf %114, %115 : vector<1x1xf32>
    %117 = vector.broadcast %116 : vector<1x1xf32> to vector<2x256xf32>
    %118 = arith.subf %109, %117 : vector<2x256xf32>
    %119 = arith.mulf %118, %118 : vector<2x256xf32>
    %120 = vector.shape_cast %119 : vector<2x256xf32> to vector<1x2x256xf32>
    %cst_36 = arith.constant dense<0.000000e+00> : vector<1xf32>
    %121 = vector.multi_reduction <add>, %120, %cst_36 [1, 2] : vector<1x2x256xf32> to vector<1xf32>
    %122 = vector.shape_cast %121 : vector<1xf32> to vector<1x1x1xf32>
    %123 = vector.extract %122[0, 0, 0] : f32 from vector<1x1x1xf32>
    %124 = vector.broadcast %123 : f32 to vector<1x1xf32>
    %cst_37 = arith.constant 0.001953125 : f32
    %125 = vector.broadcast %cst_37 : f32 to vector<1x1xf32>
    %126 = arith.mulf %124, %125 : vector<1x1xf32>
    %c3 = arith.constant 3 : index
    %127 = memref.load %arg3[%c3] : memref<4xf32, #tpu.memory_space<smem>>
    %cst_38 = arith.constant 9.99999974E-6 : f32
    %128 = vector.broadcast %cst_38 : f32 to vector<1x1xf32>
    %129 = arith.addf %126, %128 : vector<1x1xf32>
    %130 = math.rsqrt %129 : vector<1x1xf32>
    %131 = vector.broadcast %127 : f32 to vector<1x1xf32>
    %132 = arith.mulf %131, %130 : vector<1x1xf32>
    %133 = vector.broadcast %116 : vector<1x1xf32> to vector<2x256xf32>
    %134 = arith.subf %109, %133 : vector<2x256xf32>
    %135 = vector.broadcast %132 : vector<1x1xf32> to vector<2x256xf32>
    %136 = arith.mulf %134, %135 : vector<2x256xf32>
    %c3_39 = arith.constant 3 : index
    %137 = memref.load %arg4[%c3_39] : memref<4xf32, #tpu.memory_space<smem>>
    %138 = vector.broadcast %137 : f32 to vector<2x256xf32>
    %139 = arith.addf %136, %138 : vector<2x256xf32>
    %c0_40 = arith.constant 0 : index
    %c768 = arith.constant 768 : index
    %140 = vector.load %arg5[%c0_40, %c768] : memref<2x1024xf32, #tpu.memory_space<vmem>>, vector<2x256xf32>
    tpu.vector_store %arg5[%c0_40, %c768], %139 {strides = array<i32>} : memref<2x1024xf32, #tpu.memory_space<vmem>>, vector<2x256xf32>,
    return
  }
}

</mosaic_0001>

<llo_original>
// kernel: tpu_custom_call.1
$region0: #{tpu_custom_call.1}
  #allocation0 [shape = 'u32[]', space=smem, size = 0x4, offset = 0x4, fixed_abs, tag = 'smem constant byte address 0x4 - core index']
  #allocation1 [shape = 'u32[144,128]{1,0:T(1,128)}', space=vmem, size = 0x12000, scoped, tag = 'internal scratch']
  %s0 = inlined_call_operand.hbm [shape: f32[2,1024], index: 0, kind: input, shape index: {}]
  %s1 = inlined_call_operand.hbm [shape: f32[1024,512], index: 1, kind: input, shape index: {}]
  %s2 = inlined_call_operand.hbm [shape: f32[512,1024], index: 2, kind: input, shape index: {}]
  %s3 = inlined_call_operand.hbm [shape: f32[4], index: 3, kind: input, shape index: {}]
  %s4 = inlined_call_operand.hbm [shape: f32[4], index: 4, kind: input, shape index: {}]
  %s5 = inlined_call_operand.hbm [shape: f32[2,1024], index: 5, kind: output, shape index: {0}]
  %s6 = inlined_call_operand.hbm [shape: f32[2,512], index: 6, kind: output, shape index: {1}]
  %7 = xla_tuple %s5, %s6
  %s8 = sld [smem:[#allocation0]]
  $region58: #{tpu_custom_call.1} parent=0
    _
  %s10 = ssub.s32 1, %s8
  %s11 = scalar_select 0, %s10, %s8
  $region1: #{tpu_custom_call.1} parent=0
    #allocation2 [shape = 'u8[8192]{0}', space=vmem, size = 0x2000, scoped, tag = 'input window, operand 0, single buffered']
    #allocation3 [shape = 's32[1]{0}', space=sflag, size = 0x4, scoped, tag = 'scoped memory for tpu_custom_call.1']
    #allocation4 [shape = 's32[1]{0}', space=sflag, size = 0x4, scoped, tag = 'scoped memory for tpu_custom_call.1']
    #allocation5 [shape = 's32[1]{0}', space=sflag, size = 0x4, scoped, tag = 'scoped memory for tpu_custom_call.1']
    #allocation6 [shape = 'u8[2097152]{0}', space=vmem, size = 0x200000, scoped, tag = 'input window, operand 1, single buffered']
    #allocation7 [shape = 's32[1]{0}', space=sflag, size = 0x4, scoped, tag = 'scoped memory for tpu_custom_call.1']
    #allocation8 [shape = 'u8[2097152]{0}', space=vmem, size = 0x200000, scoped, tag = 'input window, operand 2, single buffered']
    #allocation9 [shape = 'u8[512]{0}', space=smem, size = 0x200, scoped, tag = 'input window, operand 3, single buffered']
    #allocation10 [shape = 'u8[512]{0}', space=smem, size = 0x200, scoped, tag = 'input window, operand 4, single buffered']
    #allocation11 [shape = 's32[1]{0}', space=sflag, size = 0x4, scoped, tag = 'scoped memory for tpu_custom_call.1']
    #allocation12 [shape = 'u8[8192]{0}', space=vmem, size = 0x2000, scoped, tag = 'output window, operand 0, single buffered']
    #allocation13 [shape = 'u8[4096]{0}', space=vmem, size = 0x1000, scoped, tag = 'output window, operand 1, single buffered']
    #allocation14 [shape = 's32[1]{0}', space=sflag, size = 0x4, scoped, tag = 'scoped memory for tpu_custom_call.1']
    %12 = vsyncpa [#allocation3], 0
    %13 = vsyncpa [#allocation7], 0
    %14 = vsyncpa [#allocation5], 0
    %15 = vsyncpa [#allocation11], 0
    %16 = vsyncpa [#allocation4], 0
    %17 = vsyncpa [#allocation14], 0
    // Predicated region
    $region2: #{tpu_custom_call.1} parent=1 // pred_check
      _
    $region3: #{tpu_custom_call.1} parent=1 // pred_check_branch
      %19 = sbr.rel (0) target = $region5
    $region4: #{tpu_custom_call.1} parent=1 // pred_region
      %s21 = ssub.s32 256, 256
      %22 = vsyncadd [#allocation3], %s21
      %s24 = sshll.u32 [#allocation2], 4
      %s25 = int_to_ptr.vmem [resolvable:$true] %s24
      %27 = dma.hbm_to_vmem [thread:$0]  %s0, 256, %s25, [#allocation3]
    $region5: #{tpu_custom_call.1} parent=1 // pred_fallthru
      _
    // Predicated region
    $region6: #{tpu_custom_call.1} parent=1 // pred_check
      _
    $region7: #{tpu_custom_call.1} parent=1 // pred_check_branch
      %29 = sbr.rel (0) target = $region9
    $region8: #{tpu_custom_call.1} parent=1 // pred_region
      %s31 = ssub.s32 65536, 65536
      %32 = vsyncadd [#allocation7], %s31
      %s33 = sshll.u32 [#allocation6], 4
      %s34 = int_to_ptr.vmem [resolvable:$true] %s33
      %39 = dma.hbm_to_vmem [thread:$0]  %s1, 65536, %s34, [#allocation7], 512, 512, 32
    $region9: #{tpu_custom_call.1} parent=1 // pred_fallthru
      _
    // Predicated region
    $region10: #{tpu_custom_call.1} parent=1 // pred_check
      _
    $region11: #{tpu_custom_call.1} parent=1 // pred_check_branch
      %41 = sbr.rel (0) target = $region13
    $region12: #{tpu_custom_call.1} parent=1 // pred_region
      %s43 = ssub.s32 65536, 65536
      %44 = vsyncadd [#allocation7], %s43
      %s45 = sshll.u32 [#allocation8], 4
      %s46 = int_to_ptr.vmem [resolvable:$true] %s45
      %51 = dma.hbm_to_vmem [thread:$0]  %s2, 65536, %s46, [#allocation7], 1024, 1024, 64
    $region13: #{tpu_custom_call.1} parent=1 // pred_fallthru
      _
    // Predicated region
    $region14: #{tpu_custom_call.1} parent=1 // pred_check
      _
    $region15: #{tpu_custom_call.1} parent=1 // pred_check_branch
      %53 = sbr.rel (0) target = $region17
    $region16: #{tpu_custom_call.1} parent=1 // pred_region
      %s55 = ssub.s32 16, 16
      %56 = vsyncadd [#allocation5], %s55
      %59 = dma.hbm_to_smem %s3, 16, [#allocation9], [#allocation5]
    $region17: #{tpu_custom_call.1} parent=1 // pred_fallthru
      _
    // Predicated region
    $region18: #{tpu_custom_call.1} parent=1 // pred_check
      _
    $region19: #{tpu_custom_call.1} parent=1 // pred_check_branch
      %61 = sbr.rel (0) target = $region21
    $region20: #{tpu_custom_call.1} parent=1 // pred_region
      %s63 = ssub.s32 16, 16
      %64 = vsyncadd [#allocation11], %s63
      %67 = dma.hbm_to_smem %s4, 16, [#allocation10], [#allocation11]
    $region21: #{tpu_custom_call.1} parent=1 // pred_fallthru
      _
    // Predicated region
    $region22: #{tpu_custom_call.1} parent=1 // pred_check
      _
    $region23: #{tpu_custom_call.1} parent=1 // pred_check_branch
      %69 = sbr.rel (0) target = $region25
    $region24: #{tpu_custom_call.1} parent=1 // pred_region
      %70 = dma.done [#allocation3], 256
    $region25: #{tpu_custom_call.1} parent=1 // pred_fallthru
      _
    // Predicated region
    $region26: #{tpu_custom_call.1} parent=1 // pred_check
      _
    $region27: #{tpu_custom_call.1} parent=1 // pred_check_branch
      %72 = sbr.rel (0) target = $region29
    $region28: #{tpu_custom_call.1} parent=1 // pred_region
      %73 = dma.done [#allocation7], 65536
    $region29: #{tpu_custom_call.1} parent=1 // pred_fallthru
      _
    // Predicated region
    $region30: #{tpu_custom_call.1} parent=1 // pred_check
      _
    $region31: #{tpu_custom_call.1} parent=1 // pred_check_branch
      %75 = sbr.rel (0) target = $region33
    $region32: #{tpu_custom_call.1} parent=1 // pred_region
      %76 = dma.done [#allocation7], 65536
    $region33: #{tpu_custom_call.1} parent=1 // pred_fallthru
      _
    // Predicated region
    $region34: #{tpu_custom_call.1} parent=1 // pred_check
      _
    $region35: #{tpu_custom_call.1} parent=1 // pred_check_branch
      %78 = sbr.rel (0) target = $region37
    $region36: #{tpu_custom_call.1} parent=1 // pred_region
      %79 = dma.done [#allocation5], 16
    $region37: #{tpu_custom_call.1} parent=1 // pred_fallthru
      _
    // Predicated region
    $region38: #{tpu_custom_call.1} parent=1 // pred_check
      _
    $region39: #{tpu_custom_call.1} parent=1 // pred_check_branch
      %81 = sbr.rel (0) target = $region41
    $region40: #{tpu_custom_call.1} parent=1 // pred_region
      %82 = dma.done [#allocation11], 16
    $region41: #{tpu_custom_call.1} parent=1 // pred_fallthru
      _
    %83 = sfence
    %v84 = vld [vmem:[#allocation2] sm:$0xff]
    %v85 = vld [vmem:[#allocation2 + $0x8] sm:$0xff]
    %vm86 = vcmp.gt.f32.partialorder %v84, 0.0
    %vm87 = vcmp.gt.f32.partialorder %v85, 0.0
    %v88 = vmul.f32 %v84, 0.2
    %v89 = vmul.f32 %v85, 0.2
    %v90 = vsel %vm86, %v84, %v88
    %v91 = vsel %vm87, %v85, %v89
    %v92 = vld [vmem:[#allocation6] sm:$0xff]
    %v93 = vld [vmem:[#allocation6 + $0x8] sm:$0xff]
    %v94 = vld [vmem:[#allocation6 + $0x10] sm:$0xff]
    %v95 = vld [vmem:[#allocation6 + $0x18] sm:$0xff]
    %v96 = vld [vmem:[#allocation6 + $0x20] sm:$0xff]
    %v97 = vld [vmem:[#allocation6 + $0x28] sm:$0xff]
    %v98 = vld [vmem:[#allocation6 + $0x30] sm:$0xff]
    %v99 = vld [vmem:[#allocation6 + $0x38] sm:$0xff]
    %v100 = vld [vmem:[#allocation6 + $0x40] sm:$0xff]
    %v101 = vld [vmem:[#allocation6 + $0x48] sm:$0xff]
    %v102 = vld [vmem:[#allocation6 + $0x50] sm:$0xff]
    %v103 = vld [vmem:[#allocation6 + $0x58] sm:$0xff]
    %v104 = vld [vmem:[#allocation6 + $0x60] sm:$0xff]
    %v105 = vld [vmem:[#allocation6 + $0x68] sm:$0xff]
    %v106 = vld [vmem:[#allocation6 + $0x70] sm:$0xff]
    %v107 = vld [vmem:[#allocation6 + $0x78] sm:$0xff]
    %v108 = vld [vmem:[#allocation6 + $0x80] sm:$0xff]
    %v109 = vld [vmem:[#allocation6 + $0x88] sm:$0xff]
    %v110 = vld [vmem:[#allocation6 + $0x90] sm:$0xff]
    %v111 = vld [vmem:[#allocation6 + $0x98] sm:$0xff]
    %v112 = vld [vmem:[#allocation6 + $0xa0] sm:$0xff]
    %v113 = vld [vmem:[#allocation6 + $0xa8] sm:$0xff]
    %v114 = vld [vmem:[#allocation6 + $0xb0] sm:$0xff]
    %v115 = vld [vmem:[#allocation6 + $0xb8] sm:$0xff]
    %v116 = vld [vmem:[#allocation6 + $0xc0] sm:$0xff]
    %v117 = vld [vmem:[#allocation6 + $0xc8] sm:$0xff]
    %v118 = vld [vmem:[#allocation6 + $0xd0] sm:$0xff]
    %v119 = vld [vmem:[#allocation6 + $0xd8] sm:$0xff]
    %v120 = vld [vmem:[#allocation6 + $0xe0] sm:$0xff]
    %v121 = vld [vmem:[#allocation6 + $0xe8] sm:$0xff]
    %v122 = vld [vmem:[#allocation6 + $0xf0] sm:$0xff]
    %v123 = vld [vmem:[#allocation6 + $0xf8] sm:$0xff]
    %v124 = vld [vmem:[#allocation6 + $0x100] sm:$0xff]
    %v125 = vld [vmem:[#allocation6 + $0x108] sm:$0xff]
    %v126 = vld [vmem:[#allocation6 + $0x110] sm:$0xff]
    %v127 = vld [vmem:[#allocation6 + $0x118] sm:$0xff]
    %v128 = vld [vmem:[#allocation6 + $0x120] sm:$0xff]
    %v129 = vld [vmem:[#allocation6 + $0x128] sm:$0xff]
    %v130 = vld [vmem:[#allocation6 + $0x130] sm:$0xff]
    %v131 = vld [vmem:[#allocation6 + $0x138] sm:$0xff]
    %v132 = vld [vmem:[#allocation6 + $0x140] sm:$0xff]
    %v133 = vld [vmem:[#allocation6 + $0x148] sm:$0xff]
    %v134 = vld [vmem:[#allocation6 + $0x150] sm:$0xff]
    %v135 = vld [vmem:[#allocation6 + $0x158] sm:$0xff]
    %v136 = vld [vmem:[#allocation6 + $0x160] sm:$0xff]
    %v137 = vld [vmem:[#allocation6 + $0x168] sm:$0xff]
    %v138 = vld [vmem:[#allocation6 + $0x170] sm:$0xff]
    %v139 = vld [vmem:[#allocation6 + $0x178] sm:$0xff]
    %v140 = vld [vmem:[#allocation6 + $0x180] sm:$0xff]
    %v141 = vld [vmem:[#allocation6 + $0x188] sm:$0xff]
    %v142 = vld [vmem:[#allocation6 + $0x190] sm:$0xff]
    %v143 = vld [vmem:[#allocation6 + $0x198] sm:$0xff]
    %v144 = vld [vmem:[#allocation6 + $0x1a0] sm:$0xff]
    %v145 = vld [vmem:[#allocation6 + $0x1a8] sm:$0xff]
    %v146 = vld [vmem:[#allocation6 + $0x1b0] sm:$0xff]
    %v147 = vld [vmem:[#allocation6 + $0x1b8] sm:$0xff]
    %v148 = vld [vmem:[#allocation6 + $0x1c0] sm:$0xff]
    %v149 = vld [vmem:[#allocation6 + $0x1c8] sm:$0xff]
    %v150 = vld [vmem:[#allocation6 + $0x1d0] sm:$0xff]
    %v151 = vld [vmem:[#allocation6 + $0x1d8] sm:$0xff]
    %v152 = vld [vmem:[#allocation6 + $0x1e0] sm:$0xff]
    %v153 = vld [vmem:[#allocation6 + $0x1e8] sm:$0xff]
    %v154 = vld [vmem:[#allocation6 + $0x1f0] sm:$0xff]
    %v155 = vld [vmem:[#allocation6 + $0x1f8] sm:$0xff]
    %v156 = vld [vmem:[#allocation6 + $0x200] sm:$0xff]
    %v157 = vld [vmem:[#allocation6 + $0x208] sm:$0xff]
    %v158 = vld [vmem:[#allocation6 + $0x210] sm:$0xff]
    %v159 = vld [vmem:[#allocation6 + $0x218] sm:$0xff]
    %v160 = vld [vmem:[#allocation6 + $0x220] sm:$0xff]
    %v161 = vld [vmem:[#allocation6 + $0x228] sm:$0xff]
    %v162 = vld [vmem:[#allocation6 + $0x230] sm:$0xff]
    %v163 = vld [vmem:[#allocation6 + $0x238] sm:$0xff]
    %v164 = vld [vmem:[#allocation6 + $0x240] sm:$0xff]
    %v165 = vld [vmem:[#allocation6 + $0x248] sm:$0xff]
    %v166 = vld [vmem:[#allocation6 + $0x250] sm:$0xff]
    %v167 = vld [vmem:[#allocation6 + $0x258] sm:$0xff]
    %v168 = vld [vmem:[#allocation6 + $0x260] sm:$0xff]
    %v169 = vld [vmem:[#allocation6 + $0x268] sm:$0xff]
    %v170 = vld [vmem:[#allocation6 + $0x270] sm:$0xff]
    %v171 = vld [vmem:[#allocation6 + $0x278] sm:$0xff]
    %v172 = vld [vmem:[#allocation6 + $0x280] sm:$0xff]
    %v173 = vld [vmem:[#allocation6 + $0x288] sm:$0xff]
    %v174 = vld [vmem:[#allocation6 + $0x290] sm:$0xff]
    %v175 = vld [vmem:[#allocation6 + $0x298] sm:$0xff]
    %v176 = vld [vmem:[#allocation6 + $0x2a0] sm:$0xff]
    %v177 = vld [vmem:[#allocation6 + $0x2a8] sm:$0xff]
    %v178 = vld [vmem:[#allocation6 + $0x2b0] sm:$0xff]
    %v179 = vld [vmem:[#allocation6 + $0x2b8] sm:$0xff]
    %v180 = vld [vmem:[#allocation6 + $0x2c0] sm:$0xff]
    %v181 = vld [vmem:[#allocation6 + $0x2c8] sm:$0xff]
    %v182 = vld [vmem:[#allocation6 + $0x2d0] sm:$0xff]
    %v183 = vld [vmem:[#allocation6 + $0x2d8] sm:$0xff]
    %v184 = vld [vmem:[#allocation6 + $0x2e0] sm:$0xff]
    %v185 = vld [vmem:[#allocation6 + $0x2e8] sm:$0xff]
    %v186 = vld [vmem:[#allocation6 + $0x2f0] sm:$0xff]
    %v187 = vld [vmem:[#allocation6 + $0x2f8] sm:$0xff]
    %v188 = vld [vmem:[#allocation6 + $0x300] sm:$0xff]
    %v189 = vld [vmem:[#allocation6 + $0x308] sm:$0xff]
    %v190 = vld [vmem:[#allocation6 + $0x310] sm:$0xff]
    %v191 = vld [vmem:[#allocation6 + $0x318] sm:$0xff]
    %v192 = vld [vmem:[#allocation6 + $0x320] sm:$0xff]
    %v193 = vld [vmem:[#allocation6 + $0x328] sm:$0xff]
    %v194 = vld [vmem:[#allocation6 + $0x330] sm:$0xff]
    %v195 = vld [vmem:[#allocation6 + $0x338] sm:$0xff]
    %v196 = vld [vmem:[#allocation6 + $0x340] sm:$0xff]
    %v197 = vld [vmem:[#allocation6 + $0x348] sm:$0xff]
    %v198 = vld [vmem:[#allocation6 + $0x350] sm:$0xff]
    %v199 = vld [vmem:[#allocation6 + $0x358] sm:$0xff]
    %v200 = vld [vmem:[#allocation6 + $0x360] sm:$0xff]
    %v201 = vld [vmem:[#allocation6 + $0x368] sm:$0xff]
    %v202 = vld [vmem:[#allocation6 + $0x370] sm:$0xff]
    %v203 = vld [vmem:[#allocation6 + $0x378] sm:$0xff]
    %v204 = vld [vmem:[#allocation6 + $0x380] sm:$0xff]
    %v205 = vld [vmem:[#allocation6 + $0x388] sm:$0xff]
    %v206 = vld [vmem:[#allocation6 + $0x390] sm:$0xff]
    %v207 = vld [vmem:[#allocation6 + $0x398] sm:$0xff]
    %v208 = vld [vmem:[#allocation6 + $0x3a0] sm:$0xff]
    %v209 = vld [vmem:[#allocation6 + $0x3a8] sm:$0xff]
    %v210 = vld [vmem:[#allocation6 + $0x3b0] sm:$0xff]
    %v211 = vld [vmem:[#allocation6 + $0x3b8] sm:$0xff]
    %v212 = vld [vmem:[#allocation6 + $0x3c0] sm:$0xff]
    %v213 = vld [vmem:[#allocation6 + $0x3c8] sm:$0xff]
    %v214 = vld [vmem:[#allocation6 + $0x3d0] sm:$0xff]
    %v215 = vld [vmem:[#allocation6 + $0x3d8] sm:$0xff]
    %v216 = vld [vmem:[#allocation6 + $0x3e0] sm:$0xff]
    %v217 = vld [vmem:[#allocation6 + $0x3e8] sm:$0xff]
    %v218 = vld [vmem:[#allocation6 + $0x3f0] sm:$0xff]
    %v219 = vld [vmem:[#allocation6 + $0x3f8] sm:$0xff]
    %v220 = vld [vmem:[#allocation6 + $0x400] sm:$0xff]
    %v221 = vld [vmem:[#allocation6 + $0x408] sm:$0xff]
    %v222 = vld [vmem:[#allocation6 + $0x410] sm:$0xff]
    %v223 = vld [vmem:[#allocation6 + $0x418] sm:$0xff]
    %v224 = vld [vmem:[#allocation6 + $0x420] sm:$0xff]
    %v225 = vld [vmem:[#allocation6 + $0x428] sm:$0xff]
    %v226 = vld [vmem:[#allocation6 + $0x430] sm:$0xff]
    %v227 = vld [vmem:[#allocation6 + $0x438] sm:$0xff]
    %v228 = vld [vmem:[#allocation6 + $0x440] sm:$0xff]
    %v229 = vld [vmem:[#allocation6 + $0x448] sm:$0xff]
    %v230 = vld [vmem:[#allocation6 + $0x450] sm:$0xff]
    %v231 = vld [vmem:[#allocation6 + $0x458] sm:$0xff]
    %v232 = vld [vmem:[#allocation6 + $0x460] sm:$0xff]
    %v233 = vld [vmem:[#allocation6 + $0x468] sm:$0xff]
    %v234 = vld [vmem:[#allocation6 + $0x470] sm:$0xff]
    %v235 = vld [vmem:[#allocation6 + $0x478] sm:$0xff]
    %v236 = vld [vmem:[#allocation6 + $0x480] sm:$0xff]
    %v237 = vld [vmem:[#allocation6 + $0x488] sm:$0xff]
    %v238 = vld [vmem:[#allocation6 + $0x490] sm:$0xff]
    %v239 = vld [vmem:[#allocation6 + $0x498] sm:$0xff]
    %v240 = vld [vmem:[#allocation6 + $0x4a0] sm:$0xff]
    %v241 = vld [vmem:[#allocation6 + $0x4a8] sm:$0xff]
    %v242 = vld [vmem:[#allocation6 + $0x4b0] sm:$0xff]
    %v243 = vld [vmem:[#allocation6 + $0x4b8] sm:$0xff]
    %v244 = vld [vmem:[#allocation6 + $0x4c0] sm:$0xff]
    %v245 = vld [vmem:[#allocation6 + $0x4c8] sm:$0xff]
    %v246 = vld [vmem:[#allocation6 + $0x4d0] sm:$0xff]
    %v247 = vld [vmem:[#allocation6 + $0x4d8] sm:$0xff]
    %v248 = vld [vmem:[#allocation6 + $0x4e0] sm:$0xff]
    %v249 = vld [vmem:[#allocation6 + $0x4e8] sm:$0xff]
    %v250 = vld [vmem:[#allocation6 + $0x4f0] sm:$0xff]
    %v251 = vld [vmem:[#allocation6 + $0x4f8] sm:$0xff]
    %v252 = vld [vmem:[#allocation6 + $0x500] sm:$0xff]
    %v253 = vld [vmem:[#allocation6 + $0x508] sm:$0xff]
    %v254 = vld [vmem:[#allocation6 + $0x510] sm:$0xff]
    %v255 = vld [vmem:[#allocation6 + $0x518] sm:$0xff]
    %v256 = vld [vmem:[#allocation6 + $0x520] sm:$0xff]
    %v257 = vld [vmem:[#allocation6 + $0x528] sm:$0xff]
    %v258 = vld [vmem:[#allocation6 + $0x530] sm:$0xff]
    %v259 = vld [vmem:[#allocation6 + $0x538] sm:$0xff]
    %v260 = vld [vmem:[#allocation6 + $0x540] sm:$0xff]
    %v261 = vld [vmem:[#allocation6 + $0x548] sm:$0xff]
    %v262 = vld [vmem:[#allocation6 + $0x550] sm:$0xff]
    %v263 = vld [vmem:[#allocation6 + $0x558] sm:$0xff]
    %v264 = vld [vmem:[#allocation6 + $0x560] sm:$0xff]
    %v265 = vld [vmem:[#allocation6 + $0x568] sm:$0xff]
    %v266 = vld [vmem:[#allocation6 + $0x570] sm:$0xff]
    %v267 = vld [vmem:[#allocation6 + $0x578] sm:$0xff]
    %v268 = vld [vmem:[#allocation6 + $0x580] sm:$0xff]
    %v269 = vld [vmem:[#allocation6 + $0x588] sm:$0xff]
    %v270 = vld [vmem:[#allocation6 + $0x590] sm:$0xff]
    %v271 = vld [vmem:[#allocation6 + $0x598] sm:$0xff]
    %v272 = vld [vmem:[#allocation6 + $0x5a0] sm:$0xff]
    %v273 = vld [vmem:[#allocation6 + $0x5a8] sm:$0xff]
    %v274 = vld [vmem:[#allocation6 + $0x5b0] sm:$0xff]
    %v275 = vld [vmem:[#allocation6 + $0x5b8] sm:$0xff]
    %v276 = vld [vmem:[#allocation6 + $0x5c0] sm:$0xff]
    %v277 = vld [vmem:[#allocation6 + $0x5c8] sm:$0xff]
    %v278 = vld [vmem:[#allocation6 + $0x5d0] sm:$0xff]
    %v279 = vld [vmem:[#allocation6 + $0x5d8] sm:$0xff]
    %v280 = vld [vmem:[#allocation6 + $0x5e0] sm:$0xff]
    %v281 = vld [vmem:[#allocation6 + $0x5e8] sm:$0xff]
    %v282 = vld [vmem:[#allocation6 + $0x5f0] sm:$0xff]
    %v283 = vld [vmem:[#allocation6 + $0x5f8] sm:$0xff]
    %v284 = vld [vmem:[#allocation6 + $0x600] sm:$0xff]
    %v285 = vld [vmem:[#allocation6 + $0x608] sm:$0xff]
    %v286 = vld [vmem:[#allocation6 + $0x610] sm:$0xff]
    %v287 = vld [vmem:[#allocation6 + $0x618] sm:$0xff]
    %v288 = vld [vmem:[#allocation6 + $0x620] sm:$0xff]
    %v289 = vld [vmem:[#allocation6 + $0x628] sm:$0xff]
    %v290 = vld [vmem:[#allocation6 + $0x630] sm:$0xff]
    %v291 = vld [vmem:[#allocation6 + $0x638] sm:$0xff]
    %v292 = vld [vmem:[#allocation6 + $0x640] sm:$0xff]
    %v293 = vld [vmem:[#allocation6 + $0x648] sm:$0xff]
    %v294 = vld [vmem:[#allocation6 + $0x650] sm:$0xff]
    %v295 = vld [vmem:[#allocation6 + $0x658] sm:$0xff]
    %v296 = vld [vmem:[#allocation6 + $0x660] sm:$0xff]
    %v297 = vld [vmem:[#allocation6 + $0x668] sm:$0xff]
    %v298 = vld [vmem:[#allocation6 + $0x670] sm:$0xff]
    %v299 = vld [vmem:[#allocation6 + $0x678] sm:$0xff]
    %v300 = vld [vmem:[#allocation6 + $0x680] sm:$0xff]
    %v301 = vld [vmem:[#allocation6 + $0x688] sm:$0xff]
    %v302 = vld [vmem:[#allocation6 + $0x690] sm:$0xff]
    %v303 = vld [vmem:[#allocation6 + $0x698] sm:$0xff]
    %v304 = vld [vmem:[#allocation6 + $0x6a0] sm:$0xff]
    %v305 = vld [vmem:[#allocation6 + $0x6a8] sm:$0xff]
    %v306 = vld [vmem:[#allocation6 + $0x6b0] sm:$0xff]
    %v307 = vld [vmem:[#allocation6 + $0x6b8] sm:$0xff]
    %v308 = vld [vmem:[#allocation6 + $0x6c0] sm:$0xff]
    %v309 = vld [vmem:[#allocation6 + $0x6c8] sm:$0xff]
    %v310 = vld [vmem:[#allocation6 + $0x6d0] sm:$0xff]
    %v311 = vld [vmem:[#allocation6 + $0x6d8] sm:$0xff]
    %v312 = vld [vmem:[#allocation6 + $0x6e0] sm:$0xff]
    %v313 = vld [vmem:[#allocation6 + $0x6e8] sm:$0xff]
    %v314 = vld [vmem:[#allocation6 + $0x6f0] sm:$0xff]
    %v315 = vld [vmem:[#allocation6 + $0x6f8] sm:$0xff]
    %v316 = vld [vmem:[#allocation6 + $0x700] sm:$0xff]
    %v317 = vld [vmem:[#allocation6 + $0x708] sm:$0xff]
    %v318 = vld [vmem:[#allocation6 + $0x710] sm:$0xff]
    %v319 = vld [vmem:[#allocation6 + $0x718] sm:$0xff]
    %v320 = vld [vmem:[#allocation6 + $0x720] sm:$0xff]
    %v321 = vld [vmem:[#allocation6 + $0x728] sm:$0xff]
    %v322 = vld [vmem:[#allocation6 + $0x730] sm:$0xff]
    %v323 = vld [vmem:[#allocation6 + $0x738] sm:$0xff]
    %v324 = vld [vmem:[#allocation6 + $0x740] sm:$0xff]
    %v325 = vld [vmem:[#allocation6 + $0x748] sm:$0xff]
    %v326 = vld [vmem:[#allocation6 + $0x750] sm:$0xff]
    %v327 = vld [vmem:[#allocation6 + $0x758] sm:$0xff]
    %v328 = vld [vmem:[#allocation6 + $0x760] sm:$0xff]
    %v329 = vld [vmem:[#allocation6 + $0x768] sm:$0xff]
    %v330 = vld [vmem:[#allocation6 + $0x770] sm:$0xff]
    %v331 = vld [vmem:[#allocation6 + $0x778] sm:$0xff]
    %v332 = vld [vmem:[#allocation6 + $0x780] sm:$0xff]
    %v333 = vld [vmem:[#allocation6 + $0x788] sm:$0xff]
    %v334 = vld [vmem:[#allocation6 + $0x790] sm:$0xff]
    %v335 = vld [vmem:[#allocation6 + $0x798] sm:$0xff]
    %v336 = vld [vmem:[#allocation6 + $0x7a0] sm:$0xff]
    %v337 = vld [vmem:[#allocation6 + $0x7a8] sm:$0xff]
    %v338 = vld [vmem:[#allocation6 + $0x7b0] sm:$0xff]
    %v339 = vld [vmem:[#allocation6 + $0x7b8] sm:$0xff]
    %v340 = vld [vmem:[#allocation6 + $0x7c0] sm:$0xff]
    %v341 = vld [vmem:[#allocation6 + $0x7c8] sm:$0xff]
    %v342 = vld [vmem:[#allocation6 + $0x7d0] sm:$0xff]
    %v343 = vld [vmem:[#allocation6 + $0x7d8] sm:$0xff]
    %v344 = vld [vmem:[#allocation6 + $0x7e0] sm:$0xff]
    %v345 = vld [vmem:[#allocation6 + $0x7e8] sm:$0xff]
    %v346 = vld [vmem:[#allocation6 + $0x7f0] sm:$0xff]
    %v347 = vld [vmem:[#allocation6 + $0x7f8] sm:$0xff]
    %v348 = vld [vmem:[#allocation6 + $0x800] sm:$0xff]
    %v349 = vld [vmem:[#allocation6 + $0x808] sm:$0xff]
    %v350 = vld [vmem:[#allocation6 + $0x810] sm:$0xff]
    %v351 = vld [vmem:[#allocation6 + $0x818] sm:$0xff]
    %v352 = vld [vmem:[#allocation6 + $0x820] sm:$0xff]
    %v353 = vld [vmem:[#allocation6 + $0x828] sm:$0xff]
    %v354 = vld [vmem:[#allocation6 + $0x830] sm:$0xff]
    %v355 = vld [vmem:[#allocation6 + $0x838] sm:$0xff]
    %v356 = vld [vmem:[#allocation6 + $0x840] sm:$0xff]
    %v357 = vld [vmem:[#allocation6 + $0x848] sm:$0xff]
    %v358 = vld [vmem:[#allocation6 + $0x850] sm:$0xff]
    %v359 = vld [vmem:[#allocation6 + $0x858] sm:$0xff]
    %v360 = vld [vmem:[#allocation6 + $0x860] sm:$0xff]
    %v361 = vld [vmem:[#allocation6 + $0x868] sm:$0xff]
    %v362 = vld [vmem:[#allocation6 + $0x870] sm:$0xff]
    %v363 = vld [vmem:[#allocation6 + $0x878] sm:$0xff]
    %v364 = vld [vmem:[#allocation6 + $0x880] sm:$0xff]
    %v365 = vld [vmem:[#allocation6 + $0x888] sm:$0xff]
    %v366 = vld [vmem:[#allocation6 + $0x890] sm:$0xff]
    %v367 = vld [vmem:[#allocation6 + $0x898] sm:$0xff]
    %v368 = vld [vmem:[#allocation6 + $0x8a0] sm:$0xff]
    %v369 = vld [vmem:[#allocation6 + $0x8a8] sm:$0xff]
    %v370 = vld [vmem:[#allocation6 + $0x8b0] sm:$0xff]
    %v371 = vld [vmem:[#allocation6 + $0x8b8] sm:$0xff]
    %v372 = vld [vmem:[#allocation6 + $0x8c0] sm:$0xff]
    %v373 = vld [vmem:[#allocation6 + $0x8c8] sm:$0xff]
    %v374 = vld [vmem:[#allocation6 + $0x8d0] sm:$0xff]
    %v375 = vld [vmem:[#allocation6 + $0x8d8] sm:$0xff]
    %v376 = vld [vmem:[#allocation6 + $0x8e0] sm:$0xff]
    %v377 = vld [vmem:[#allocation6 + $0x8e8] sm:$0xff]
    %v378 = vld [vmem:[#allocation6 + $0x8f0] sm:$0xff]
    %v379 = vld [vmem:[#allocation6 + $0x8f8] sm:$0xff]
    %v380 = vld [vmem:[#allocation6 + $0x900] sm:$0xff]
    %v381 = vld [vmem:[#allocation6 + $0x908] sm:$0xff]
    %v382 = vld [vmem:[#allocation6 + $0x910] sm:$0xff]
    %v383 = vld [vmem:[#allocation6 + $0x918] sm:$0xff]
    %v384 = vld [vmem:[#allocation6 + $0x920] sm:$0xff]
    %v385 = vld [vmem:[#allocation6 + $0x928] sm:$0xff]
    %v386 = vld [vmem:[#allocation6 + $0x930] sm:$0xff]
    %v387 = vld [vmem:[#allocation6 + $0x938] sm:$0xff]
    %v388 = vld [vmem:[#allocation6 + $0x940] sm:$0xff]
    %v389 = vld [vmem:[#allocation6 + $0x948] sm:$0xff]
    %v390 = vld [vmem:[#allocation6 + $0x950] sm:$0xff]
    %v391 = vld [vmem:[#allocation6 + $0x958] sm:$0xff]
    %v392 = vld [vmem:[#allocation6 + $0x960] sm:$0xff]
    %v393 = vld [vmem:[#allocation6 + $0x968] sm:$0xff]
    %v394 = vld [vmem:[#allocation6 + $0x970] sm:$0xff]
    %v395 = vld [vmem:[#allocation6 + $0x978] sm:$0xff]
    %v396 = vld [vmem:[#allocation6 + $0x980] sm:$0xff]
    %v397 = vld [vmem:[#allocation6 + $0x988] sm:$0xff]
    %v398 = vld [vmem:[#allocation6 + $0x990] sm:$0xff]
    %v399 = vld [vmem:[#allocation6 + $0x998] sm:$0xff]
    %v400 = vld [vmem:[#allocation6 + $0x9a0] sm:$0xff]
    %v401 = vld [vmem:[#allocation6 + $0x9a8] sm:$0xff]
    %v402 = vld [vmem:[#allocation6 + $0x9b0] sm:$0xff]
    %v403 = vld [vmem:[#allocation6 + $0x9b8] sm:$0xff]
    %v404 = vld [vmem:[#allocation6 + $0x9c0] sm:$0xff]
    %v405 = vld [vmem:[#allocation6 + $0x9c8] sm:$0xff]
    %v406 = vld [vmem:[#allocation6 + $0x9d0] sm:$0xff]
    %v407 = vld [vmem:[#allocation6 + $0x9d8] sm:$0xff]
    %v408 = vld [vmem:[#allocation6 + $0x9e0] sm:$0xff]
    %v409 = vld [vmem:[#allocation6 + $0x9e8] sm:$0xff]
    %v410 = vld [vmem:[#allocation6 + $0x9f0] sm:$0xff]
    %v411 = vld [vmem:[#allocation6 + $0x9f8] sm:$0xff]
    %v412 = vld [vmem:[#allocation6 + $0xa00] sm:$0xff]
    %v413 = vld [vmem:[#allocation6 + $0xa08] sm:$0xff]
    %v414 = vld [vmem:[#allocation6 + $0xa10] sm:$0xff]
    %v415 = vld [vmem:[#allocation6 + $0xa18] sm:$0xff]
    %v416 = vld [vmem:[#allocation6 + $0xa20] sm:$0xff]
    %v417 = vld [vmem:[#allocation6 + $0xa28] sm:$0xff]
    %v418 = vld [vmem:[#allocation6 + $0xa30] sm:$0xff]
    %v419 = vld [vmem:[#allocation6 + $0xa38] sm:$0xff]
    %v420 = vld [vmem:[#allocation6 + $0xa40] sm:$0xff]
    %v421 = vld [vmem:[#allocation6 + $0xa48] sm:$0xff]
    %v422 = vld [vmem:[#allocation6 + $0xa50] sm:$0xff]
    %v423 = vld [vmem:[#allocation6 + $0xa58] sm:$0xff]
    %v424 = vld [vmem:[#allocation6 + $0xa60] sm:$0xff]
    %v425 = vld [vmem:[#allocation6 + $0xa68] sm:$0xff]
    %v426 = vld [vmem:[#allocation6 + $0xa70] sm:$0xff]
    %v427 = vld [vmem:[#allocation6 + $0xa78] sm:$0xff]
    %v428 = vld [vmem:[#allocation6 + $0xa80] sm:$0xff]
    %v429 = vld [vmem:[#allocation6 + $0xa88] sm:$0xff]
    %v430 = vld [vmem:[#allocation6 + $0xa90] sm:$0xff]
    %v431 = vld [vmem:[#allocation6 + $0xa98] sm:$0xff]
    %v432 = vld [vmem:[#allocation6 + $0xaa0] sm:$0xff]
    %v433 = vld [vmem:[#allocation6 + $0xaa8] sm:$0xff]
    %v434 = vld [vmem:[#allocation6 + $0xab0] sm:$0xff]
    %v435 = vld [vmem:[#allocation6 + $0xab8] sm:$0xff]
    %v436 = vld [vmem:[#allocation6 + $0xac0] sm:$0xff]
    %v437 = vld [vmem:[#allocation6 + $0xac8] sm:$0xff]
    %v438 = vld [vmem:[#allocation6 + $0xad0] sm:$0xff]
    %v439 = vld [vmem:[#allocation6 + $0xad8] sm:$0xff]
    %v440 = vld [vmem:[#allocation6 + $0xae0] sm:$0xff]
    %v441 = vld [vmem:[#allocation6 + $0xae8] sm:$0xff]
    %v442 = vld [vmem:[#allocation6 + $0xaf0] sm:$0xff]
    %v443 = vld [vmem:[#allocation6 + $0xaf8] sm:$0xff]
    %v444 = vld [vmem:[#allocation6 + $0xb00] sm:$0xff]
    %v445 = vld [vmem:[#allocation6 + $0xb08] sm:$0xff]
    %v446 = vld [vmem:[#allocation6 + $0xb10] sm:$0xff]
    %v447 = vld [vmem:[#allocation6 + $0xb18] sm:$0xff]
    %v448 = vld [vmem:[#allocation6 + $0xb20] sm:$0xff]
    %v449 = vld [vmem:[#allocation6 + $0xb28] sm:$0xff]
    %v450 = vld [vmem:[#allocation6 + $0xb30] sm:$0xff]
    %v451 = vld [vmem:[#allocation6 + $0xb38] sm:$0xff]
    %v452 = vld [vmem:[#allocation6 + $0xb40] sm:$0xff]
    %v453 = vld [vmem:[#allocation6 + $0xb48] sm:$0xff]
    %v454 = vld [vmem:[#allocation6 + $0xb50] sm:$0xff]
    %v455 = vld [vmem:[#allocation6 + $0xb58] sm:$0xff]
    %v456 = vld [vmem:[#allocation6 + $0xb60] sm:$0xff]
    %v457 = vld [vmem:[#allocation6 + $0xb68] sm:$0xff]
    %v458 = vld [vmem:[#allocation6 + $0xb70] sm:$0xff]
    %v459 = vld [vmem:[#allocation6 + $0xb78] sm:$0xff]
    %v460 = vld [vmem:[#allocation6 + $0xb80] sm:$0xff]
    %v461 = vld [vmem:[#allocation6 + $0xb88] sm:$0xff]
    %v462 = vld [vmem:[#allocation6 + $0xb90] sm:$0xff]
    %v463 = vld [vmem:[#allocation6 + $0xb98] sm:$0xff]
    %v464 = vld [vmem:[#allocation6 + $0xba0] sm:$0xff]
    %v465 = vld [vmem:[#allocation6 + $0xba8] sm:$0xff]
    %v466 = vld [vmem:[#allocation6 + $0xbb0] sm:$0xff]
    %v467 = vld [vmem:[#allocation6 + $0xbb8] sm:$0xff]
    %v468 = vld [vmem:[#allocation6 + $0xbc0] sm:$0xff]
    %v469 = vld [vmem:[#allocation6 + $0xbc8] sm:$0xff]
    %v470 = vld [vmem:[#allocation6 + $0xbd0] sm:$0xff]
    %v471 = vld [vmem:[#allocation6 + $0xbd8] sm:$0xff]
    %v472 = vld [vmem:[#allocation6 + $0xbe0] sm:$0xff]
    %v473 = vld [vmem:[#allocation6 + $0xbe8] sm:$0xff]
    %v474 = vld [vmem:[#allocation6 + $0xbf0] sm:$0xff]
    %v475 = vld [vmem:[#allocation6 + $0xbf8] sm:$0xff]
    %v476 = vld [vmem:[#allocation6 + $0xc00] sm:$0xff]
    %v477 = vld [vmem:[#allocation6 + $0xc08] sm:$0xff]
    %v478 = vld [vmem:[#allocation6 + $0xc10] sm:$0xff]
    %v479 = vld [vmem:[#allocation6 + $0xc18] sm:$0xff]
    %v480 = vld [vmem:[#allocation6 + $0xc20] sm:$0xff]
    %v481 = vld [vmem:[#allocation6 + $0xc28] sm:$0xff]
    %v482 = vld [vmem:[#allocation6 + $0xc30] sm:$0xff]
    %v483 = vld [vmem:[#allocation6 + $0xc38] sm:$0xff]
    %v484 = vld [vmem:[#allocation6 + $0xc40] sm:$0xff]
    %v485 = vld [vmem:[#allocation6 + $0xc48] sm:$0xff]
    %v486 = vld [vmem:[#allocation6 + $0xc50] sm:$0xff]
    %v487 = vld [vmem:[#allocation6 + $0xc58] sm:$0xff]
    %v488 = vld [vmem:[#allocation6 + $0xc60] sm:$0xff]
    %v489 = vld [vmem:[#allocation6 + $0xc68] sm:$0xff]
    %v490 = vld [vmem:[#allocation6 + $0xc70] sm:$0xff]
    %v491 = vld [vmem:[#allocation6 + $0xc78] sm:$0xff]
    %v492 = vld [vmem:[#allocation6 + $0xc80] sm:$0xff]
    %v493 = vld [vmem:[#allocation6 + $0xc88] sm:$0xff]
    %v494 = vld [vmem:[#allocation6 + $0xc90] sm:$0xff]
    %v495 = vld [vmem:[#allocation6 + $0xc98] sm:$0xff]
    %v496 = vld [vmem:[#allocation6 + $0xca0] sm:$0xff]
    %v497 = vld [vmem:[#allocation6 + $0xca8] sm:$0xff]
    %v498 = vld [vmem:[#allocation6 + $0xcb0] sm:$0xff]
    %v499 = vld [vmem:[#allocation6 + $0xcb8] sm:$0xff]
    %v500 = vld [vmem:[#allocation6 + $0xcc0] sm:$0xff]
    %v501 = vld [vmem:[#allocation6 + $0xcc8] sm:$0xff]
    %v502 = vld [vmem:[#allocation6 + $0xcd0] sm:$0xff]
    %v503 = vld [vmem:[#allocation6 + $0xcd8] sm:$0xff]
    %v504 = vld [vmem:[#allocation6 + $0xce0] sm:$0xff]
    %v505 = vld [vmem:[#allocation6 + $0xce8] sm:$0xff]
    %v506 = vld [vmem:[#allocation6 + $0xcf0] sm:$0xff]
    %v507 = vld [vmem:[#allocation6 + $0xcf8] sm:$0xff]
    %v508 = vld [vmem:[#allocation6 + $0xd00] sm:$0xff]
    %v509 = vld [vmem:[#allocation6 + $0xd08] sm:$0xff]
    %v510 = vld [vmem:[#allocation6 + $0xd10] sm:$0xff]
    %v511 = vld [vmem:[#allocation6 + $0xd18] sm:$0xff]
    %v512 = vld [vmem:[#allocation6 + $0xd20] sm:$0xff]
    %v513 = vld [vmem:[#allocation6 + $0xd28] sm:$0xff]
    %v514 = vld [vmem:[#allocation6 + $0xd30] sm:$0xff]
    %v515 = vld [vmem:[#allocation6 + $0xd38] sm:$0xff]
    %v516 = vld [vmem:[#allocation6 + $0xd40] sm:$0xff]
    %v517 = vld [vmem:[#allocation6 + $0xd48] sm:$0xff]
    %v518 = vld [vmem:[#allocation6 + $0xd50] sm:$0xff]
    %v519 = vld [vmem:[#allocation6 + $0xd58] sm:$0xff]
    %v520 = vld [vmem:[#allocation6 + $0xd60] sm:$0xff]
    %v521 = vld [vmem:[#allocation6 + $0xd68] sm:$0xff]
    %v522 = vld [vmem:[#allocation6 + $0xd70] sm:$0xff]
    %v523 = vld [vmem:[#allocation6 + $0xd78] sm:$0xff]
    %v524 = vld [vmem:[#allocation6 + $0xd80] sm:$0xff]
    %v525 = vld [vmem:[#allocation6 + $0xd88] sm:$0xff]
    %v526 = vld [vmem:[#allocation6 + $0xd90] sm:$0xff]
    %v527 = vld [vmem:[#allocation6 + $0xd98] sm:$0xff]
    %v528 = vld [vmem:[#allocation6 + $0xda0] sm:$0xff]
    %v529 = vld [vmem:[#allocation6 + $0xda8] sm:$0xff]
    %v530 = vld [vmem:[#allocation6 + $0xdb0] sm:$0xff]
    %v531 = vld [vmem:[#allocation6 + $0xdb8] sm:$0xff]
    %v532 = vld [vmem:[#allocation6 + $0xdc0] sm:$0xff]
    %v533 = vld [vmem:[#allocation6 + $0xdc8] sm:$0xff]
    %v534 = vld [vmem:[#allocation6 + $0xdd0] sm:$0xff]
    %v535 = vld [vmem:[#allocation6 + $0xdd8] sm:$0xff]
    %v536 = vld [vmem:[#allocation6 + $0xde0] sm:$0xff]
    %v537 = vld [vmem:[#allocation6 + $0xde8] sm:$0xff]
    %v538 = vld [vmem:[#allocation6 + $0xdf0] sm:$0xff]
    %v539 = vld [vmem:[#allocation6 + $0xdf8] sm:$0xff]
    %v540 = vld [vmem:[#allocation6 + $0xe00] sm:$0xff]
    %v541 = vld [vmem:[#allocation6 + $0xe08] sm:$0xff]
    %v542 = vld [vmem:[#allocation6 + $0xe10] sm:$0xff]
    %v543 = vld [vmem:[#allocation6 + $0xe18] sm:$0xff]
    %v544 = vld [vmem:[#allocation6 + $0xe20] sm:$0xff]
    %v545 = vld [vmem:[#allocation6 + $0xe28] sm:$0xff]
    %v546 = vld [vmem:[#allocation6 + $0xe30] sm:$0xff]
    %v547 = vld [vmem:[#allocation6 + $0xe38] sm:$0xff]
    %v548 = vld [vmem:[#allocation6 + $0xe40] sm:$0xff]
    %v549 = vld [vmem:[#allocation6 + $0xe48] sm:$0xff]
    %v550 = vld [vmem:[#allocation6 + $0xe50] sm:$0xff]
    %v551 = vld [vmem:[#allocation6 + $0xe58] sm:$0xff]
    %v552 = vld [vmem:[#allocation6 + $0xe60] sm:$0xff]
    %v553 = vld [vmem:[#allocation6 + $0xe68] sm:$0xff]
    %v554 = vld [vmem:[#allocation6 + $0xe70] sm:$0xff]
    %v555 = vld [vmem:[#allocation6 + $0xe78] sm:$0xff]
    %v556 = vld [vmem:[#allocation6 + $0xe80] sm:$0xff]
    %v557 = vld [vmem:[#allocation6 + $0xe88] sm:$0xff]
    %v558 = vld [vmem:[#allocation6 + $0xe90] sm:$0xff]
    %v559 = vld [vmem:[#allocation6 + $0xe98] sm:$0xff]
    %v560 = vld [vmem:[#allocation6 + $0xea0] sm:$0xff]
    %v561 = vld [vmem:[#allocation6 + $0xea8] sm:$0xff]
    %v562 = vld [vmem:[#allocation6 + $0xeb0] sm:$0xff]
    %v563 = vld [vmem:[#allocation6 + $0xeb8] sm:$0xff]
    %v564 = vld [vmem:[#allocation6 + $0xec0] sm:$0xff]
    %v565 = vld [vmem:[#allocation6 + $0xec8] sm:$0xff]
    %v566 = vld [vmem:[#allocation6 + $0xed0] sm:$0xff]
    %v567 = vld [vmem:[#allocation6 + $0xed8] sm:$0xff]
    %v568 = vld [vmem:[#allocation6 + $0xee0] sm:$0xff]
    %v569 = vld [vmem:[#allocation6 + $0xee8] sm:$0xff]
    %v570 = vld [vmem:[#allocation6 + $0xef0] sm:$0xff]
    %v571 = vld [vmem:[#allocation6 + $0xef8] sm:$0xff]
    %v572 = vld [vmem:[#allocation6 + $0xf00] sm:$0xff]
    %v573 = vld [vmem:[#allocation6 + $0xf08] sm:$0xff]
    %v574 = vld [vmem:[#allocation6 + $0xf10] sm:$0xff]
    %v575 = vld [vmem:[#allocation6 + $0xf18] sm:$0xff]
    %v576 = vld [vmem:[#allocation6 + $0xf20] sm:$0xff]
    %v577 = vld [vmem:[#allocation6 + $0xf28] sm:$0xff]
    %v578 = vld [vmem:[#allocation6 + $0xf30] sm:$0xff]
    %v579 = vld [vmem:[#allocation6 + $0xf38] sm:$0xff]
    %v580 = vld [vmem:[#allocation6 + $0xf40] sm:$0xff]
    %v581 = vld [vmem:[#allocation6 + $0xf48] sm:$0xff]
    %v582 = vld [vmem:[#allocation6 + $0xf50] sm:$0xff]
    %v583 = vld [vmem:[#allocation6 + $0xf58] sm:$0xff]
    %v584 = vld [vmem:[#allocation6 + $0xf60] sm:$0xff]
    %v585 = vld [vmem:[#allocation6 + $0xf68] sm:$0xff]
    %v586 = vld [vmem:[#allocation6 + $0xf70] sm:$0xff]
    %v587 = vld [vmem:[#allocation6 + $0xf78] sm:$0xff]
    %v588 = vld [vmem:[#allocation6 + $0xf80] sm:$0xff]
    %v589 = vld [vmem:[#allocation6 + $0xf88] sm:$0xff]
    %v590 = vld [vmem:[#allocation6 + $0xf90] sm:$0xff]
    %v591 = vld [vmem:[#allocation6 + $0xf98] sm:$0xff]
    %v592 = vld [vmem:[#allocation6 + $0xfa0] sm:$0xff]
    %v593 = vld [vmem:[#allocation6 + $0xfa8] sm:$0xff]
    %v594 = vld [vmem:[#allocation6 + $0xfb0] sm:$0xff]
    %v595 = vld [vmem:[#allocation6 + $0xfb8] sm:$0xff]
    %v596 = vld [vmem:[#allocation6 + $0xfc0] sm:$0xff]
    %v597 = vld [vmem:[#allocation6 + $0xfc8] sm:$0xff]
    %v598 = vld [vmem:[#allocation6 + $0xfd0] sm:$0xff]
    %v599 = vld [vmem:[#allocation6 + $0xfd8] sm:$0xff]
    %v600 = vld [vmem:[#allocation6 + $0xfe0] sm:$0xff]
    %v601 = vld [vmem:[#allocation6 + $0xfe8] sm:$0xff]
    %v602 = vld [vmem:[#allocation6 + $0xff0] sm:$0xff]
    %v603 = vld [vmem:[#allocation6 + $0xff8] sm:$0xff]
    %v606 = vcombine.high %v90, %v90
    %v608 = vunpack.c.l.s4 1983009808
    %v609 = vunpack.c.0.s8 %v608
    %v610 = vlaneseq
    %v611 = vshrl.u32 %v610, 7
    %v612 = vsub.s32 %v609, %v611
    %v613 = vrot.slane %v90, %v612
    %v615 = vunpack.c.l.s4 1983009808
    %v616 = vunpack.c.0.s8 %v615
    %v617 = vlaneseq
    %v618 = vshrl.u32 %v617, 7
    %v619 = vsub.s32 %v616, %v618
    %v620 = vrot.slane %v606, %v619
    %v621 = vcombine.high %v613, %v613
    %v622 = vcombine.high %v620, %v620
    %v623 = vcombine.high %v91, %v91
    %v625 = vunpack.c.l.s4 1983009808
    %v626 = vunpack.c.0.s8 %v625
    %v627 = vlaneseq
    %v628 = vshrl.u32 %v627, 7
    %v629 = vsub.s32 %v626, %v628
    %v630 = vrot.slane %v91, %v629
    %v632 = vunpack.c.l.s4 1983009808
    %v633 = vunpack.c.0.s8 %v632
    %v634 = vlaneseq
    %v635 = vshrl.u32 %v634, 7
    %v636 = vsub.s32 %v633, %v635
    %v637 = vrot.slane %v623, %v636
    %v638 = vcombine.high %v630, %v630
    %v639 = vcombine.high %v637, %v637
    %648 = vmatprep.subr.mxu0 %v93
    %649 = vmatpush1.msra.mxu0 %v92
    %650 = vmatprep.subr.mxu0 %v97
    %651 = vmatpush1.msra.mxu0 %v96
    %652 = vmatprep.subr.mxu0 %v101
    %653 = vmatpush1.msra.mxu0 %v100
    %654 = vmatprep.subr.mxu0 %v105
    %655 = vmatpush1.msra.mxu0 %v104
    %656 = vmatprep.subr.mxu0 %v109
    %657 = vmatpush1.msra.mxu0 %v108
    %658 = vmatprep.subr.mxu0 %v113
    %659 = vmatpush1.msra.mxu0 %v112
    %660 = vmatprep.subr.mxu0 %v117
    %661 = vmatpush1.msra.mxu0 %v116
    %662 = vmatprep.subr.mxu0 %v121
    %663 = vmatpush1.msra.mxu0 %v120
    %664 = vmatprep.subr.mxu0 %v125
    %665 = vmatpush1.msra.mxu0 %v124
    %666 = vmatprep.subr.mxu0 %v129
    %667 = vmatpush1.msra.mxu0 %v128
    %668 = vmatprep.subr.mxu0 %v133
    %669 = vmatpush1.msra.mxu0 %v132
    %670 = vmatprep.subr.mxu0 %v137
    %671 = vmatpush1.msra.mxu0 %v136
    %672 = vmatprep.subr.mxu0 %v141
    %673 = vmatpush1.msra.mxu0 %v140
    %674 = vmatprep.subr.mxu0 %v145
    %675 = vmatpush1.msra.mxu0 %v144
    %676 = vmatprep.subr.mxu0 %v149
    %677 = vmatpush1.msra.mxu0 %v148
    %678 = vmatprep.subr.mxu0 %v153
    %679 = vmatpush1.msra.mxu0 %v152
    %680 = vmatprep.subr.mxu0 %v157
    %681 = vmatpush1.msra.mxu0 %v156
    %682 = vmatprep.subr.mxu0 %v161
    %683 = vmatpush1.msra.mxu0 %v160
    %684 = vmatprep.subr.mxu0 %v165
    %685 = vmatpush1.msra.mxu0 %v164
    %686 = vmatprep.subr.mxu0 %v169
    %687 = vmatpush1.msra.mxu0 %v168
    %688 = vmatprep.subr.mxu0 %v173
    %689 = vmatpush1.msra.mxu0 %v172
    %690 = vmatprep.subr.mxu0 %v177
    %691 = vmatpush1.msra.mxu0 %v176
    %692 = vmatprep.subr.mxu0 %v181
    %693 = vmatpush1.msra.mxu0 %v180
    %694 = vmatprep.subr.mxu0 %v185
    %695 = vmatpush1.msra.mxu0 %v184
    %696 = vmatprep.subr.mxu0 %v189
    %697 = vmatpush1.msra.mxu0 %v188
    %698 = vmatprep.subr.mxu0 %v193
    %699 = vmatpush1.msra.mxu0 %v192
    %700 = vmatprep.subr.mxu0 %v197
    %701 = vmatpush1.msra.mxu0 %v196
    %702 = vmatprep.subr.mxu0 %v201
    %703 = vmatpush1.msra.mxu0 %v200
    %704 = vmatprep.subr.mxu0 %v205
    %705 = vmatpush1.msra.mxu0 %v204
    %706 = vmatprep.subr.mxu0 %v209
    %707 = vmatpush1.msra.mxu0 %v208
    %708 = vmatprep.subr.mxu0 %v213
    %709 = vmatpush1.msra.mxu0 %v212
    %710 = vmatprep.subr.mxu0 %v217
    %711 = vmatpush1.msra.mxu0 %v216
    %712 = vmatprep.mubr.f32.mxu0 %v621
    %713 = vmatmul.mubr.f32.gmra.mrb[0].mxu0 %v613
    %v714 = vpop.f32.mrb[0].mxu0
    %v715 = vadd.f32 0.0, %v714
    %v716 = vpop.f32.mrb[0].mxu0
    %v717 = vadd.f32 0.0, %v716
    %718 = vdwg.mxu0
    %719 = vmatprep.subr.mxu0 %v221
    %720 = vmatpush1.msra.mxu0 %v220
    %721 = vmatprep.subr.mxu0 %v225
    %722 = vmatpush1.msra.mxu0 %v224
    %723 = vmatprep.subr.mxu0 %v229
    %724 = vmatpush1.msra.mxu0 %v228
    %725 = vmatprep.subr.mxu0 %v233
    %726 = vmatpush1.msra.mxu0 %v232
    %727 = vmatprep.subr.mxu0 %v237
    %728 = vmatpush1.msra.mxu0 %v236
    %729 = vmatprep.subr.mxu0 %v241
    %730 = vmatpush1.msra.mxu0 %v240
    %731 = vmatprep.subr.mxu0 %v245
    %732 = vmatpush1.msra.mxu0 %v244
    %733 = vmatprep.subr.mxu0 %v249
    %734 = vmatpush1.msra.mxu0 %v248
    %735 = vmatprep.subr.mxu0 %v253
    %736 = vmatpush1.msra.mxu0 %v252
    %737 = vmatprep.subr.mxu0 %v257
    %738 = vmatpush1.msra.mxu0 %v256
    %739 = vmatprep.subr.mxu0 %v261
    %740 = vmatpush1.msra.mxu0 %v260
    %741 = vmatprep.subr.mxu0 %v265
    %742 = vmatpush1.msra.mxu0 %v264
    %743 = vmatprep.subr.mxu0 %v269
    %744 = vmatpush1.msra.mxu0 %v268
    %745 = vmatprep.subr.mxu0 %v273
    %746 = vmatpush1.msra.mxu0 %v272
    %747 = vmatprep.subr.mxu0 %v277
    %748 = vmatpush1.msra.mxu0 %v276
    %749 = vmatprep.subr.mxu0 %v281
    %750 = vmatpush1.msra.mxu0 %v280
    %751 = vmatprep.subr.mxu0 %v285
    %752 = vmatpush1.msra.mxu0 %v284
    %753 = vmatprep.subr.mxu0 %v289
    %754 = vmatpush1.msra.mxu0 %v288
    %755 = vmatprep.subr.mxu0 %v293
    %756 = vmatpush1.msra.mxu0 %v292
    %757 = vmatprep.subr.mxu0 %v297
    %758 = vmatpush1.msra.mxu0 %v296
    %759 = vmatprep.subr.mxu0 %v301
    %760 = vmatpush1.msra.mxu0 %v300
    %761 = vmatprep.subr.mxu0 %v305
    %762 = vmatpush1.msra.mxu0 %v304
    %763 = vmatprep.subr.mxu0 %v309
    %764 = vmatpush1.msra.mxu0 %v308
    %765 = vmatprep.subr.mxu0 %v313
    %766 = vmatpush1.msra.mxu0 %v312
    %767 = vmatprep.subr.mxu0 %v317
    %768 = vmatpush1.msra.mxu0 %v316
    %769 = vmatprep.subr.mxu0 %v321
    %770 = vmatpush1.msra.mxu0 %v320
    %771 = vmatprep.subr.mxu0 %v325
    %772 = vmatpush1.msra.mxu0 %v324
    %773 = vmatprep.subr.mxu0 %v329
    %774 = vmatpush1.msra.mxu0 %v328
    %775 = vmatprep.subr.mxu0 %v333
    %776 = vmatpush1.msra.mxu0 %v332
    %777 = vmatprep.subr.mxu0 %v337
    %778 = vmatpush1.msra.mxu0 %v336
    %779 = vmatprep.subr.mxu0 %v341
    %780 = vmatpush1.msra.mxu0 %v340
    %781 = vmatprep.subr.mxu0 %v345
    %782 = vmatpush1.msra.mxu0 %v344
    %783 = vmatprep.mubr.f32.mxu0 %v622
    %784 = vmatmul.mubr.f32.gmra.mrb[0].mxu0 %v620
    %v785 = vpop.f32.mrb[0].mxu0
    %v786 = vadd.f32 %v715, %v785
    %v787 = vpop.f32.mrb[0].mxu0
    %v788 = vadd.f32 %v717, %v787
    %789 = vdwg.mxu0
    %790 = vmatprep.subr.mxu0 %v349
    %791 = vmatpush1.msra.mxu0 %v348
    %792 = vmatprep.subr.mxu0 %v353
    %793 = vmatpush1.msra.mxu0 %v352
    %794 = vmatprep.subr.mxu0 %v357
    %795 = vmatpush1.msra.mxu0 %v356
    %796 = vmatprep.subr.mxu0 %v361
    %797 = vmatpush1.msra.mxu0 %v360
    %798 = vmatprep.subr.mxu0 %v365
    %799 = vmatpush1.msra.mxu0 %v364
    %800 = vmatprep.subr.mxu0 %v369
    %801 = vmatpush1.msra.mxu0 %v368
    %802 = vmatprep.subr.mxu0 %v373
    %803 = vmatpush1.msra.mxu0 %v372
    %804 = vmatprep.subr.mxu0 %v377
    %805 = vmatpush1.msra.mxu0 %v376
    %806 = vmatprep.subr.mxu0 %v381
    %807 = vmatpush1.msra.mxu0 %v380
    %808 = vmatprep.subr.mxu0 %v385
    %809 = vmatpush1.msra.mxu0 %v384
    %810 = vmatprep.subr.mxu0 %v389
    %811 = vmatpush1.msra.mxu0 %v388
    %812 = vmatprep.subr.mxu0 %v393
    %813 = vmatpush1.msra.mxu0 %v392
    %814 = vmatprep.subr.mxu0 %v397
    %815 = vmatpush1.msra.mxu0 %v396
    %816 = vmatprep.subr.mxu0 %v401
    %817 = vmatpush1.msra.mxu0 %v400
    %818 = vmatprep.subr.mxu0 %v405
    %819 = vmatpush1.msra.mxu0 %v404
    %820 = vmatprep.subr.mxu0 %v409
    %821 = vmatpush1.msra.mxu0 %v408
    %822 = vmatprep.subr.mxu0 %v413
    %823 = vmatpush1.msra.mxu0 %v412
    %824 = vmatprep.subr.mxu0 %v417
    %825 = vmatpush1.msra.mxu0 %v416
    %826 = vmatprep.subr.mxu0 %v421
    %827 = vmatpush1.msra.mxu0 %v420
    %828 = vmatprep.subr.mxu0 %v425
    %829 = vmatpush1.msra.mxu0 %v424
    %830 = vmatprep.subr.mxu0 %v429
    %831 = vmatpush1.msra.mxu0 %v428
    %832 = vmatprep.subr.mxu0 %v433
    %833 = vmatpush1.msra.mxu0 %v432
    %834 = vmatprep.subr.mxu0 %v437
    %835 = vmatpush1.msra.mxu0 %v436
    %836 = vmatprep.subr.mxu0 %v441
    %837 = vmatpush1.msra.mxu0 %v440
    %838 = vmatprep.subr.mxu0 %v445
    %839 = vmatpush1.msra.mxu0 %v444
    %840 = vmatprep.subr.mxu0 %v449
    %841 = vmatpush1.msra.mxu0 %v448
    %842 = vmatprep.subr.mxu0 %v453
    %843 = vmatpush1.msra.mxu0 %v452
    %844 = vmatprep.subr.mxu0 %v457
    %845 = vmatpush1.msra.mxu0 %v456
    %846 = vmatprep.subr.mxu0 %v461
    %847 = vmatpush1.msra.mxu0 %v460
    %848 = vmatprep.subr.mxu0 %v465
    %849 = vmatpush1.msra.mxu0 %v464
    %850 = vmatprep.subr.mxu0 %v469
    %851 = vmatpush1.msra.mxu0 %v468
    %852 = vmatprep.subr.mxu0 %v473
    %853 = vmatpush1.msra.mxu0 %v472
    %854 = vmatprep.mubr.f32.mxu0 %v638
    %855 = vmatmul.mubr.f32.gmra.mrb[0].mxu0 %v630
    %v856 = vpop.f32.mrb[0].mxu0
    %v857 = vadd.f32 %v786, %v856
    %v858 = vpop.f32.mrb[0].mxu0
    %v859 = vadd.f32 %v788, %v858
    %860 = vdwg.mxu0
    %861 = vmatprep.subr.mxu0 %v477
    %862 = vmatpush1.msra.mxu0 %v476
    %863 = vmatprep.subr.mxu0 %v481
    %864 = vmatpush1.msra.mxu0 %v480
    %865 = vmatprep.subr.mxu0 %v485
    %866 = vmatpush1.msra.mxu0 %v484
    %867 = vmatprep.subr.mxu0 %v489
    %868 = vmatpush1.msra.mxu0 %v488
    %869 = vmatprep.subr.mxu0 %v493
    %870 = vmatpush1.msra.mxu0 %v492
    %871 = vmatprep.subr.mxu0 %v497
    %872 = vmatpush1.msra.mxu0 %v496
    %873 = vmatprep.subr.mxu0 %v501
    %874 = vmatpush1.msra.mxu0 %v500
    %875 = vmatprep.subr.mxu0 %v505
    %876 = vmatpush1.msra.mxu0 %v504
    %877 = vmatprep.subr.mxu0 %v509
    %878 = vmatpush1.msra.mxu0 %v508
    %879 = vmatprep.subr.mxu0 %v513
    %880 = vmatpush1.msra.mxu0 %v512
    %881 = vmatprep.subr.mxu0 %v517
    %882 = vmatpush1.msra.mxu0 %v516
    %883 = vmatprep.subr.mxu0 %v521
    %884 = vmatpush1.msra.mxu0 %v520
    %885 = vmatprep.subr.mxu0 %v525
    %886 = vmatpush1.msra.mxu0 %v524
    %887 = vmatprep.subr.mxu0 %v529
    %888 = vmatpush1.msra.mxu0 %v528
    %889 = vmatprep.subr.mxu0 %v533
    %890 = vmatpush1.msra.mxu0 %v532
    %891 = vmatprep.subr.mxu0 %v537
    %892 = vmatpush1.msra.mxu0 %v536
    %893 = vmatprep.subr.mxu0 %v541
    %894 = vmatpush1.msra.mxu0 %v540
    %895 = vmatprep.subr.mxu0 %v545
    %896 = vmatpush1.msra.mxu0 %v544
    %897 = vmatprep.subr.mxu0 %v549
    %898 = vmatpush1.msra.mxu0 %v548
    %899 = vmatprep.subr.mxu0 %v553
    %900 = vmatpush1.msra.mxu0 %v552
    %901 = vmatprep.subr.mxu0 %v557
    %902 = vmatpush1.msra.mxu0 %v556
    %903 = vmatprep.subr.mxu0 %v561
    %904 = vmatpush1.msra.mxu0 %v560
    %905 = vmatprep.subr.mxu0 %v565
    %906 = vmatpush1.msra.mxu0 %v564
    %907 = vmatprep.subr.mxu0 %v569
    %908 = vmatpush1.msra.mxu0 %v568
    %909 = vmatprep.subr.mxu0 %v573
    %910 = vmatpush1.msra.mxu0 %v572
    %911 = vmatprep.subr.mxu0 %v577
    %912 = vmatpush1.msra.mxu0 %v576
    %913 = vmatprep.subr.mxu0 %v581
    %914 = vmatpush1.msra.mxu0 %v580
    %915 = vmatprep.subr.mxu0 %v585
    %916 = vmatpush1.msra.mxu0 %v584
    %917 = vmatprep.subr.mxu0 %v589
    %918 = vmatpush1.msra.mxu0 %v588
    %919 = vmatprep.subr.mxu0 %v593
    %920 = vmatpush1.msra.mxu0 %v592
    %921 = vmatprep.subr.mxu0 %v597
    %922 = vmatpush1.msra.mxu0 %v596
    %923 = vmatprep.subr.mxu0 %v601
    %924 = vmatpush1.msra.mxu0 %v600
    %925 = vmatprep.mubr.f32.mxu0 %v639
    %926 = vmatmul.mubr.f32.gmra.mrb[0].mxu0 %v637
    %v927 = vpop.f32.mrb[0].mxu0
    %v928 = vadd.f32 %v857, %v927
    %v929 = vpop.f32.mrb[0].mxu0
    %v930 = vadd.f32 %v859, %v929
    %931 = vdwg.mxu0
    %932 = vmatprep.subr.mxu0 %v95
    %933 = vmatpush1.msra.mxu0 %v94
    %934 = vmatprep.subr.mxu0 %v99
    %935 = vmatpush1.msra.mxu0 %v98
    %936 = vmatprep.subr.mxu0 %v103
    %937 = vmatpush1.msra.mxu0 %v102
    %938 = vmatprep.subr.mxu0 %v107
    %939 = vmatpush1.msra.mxu0 %v106
    %940 = vmatprep.subr.mxu0 %v111
    %941 = vmatpush1.msra.mxu0 %v110
    %942 = vmatprep.subr.mxu0 %v115
    %943 = vmatpush1.msra.mxu0 %v114
    %944 = vmatprep.subr.mxu0 %v119
    %945 = vmatpush1.msra.mxu0 %v118
    %946 = vmatprep.subr.mxu0 %v123
    %947 = vmatpush1.msra.mxu0 %v122
    %948 = vmatprep.subr.mxu0 %v127
    %949 = vmatpush1.msra.mxu0 %v126
    %950 = vmatprep.subr.mxu0 %v131
    %951 = vmatpush1.msra.mxu0 %v130
    %952 = vmatprep.subr.mxu0 %v135
    %953 = vmatpush1.msra.mxu0 %v134
    %954 = vmatprep.subr.mxu0 %v139
    %955 = vmatpush1.msra.mxu0 %v138
    %956 = vmatprep.subr.mxu0 %v143
    %957 = vmatpush1.msra.mxu0 %v142
    %958 = vmatprep.subr.mxu0 %v147
    %959 = vmatpush1.msra.mxu0 %v146
    %960 = vmatprep.subr.mxu0 %v151
    %961 = vmatpush1.msra.mxu0 %v150
    %962 = vmatprep.subr.mxu0 %v155
    %963 = vmatpush1.msra.mxu0 %v154
    %964 = vmatprep.subr.mxu0 %v159
    %965 = vmatpush1.msra.mxu0 %v158
    %966 = vmatprep.subr.mxu0 %v163
    %967 = vmatpush1.msra.mxu0 %v162
    %968 = vmatprep.subr.mxu0 %v167
    %969 = vmatpush1.msra.mxu0 %v166
    %970 = vmatprep.subr.mxu0 %v171
    %971 = vmatpush1.msra.mxu0 %v170
    %972 = vmatprep.subr.mxu0 %v175
    %973 = vmatpush1.msra.mxu0 %v174
    %974 = vmatprep.subr.mxu0 %v179
    %975 = vmatpush1.msra.mxu0 %v178
    %976 = vmatprep.subr.mxu0 %v183
    %977 = vmatpush1.msra.mxu0 %v182
    %978 = vmatprep.subr.mxu0 %v187
    %979 = vmatpush1.msra.mxu0 %v186
    %980 = vmatprep.subr.mxu0 %v191
    %981 = vmatpush1.msra.mxu0 %v190
    %982 = vmatprep.subr.mxu0 %v195
    %983 = vmatpush1.msra.mxu0 %v194
    %984 = vmatprep.subr.mxu0 %v199
    %985 = vmatpush1.msra.mxu0 %v198
    %986 = vmatprep.subr.mxu0 %v203
    %987 = vmatpush1.msra.mxu0 %v202
    %988 = vmatprep.subr.mxu0 %v207
    %989 = vmatpush1.msra.mxu0 %v206
    %990 = vmatprep.subr.mxu0 %v211
    %991 = vmatpush1.msra.mxu0 %v210
    %992 = vmatprep.subr.mxu0 %v215
    %993 = vmatpush1.msra.mxu0 %v214
    %994 = vmatprep.subr.mxu0 %v219
    %995 = vmatpush1.msra.mxu0 %v218
    %996 = vmatprep.mubr.f32.mxu0 %v621
    %997 = vmatmul.mubr.f32.gmra.mrb[0].mxu0 %v613
    %v998 = vpop.f32.mrb[0].mxu0
    %v999 = vadd.f32 0.0, %v998
    %v1000 = vpop.f32.mrb[0].mxu0
    %v1001 = vadd.f32 0.0, %v1000
    %1002 = vdwg.mxu0
    %1003 = vmatprep.subr.mxu0 %v223
    %1004 = vmatpush1.msra.mxu0 %v222
    %1005 = vmatprep.subr.mxu0 %v227
    %1006 = vmatpush1.msra.mxu0 %v226
    %1007 = vmatprep.subr.mxu0 %v231
    %1008 = vmatpush1.msra.mxu0 %v230
    %1009 = vmatprep.subr.mxu0 %v235
    %1010 = vmatpush1.msra.mxu0 %v234
    %1011 = vmatprep.subr.mxu0 %v239
    %1012 = vmatpush1.msra.mxu0 %v238
    %1013 = vmatprep.subr.mxu0 %v243
    %1014 = vmatpush1.msra.mxu0 %v242
    %1015 = vmatprep.subr.mxu0 %v247
    %1016 = vmatpush1.msra.mxu0 %v246
    %1017 = vmatprep.subr.mxu0 %v251
    %1018 = vmatpush1.msra.mxu0 %v250
    %1019 = vmatprep.subr.mxu0 %v255
    %1020 = vmatpush1.msra.mxu0 %v254
    %1021 = vmatprep.subr.mxu0 %v259
    %1022 = vmatpush1.msra.mxu0 %v258
    %1023 = vmatprep.subr.mxu0 %v263
    %1024 = vmatpush1.msra.mxu0 %v262
    %1025 = vmatprep.subr.mxu0 %v267
    %1026 = vmatpush1.msra.mxu0 %v266
    %1027 = vmatprep.subr.mxu0 %v271
    %1028 = vmatpush1.msra.mxu0 %v270
    %1029 = vmatprep.subr.mxu0 %v275
    %1030 = vmatpush1.msra.mxu0 %v274
    %1031 = vmatprep.subr.mxu0 %v279
    %1032 = vmatpush1.msra.mxu0 %v278
    %1033 = vmatprep.subr.mxu0 %v283
    %1034 = vmatpush1.msra.mxu0 %v282
    %1035 = vmatprep.subr.mxu0 %v287
    %1036 = vmatpush1.msra.mxu0 %v286
    %1037 = vmatprep.subr.mxu0 %v291
    %1038 = vmatpush1.msra.mxu0 %v290
    %1039 = vmatprep.subr.mxu0 %v295
    %1040 = vmatpush1.msra.mxu0 %v294
    %1041 = vmatprep.subr.mxu0 %v299
    %1042 = vmatpush1.msra.mxu0 %v298
    %1043 = vmatprep.subr.mxu0 %v303
    %1044 = vmatpush1.msra.mxu0 %v302
    %1045 = vmatprep.subr.mxu0 %v307
    %1046 = vmatpush1.msra.mxu0 %v306
    %1047 = vmatprep.subr.mxu0 %v311
    %1048 = vmatpush1.msra.mxu0 %v310
    %1049 = vmatprep.subr.mxu0 %v315
    %1050 = vmatpush1.msra.mxu0 %v314
    %1051 = vmatprep.subr.mxu0 %v319
    %1052 = vmatpush1.msra.mxu0 %v318
    %1053 = vmatprep.subr.mxu0 %v323
    %1054 = vmatpush1.msra.mxu0 %v322
    %1055 = vmatprep.subr.mxu0 %v327
    %1056 = vmatpush1.msra.mxu0 %v326
    %1057 = vmatprep.subr.mxu0 %v331
    %1058 = vmatpush1.msra.mxu0 %v330
    %1059 = vmatprep.subr.mxu0 %v335
    %1060 = vmatpush1.msra.mxu0 %v334
    %1061 = vmatprep.subr.mxu0 %v339
    %1062 = vmatpush1.msra.mxu0 %v338
    %1063 = vmatprep.subr.mxu0 %v343
    %1064 = vmatpush1.msra.mxu0 %v342
    %1065 = vmatprep.subr.mxu0 %v347
    %1066 = vmatpush1.msra.mxu0 %v346
    %1067 = vmatprep.mubr.f32.mxu0 %v622
    %1068 = vmatmul.mubr.f32.gmra.mrb[0].mxu0 %v620
    %v1069 = vpop.f32.mrb[0].mxu0
    %v1070 = vadd.f32 %v999, %v1069
    %v1071 = vpop.f32.mrb[0].mxu0
    %v1072 = vadd.f32 %v1001, %v1071
    %1073 = vdwg.mxu0
    %1074 = vmatprep.subr.mxu0 %v351
    %1075 = vmatpush1.msra.mxu0 %v350
    %1076 = vmatprep.subr.mxu0 %v355
    %1077 = vmatpush1.msra.mxu0 %v354
    %1078 = vmatprep.subr.mxu0 %v359
    %1079 = vmatpush1.msra.mxu0 %v358
    %1080 = vmatprep.subr.mxu0 %v363
    %1081 = vmatpush1.msra.mxu0 %v362
    %1082 = vmatprep.subr.mxu0 %v367
    %1083 = vmatpush1.msra.mxu0 %v366
    %1084 = vmatprep.subr.mxu0 %v371
    %1085 = vmatpush1.msra.mxu0 %v370
    %1086 = vmatprep.subr.mxu0 %v375
    %1087 = vmatpush1.msra.mxu0 %v374
    %1088 = vmatprep.subr.mxu0 %v379
    %1089 = vmatpush1.msra.mxu0 %v378
    %1090 = vmatprep.subr.mxu0 %v383
    %1091 = vmatpush1.msra.mxu0 %v382
    %1092 = vmatprep.subr.mxu0 %v387
    %1093 = vmatpush1.msra.mxu0 %v386
    %1094 = vmatprep.subr.mxu0 %v391
    %1095 = vmatpush1.msra.mxu0 %v390
    %1096 = vmatprep.subr.mxu0 %v395
    %1097 = vmatpush1.msra.mxu0 %v394
    %1098 = vmatprep.subr.mxu0 %v399
    %1099 = vmatpush1.msra.mxu0 %v398
    %1100 = vmatprep.subr.mxu0 %v403
    %1101 = vmatpush1.msra.mxu0 %v402
    %1102 = vmatprep.subr.mxu0 %v407
    %1103 = vmatpush1.msra.mxu0 %v406
    %1104 = vmatprep.subr.mxu0 %v411
    %1105 = vmatpush1.msra.mxu0 %v410
    %1106 = vmatprep.subr.mxu0 %v415
    %1107 = vmatpush1.msra.mxu0 %v414
    %1108 = vmatprep.subr.mxu0 %v419
    %1109 = vmatpush1.msra.mxu0 %v418
    %1110 = vmatprep.subr.mxu0 %v423
    %1111 = vmatpush1.msra.mxu0 %v422
    %1112 = vmatprep.subr.mxu0 %v427
    %1113 = vmatpush1.msra.mxu0 %v426
    %1114 = vmatprep.subr.mxu0 %v431
    %1115 = vmatpush1.msra.mxu0 %v430
    %1116 = vmatprep.subr.mxu0 %v435
    %1117 = vmatpush1.msra.mxu0 %v434
    %1118 = vmatprep.subr.mxu0 %v439
    %1119 = vmatpush1.msra.mxu0 %v438
    %1120 = vmatprep.subr.mxu0 %v443
    %1121 = vmatpush1.msra.mxu0 %v442
    %1122 = vmatprep.subr.mxu0 %v447
    %1123 = vmatpush1.msra.mxu0 %v446
    %1124 = vmatprep.subr.mxu0 %v451
    %1125 = vmatpush1.msra.mxu0 %v450
    %1126 = vmatprep.subr.mxu0 %v455
    %1127 = vmatpush1.msra.mxu0 %v454
    %1128 = vmatprep.subr.mxu0 %v459
    %1129 = vmatpush1.msra.mxu0 %v458
    %1130 = vmatprep.subr.mxu0 %v463
    %1131 = vmatpush1.msra.mxu0 %v462
    %1132 = vmatprep.subr.mxu0 %v467
    %1133 = vmatpush1.msra.mxu0 %v466
    %1134 = vmatprep.subr.mxu0 %v471
    %1135 = vmatpush1.msra.mxu0 %v470
    %1136 = vmatprep.subr.mxu0 %v475
    %1137 = vmatpush1.msra.mxu0 %v474
    %1138 = vmatprep.mubr.f32.mxu0 %v638
    %1139 = vmatmul.mubr.f32.gmra.mrb[0].mxu0 %v630
    %v1140 = vpop.f32.mrb[0].mxu0
    %v1141 = vadd.f32 %v1070, %v1140
    %v1142 = vpop.f32.mrb[0].mxu0
    %v1143 = vadd.f32 %v1072, %v1142
    %1144 = vdwg.mxu0
    %1145 = vmatprep.subr.mxu0 %v479
    %1146 = vmatpush1.msra.mxu0 %v478
    %1147 = vmatprep.subr.mxu0 %v483
    %1148 = vmatpush1.msra.mxu0 %v482
    %1149 = vmatprep.subr.mxu0 %v487
    %1150 = vmatpush1.msra.mxu0 %v486
    %1151 = vmatprep.subr.mxu0 %v491
    %1152 = vmatpush1.msra.mxu0 %v490
    %1153 = vmatprep.subr.mxu0 %v495
    %1154 = vmatpush1.msra.mxu0 %v494
    %1155 = vmatprep.subr.mxu0 %v499
    %1156 = vmatpush1.msra.mxu0 %v498
    %1157 = vmatprep.subr.mxu0 %v503
    %1158 = vmatpush1.msra.mxu0 %v502
    %1159 = vmatprep.subr.mxu0 %v507
    %1160 = vmatpush1.msra.mxu0 %v506
    %1161 = vmatprep.subr.mxu0 %v511
    %1162 = vmatpush1.msra.mxu0 %v510
    %1163 = vmatprep.subr.mxu0 %v515
    %1164 = vmatpush1.msra.mxu0 %v514
    %1165 = vmatprep.subr.mxu0 %v519
    %1166 = vmatpush1.msra.mxu0 %v518
    %1167 = vmatprep.subr.mxu0 %v523
    %1168 = vmatpush1.msra.mxu0 %v522
    %1169 = vmatprep.subr.mxu0 %v527
    %1170 = vmatpush1.msra.mxu0 %v526
    %1171 = vmatprep.subr.mxu0 %v531
    %1172 = vmatpush1.msra.mxu0 %v530
    %1173 = vmatprep.subr.mxu0 %v535
    %1174 = vmatpush1.msra.mxu0 %v534
    %1175 = vmatprep.subr.mxu0 %v539
    %1176 = vmatpush1.msra.mxu0 %v538
    %1177 = vmatprep.subr.mxu0 %v543
    %1178 = vmatpush1.msra.mxu0 %v542
    %1179 = vmatprep.subr.mxu0 %v547
    %1180 = vmatpush1.msra.mxu0 %v546
    %1181 = vmatprep.subr.mxu0 %v551
    %1182 = vmatpush1.msra.mxu0 %v550
    %1183 = vmatprep.subr.mxu0 %v555
    %1184 = vmatpush1.msra.mxu0 %v554
    %1185 = vmatprep.subr.mxu0 %v559
    %1186 = vmatpush1.msra.mxu0 %v558
    %1187 = vmatprep.subr.mxu0 %v563
    %1188 = vmatpush1.msra.mxu0 %v562
    %1189 = vmatprep.subr.mxu0 %v567
    %1190 = vmatpush1.msra.mxu0 %v566
    %1191 = vmatprep.subr.mxu0 %v571
    %1192 = vmatpush1.msra.mxu0 %v570
    %1193 = vmatprep.subr.mxu0 %v575
    %1194 = vmatpush1.msra.mxu0 %v574
    %1195 = vmatprep.subr.mxu0 %v579
    %1196 = vmatpush1.msra.mxu0 %v578
    %1197 = vmatprep.subr.mxu0 %v583
    %1198 = vmatpush1.msra.mxu0 %v582
    %1199 = vmatprep.subr.mxu0 %v587
    %1200 = vmatpush1.msra.mxu0 %v586
    %1201 = vmatprep.subr.mxu0 %v591
    %1202 = vmatpush1.msra.mxu0 %v590
    %1203 = vmatprep.subr.mxu0 %v595
    %1204 = vmatpush1.msra.mxu0 %v594
    %1205 = vmatprep.subr.mxu0 %v599
    %1206 = vmatpush1.msra.mxu0 %v598
    %1207 = vmatprep.subr.mxu0 %v603
    %1208 = vmatpush1.msra.mxu0 %v602
    %1209 = vmatprep.mubr.f32.mxu0 %v639
    %1210 = vmatmul.mubr.f32.gmra.mrb[0].mxu0 %v637
    %v1211 = vpop.f32.mrb[0].mxu0
    %v1212 = vadd.f32 %v1141, %v1211
    %v1213 = vpop.f32.mrb[0].mxu0
    %v1214 = vadd.f32 %v1143, %v1213
    %1215 = vdwg.mxu0
    %v1220 = vcombine.low %v928, %v930
    %v1221 = vcombine.low %v1212, %v1214
    %v1223 = vunpack.c.l.s4 1983009808
    %v1224 = vunpack.c.0.s8 %v1223
    %v1225 = vlaneseq
    %v1226 = vshrl.u32 %v1225, 7
    %v1227 = vsub.s32 %v1224, %v1226
    %v1228 = vrot.slane %v1220, %v1227
    %v1230 = vunpack.c.l.s4 1983009808
    %v1231 = vunpack.c.0.s8 %v1230
    %v1232 = vlaneseq
    %v1233 = vshrl.u32 %v1232, 7
    %v1234 = vsub.s32 %v1231, %v1233
    %v1235 = vrot.slane %v1221, %v1234
    %v1236 = vcombine.low %v1228, %v1235
    %1238 = vst [vmem:[#allocation13] sm:$0xff] %v1236
    %v1239 = vmax.f32 %v928, 0.0
    %v1240 = vmax.f32 %v930, 0.0
    %v1241 = vmax.f32 %v1212, 0.0
    %v1242 = vmax.f32 %v1214, 0.0
    %v1243 = vld [vmem:[#allocation8] sm:$0xff]
    %v1244 = vld [vmem:[#allocation8 + $0x8] sm:$0xff]
    %v1245 = vld [vmem:[#allocation8 + $0x10] sm:$0xff]
    %v1246 = vld [vmem:[#allocation8 + $0x18] sm:$0xff]
    %v1247 = vld [vmem:[#allocation8 + $0x20] sm:$0xff]
    %v1248 = vld [vmem:[#allocation8 + $0x28] sm:$0xff]
    %v1249 = vld [vmem:[#allocation8 + $0x30] sm:$0xff]
    %v1250 = vld [vmem:[#allocation8 + $0x38] sm:$0xff]
    %v1251 = vld [vmem:[#allocation8 + $0x40] sm:$0xff]
    %v1252 = vld [vmem:[#allocation8 + $0x48] sm:$0xff]
    %v1253 = vld [vmem:[#allocation8 + $0x50] sm:$0xff]
    %v1254 = vld [vmem:[#allocation8 + $0x58] sm:$0xff]
    %v1255 = vld [vmem:[#allocation8 + $0x60] sm:$0xff]
    %v1256 = vld [vmem:[#allocation8 + $0x68] sm:$0xff]
    %v1257 = vld [vmem:[#allocation8 + $0x70] sm:$0xff]
    %v1258 = vld [vmem:[#allocation8 + $0x78] sm:$0xff]
    %v1259 = vld [vmem:[#allocation8 + $0x80] sm:$0xff]
    %v1260 = vld [vmem:[#allocation8 + $0x88] sm:$0xff]
    %v1261 = vld [vmem:[#allocation8 + $0x90] sm:$0xff]
    %v1262 = vld [vmem:[#allocation8 + $0x98] sm:$0xff]
    %v1263 = vld [vmem:[#allocation8 + $0xa0] sm:$0xff]
    %v1264 = vld [vmem:[#allocation8 + $0xa8] sm:$0xff]
    %v1265 = vld [vmem:[#allocation8 + $0xb0] sm:$0xff]
    %v1266 = vld [vmem:[#allocation8 + $0xb8] sm:$0xff]
    %v1267 = vld [vmem:[#allocation8 + $0xc0] sm:$0xff]
    %v1268 = vld [vmem:[#allocation8 + $0xc8] sm:$0xff]
    %v1269 = vld [vmem:[#allocation8 + $0xd0] sm:$0xff]
    %v1270 = vld [vmem:[#allocation8 + $0xd8] sm:$0xff]
    %v1271 = vld [vmem:[#allocation8 + $0xe0] sm:$0xff]
    %v1272 = vld [vmem:[#allocation8 + $0xe8] sm:$0xff]
    %v1273 = vld [vmem:[#allocation8 + $0xf0] sm:$0xff]
    %v1274 = vld [vmem:[#allocation8 + $0xf8] sm:$0xff]
    %v1275 = vld [vmem:[#allocation8 + $0x100] sm:$0xff]
    %v1276 = vld [vmem:[#allocation8 + $0x108] sm:$0xff]
    %v1277 = vld [vmem:[#allocation8 + $0x110] sm:$0xff]
    %v1278 = vld [vmem:[#allocation8 + $0x118] sm:$0xff]
    %v1279 = vld [vmem:[#allocation8 + $0x120] sm:$0xff]
    %v1280 = vld [vmem:[#allocation8 + $0x128] sm:$0xff]
    %v1281 = vld [vmem:[#allocation8 + $0x130] sm:$0xff]
    %v1282 = vld [vmem:[#allocation8 + $0x138] sm:$0xff]
    %v1283 = vld [vmem:[#allocation8 + $0x140] sm:$0xff]
    %v1284 = vld [vmem:[#allocation8 + $0x148] sm:$0xff]
    %v1285 = vld [vmem:[#allocation8 + $0x150] sm:$0xff]
    %v1286 = vld [vmem:[#allocation8 + $0x158] sm:$0xff]
    %v1287 = vld [vmem:[#allocation8 + $0x160] sm:$0xff]
    %v1288 = vld [vmem:[#allocation8 + $0x168] sm:$0xff]
    %v1289 = vld [vmem:[#allocation8 + $0x170] sm:$0xff]
    %v1290 = vld [vmem:[#allocation8 + $0x178] sm:$0xff]
    %v1291 = vld [vmem:[#allocation8 + $0x180] sm:$0xff]
    %v1292 = vld [vmem:[#allocation8 + $0x188] sm:$0xff]
    %v1293 = vld [vmem:[#allocation8 + $0x190] sm:$0xff]
    %v1294 = vld [vmem:[#allocation8 + $0x198] sm:$0xff]
    %v1295 = vld [vmem:[#allocation8 + $0x1a0] sm:$0xff]
    %v1296 = vld [vmem:[#allocation8 + $0x1a8] sm:$0xff]
    %v1297 = vld [vmem:[#allocation8 + $0x1b0] sm:$0xff]
    %v1298 = vld [vmem:[#allocation8 + $0x1b8] sm:$0xff]
    %v1299 = vld [vmem:[#allocation8 + $0x1c0] sm:$0xff]
    %v1300 = vld [vmem:[#allocation8 + $0x1c8] sm:$0xff]
    %v1301 = vld [vmem:[#allocation8 + $0x1d0] sm:$0xff]
    %v1302 = vld [vmem:[#allocation8 + $0x1d8] sm:$0xff]
    %v1303 = vld [vmem:[#allocation8 + $0x1e0] sm:$0xff]
    %v1304 = vld [vmem:[#allocation8 + $0x1e8] sm:$0xff]
    %v1305 = vld [vmem:[#allocation8 + $0x1f0] sm:$0xff]
    %v1306 = vld [vmem:[#allocation8 + $0x1f8] sm:$0xff]
    %v1307 = vld [vmem:[#allocation8 + $0x200] sm:$0xff]
    %v1308 = vld [vmem:[#allocation8 + $0x208] sm:$0xff]
    %v1309 = vld [vmem:[#allocation8 + $0x210] sm:$0xff]
    %v1310 = vld [vmem:[#allocation8 + $0x218] sm:$0xff]
    %v1311 = vld [vmem:[#allocation8 + $0x220] sm:$0xff]
    %v1312 = vld [vmem:[#allocation8 + $0x228] sm:$0xff]
    %v1313 = vld [vmem:[#allocation8 + $0x230] sm:$0xff]
    %v1314 = vld [vmem:[#allocation8 + $0x238] sm:$0xff]
    %v1315 = vld [vmem:[#allocation8 + $0x240] sm:$0xff]
    %v1316 = vld [vmem:[#allocation8 + $0x248] sm:$0xff]
    %v1317 = vld [vmem:[#allocation8 + $0x250] sm:$0xff]
    %v1318 = vld [vmem:[#allocation8 + $0x258] sm:$0xff]
    %v1319 = vld [vmem:[#allocation8 + $0x260] sm:$0xff]
    %v1320 = vld [vmem:[#allocation8 + $0x268] sm:$0xff]
    %v1321 = vld [vmem:[#allocation8 + $0x270] sm:$0xff]
    %v1322 = vld [vmem:[#allocation8 + $0x278] sm:$0xff]
    %v1323 = vld [vmem:[#allocation8 + $0x280] sm:$0xff]
    %v1324 = vld [vmem:[#allocation8 + $0x288] sm:$0xff]
    %v1325 = vld [vmem:[#allocation8 + $0x290] sm:$0xff]
    %v1326 = vld [vmem:[#allocation8 + $0x298] sm:$0xff]
    %v1327 = vld [vmem:[#allocation8 + $0x2a0] sm:$0xff]
    %v1328 = vld [vmem:[#allocation8 + $0x2a8] sm:$0xff]
    %v1329 = vld [vmem:[#allocation8 + $0x2b0] sm:$0xff]
    %v1330 = vld [vmem:[#allocation8 + $0x2b8] sm:$0xff]
    %v1331 = vld [vmem:[#allocation8 + $0x2c0] sm:$0xff]
    %v1332 = vld [vmem:[#allocation8 + $0x2c8] sm:$0xff]
    %v1333 = vld [vmem:[#allocation8 + $0x2d0] sm:$0xff]
    %v1334 = vld [vmem:[#allocation8 + $0x2d8] sm:$0xff]
    %v1335 = vld [vmem:[#allocation8 + $0x2e0] sm:$0xff]
    %v1336 = vld [vmem:[#allocation8 + $0x2e8] sm:$0xff]
    %v1337 = vld [vmem:[#allocation8 + $0x2f0] sm:$0xff]
    %v1338 = vld [vmem:[#allocation8 + $0x2f8] sm:$0xff]
    %v1339 = vld [vmem:[#allocation8 + $0x300] sm:$0xff]
    %v1340 = vld [vmem:[#allocation8 + $0x308] sm:$0xff]
    %v1341 = vld [vmem:[#allocation8 + $0x310] sm:$0xff]
    %v1342 = vld [vmem:[#allocation8 + $0x318] sm:$0xff]
    %v1343 = vld [vmem:[#allocation8 + $0x320] sm:$0xff]
    %v1344 = vld [vmem:[#allocation8 + $0x328] sm:$0xff]
    %v1345 = vld [vmem:[#allocation8 + $0x330] sm:$0xff]
    %v1346 = vld [vmem:[#allocation8 + $0x338] sm:$0xff]
    %v1347 = vld [vmem:[#allocation8 + $0x340] sm:$0xff]
    %v1348 = vld [vmem:[#allocation8 + $0x348] sm:$0xff]
    %v1349 = vld [vmem:[#allocation8 + $0x350] sm:$0xff]
    %v1350 = vld [vmem:[#allocation8 + $0x358] sm:$0xff]
    %v1351 = vld [vmem:[#allocation8 + $0x360] sm:$0xff]
    %v1352 = vld [vmem:[#allocation8 + $0x368] sm:$0xff]
    %v1353 = vld [vmem:[#allocation8 + $0x370] sm:$0xff]
    %v1354 = vld [vmem:[#allocation8 + $0x378] sm:$0xff]
    %v1355 = vld [vmem:[#allocation8 + $0x380] sm:$0xff]
    %v1356 = vld [vmem:[#allocation8 + $0x388] sm:$0xff]
    %v1357 = vld [vmem:[#allocation8 + $0x390] sm:$0xff]
    %v1358 = vld [vmem:[#allocation8 + $0x398] sm:$0xff]
    %v1359 = vld [vmem:[#allocation8 + $0x3a0] sm:$0xff]
    %v1360 = vld [vmem:[#allocation8 + $0x3a8] sm:$0xff]
    %v1361 = vld [vmem:[#allocation8 + $0x3b0] sm:$0xff]
    %v1362 = vld [vmem:[#allocation8 + $0x3b8] sm:$0xff]
    %v1363 = vld [vmem:[#allocation8 + $0x3c0] sm:$0xff]
    %v1364 = vld [vmem:[#allocation8 + $0x3c8] sm:$0xff]
    %v1365 = vld [vmem:[#allocation8 + $0x3d0] sm:$0xff]
    %v1366 = vld [vmem:[#allocation8 + $0x3d8] sm:$0xff]
    %v1367 = vld [vmem:[#allocation8 + $0x3e0] sm:$0xff]
    %v1368 = vld [vmem:[#allocation8 + $0x3e8] sm:$0xff]
    %v1369 = vld [vmem:[#allocation8 + $0x3f0] sm:$0xff]
    %v1370 = vld [vmem:[#allocation8 + $0x3f8] sm:$0xff]
    %v1371 = vld [vmem:[#allocation8 + $0x400] sm:$0xff]
    %v1372 = vld [vmem:[#allocation8 + $0x408] sm:$0xff]
    %v1373 = vld [vmem:[#allocation8 + $0x410] sm:$0xff]
    %v1374 = vld [vmem:[#allocation8 + $0x418] sm:$0xff]
    %v1375 = vld [vmem:[#allocation8 + $0x420] sm:$0xff]
    %v1376 = vld [vmem:[#allocation8 + $0x428] sm:$0xff]
    %v1377 = vld [vmem:[#allocation8 + $0x430] sm:$0xff]
    %v1378 = vld [vmem:[#allocation8 + $0x438] sm:$0xff]
    %v1379 = vld [vmem:[#allocation8 + $0x440] sm:$0xff]
    %v1380 = vld [vmem:[#allocation8 + $0x448] sm:$0xff]
    %v1381 = vld [vmem:[#allocation8 + $0x450] sm:$0xff]
    %v1382 = vld [vmem:[#allocation8 + $0x458] sm:$0xff]
    %v1383 = vld [vmem:[#allocation8 + $0x460] sm:$0xff]
    %v1384 = vld [vmem:[#allocation8 + $0x468] sm:$0xff]
    %v1385 = vld [vmem:[#allocation8 + $0x470] sm:$0xff]
    %v1386 = vld [vmem:[#allocation8 + $0x478] sm:$0xff]
    %v1387 = vld [vmem:[#allocation8 + $0x480] sm:$0xff]
    %v1388 = vld [vmem:[#allocation8 + $0x488] sm:$0xff]
    %v1389 = vld [vmem:[#allocation8 + $0x490] sm:$0xff]
    %v1390 = vld [vmem:[#allocation8 + $0x498] sm:$0xff]
    %v1391 = vld [vmem:[#allocation8 + $0x4a0] sm:$0xff]
    %v1392 = vld [vmem:[#allocation8 + $0x4a8] sm:$0xff]
    %v1393 = vld [vmem:[#allocation8 + $0x4b0] sm:$0xff]
    %v1394 = vld [vmem:[#allocation8 + $0x4b8] sm:$0xff]
    %v1395 = vld [vmem:[#allocation8 + $0x4c0] sm:$0xff]
    %v1396 = vld [vmem:[#allocation8 + $0x4c8] sm:$0xff]
    %v1397 = vld [vmem:[#allocation8 + $0x4d0] sm:$0xff]
    %v1398 = vld [vmem:[#allocation8 + $0x4d8] sm:$0xff]
    %v1399 = vld [vmem:[#allocation8 + $0x4e0] sm:$0xff]
    %v1400 = vld [vmem:[#allocation8 + $0x4e8] sm:$0xff]
    %v1401 = vld [vmem:[#allocation8 + $0x4f0] sm:$0xff]
    %v1402 = vld [vmem:[#allocation8 + $0x4f8] sm:$0xff]
    %v1403 = vld [vmem:[#allocation8 + $0x500] sm:$0xff]
    %v1404 = vld [vmem:[#allocation8 + $0x508] sm:$0xff]
    %v1405 = vld [vmem:[#allocation8 + $0x510] sm:$0xff]
    %v1406 = vld [vmem:[#allocation8 + $0x518] sm:$0xff]
    %v1407 = vld [vmem:[#allocation8 + $0x520] sm:$0xff]
    %v1408 = vld [vmem:[#allocation8 + $0x528] sm:$0xff]
    %v1409 = vld [vmem:[#allocation8 + $0x530] sm:$0xff]
    %v1410 = vld [vmem:[#allocation8 + $0x538] sm:$0xff]
    %v1411 = vld [vmem:[#allocation8 + $0x540] sm:$0xff]
    %v1412 = vld [vmem:[#allocation8 + $0x548] sm:$0xff]
    %v1413 = vld [vmem:[#allocation8 + $0x550] sm:$0xff]
    %v1414 = vld [vmem:[#allocation8 + $0x558] sm:$0xff]
    %v1415 = vld [vmem:[#allocation8 + $0x560] sm:$0xff]
    %v1416 = vld [vmem:[#allocation8 + $0x568] sm:$0xff]
    %v1417 = vld [vmem:[#allocation8 + $0x570] sm:$0xff]
    %v1418 = vld [vmem:[#allocation8 + $0x578] sm:$0xff]
    %v1419 = vld [vmem:[#allocation8 + $0x580] sm:$0xff]
    %v1420 = vld [vmem:[#allocation8 + $0x588] sm:$0xff]
    %v1421 = vld [vmem:[#allocation8 + $0x590] sm:$0xff]
    %v1422 = vld [vmem:[#allocation8 + $0x598] sm:$0xff]
    %v1423 = vld [vmem:[#allocation8 + $0x5a0] sm:$0xff]
    %v1424 = vld [vmem:[#allocation8 + $0x5a8] sm:$0xff]
    %v1425 = vld [vmem:[#allocation8 + $0x5b0] sm:$0xff]
    %v1426 = vld [vmem:[#allocation8 + $0x5b8] sm:$0xff]
    %v1427 = vld [vmem:[#allocation8 + $0x5c0] sm:$0xff]
    %v1428 = vld [vmem:[#allocation8 + $0x5c8] sm:$0xff]
    %v1429 = vld [vmem:[#allocation8 + $0x5d0] sm:$0xff]
    %v1430 = vld [vmem:[#allocation8 + $0x5d8] sm:$0xff]
    %v1431 = vld [vmem:[#allocation8 + $0x5e0] sm:$0xff]
    %v1432 = vld [vmem:[#allocation8 + $0x5e8] sm:$0xff]
    %v1433 = vld [vmem:[#allocation8 + $0x5f0] sm:$0xff]
    %v1434 = vld [vmem:[#allocation8 + $0x5f8] sm:$0xff]
    %v1435 = vld [vmem:[#allocation8 + $0x600] sm:$0xff]
    %v1436 = vld [vmem:[#allocation8 + $0x608] sm:$0xff]
    %v1437 = vld [vmem:[#allocation8 + $0x610] sm:$0xff]
    %v1438 = vld [vmem:[#allocation8 + $0x618] sm:$0xff]
    %v1439 = vld [vmem:[#allocation8 + $0x620] sm:$0xff]
    %v1440 = vld [vmem:[#allocation8 + $0x628] sm:$0xff]
    %v1441 = vld [vmem:[#allocation8 + $0x630] sm:$0xff]
    %v1442 = vld [vmem:[#allocation8 + $0x638] sm:$0xff]
    %v1443 = vld [vmem:[#allocation8 + $0x640] sm:$0xff]
    %v1444 = vld [vmem:[#allocation8 + $0x648] sm:$0xff]
    %v1445 = vld [vmem:[#allocation8 + $0x650] sm:$0xff]
    %v1446 = vld [vmem:[#allocation8 + $0x658] sm:$0xff]
    %v1447 = vld [vmem:[#allocation8 + $0x660] sm:$0xff]
    %v1448 = vld [vmem:[#allocation8 + $0x668] sm:$0xff]
    %v1449 = vld [vmem:[#allocation8 + $0x670] sm:$0xff]
    %v1450 = vld [vmem:[#allocation8 + $0x678] sm:$0xff]
    %v1451 = vld [vmem:[#allocation8 + $0x680] sm:$0xff]
    %v1452 = vld [vmem:[#allocation8 + $0x688] sm:$0xff]
    %v1453 = vld [vmem:[#allocation8 + $0x690] sm:$0xff]
    %v1454 = vld [vmem:[#allocation8 + $0x698] sm:$0xff]
    %v1455 = vld [vmem:[#allocation8 + $0x6a0] sm:$0xff]
    %v1456 = vld [vmem:[#allocation8 + $0x6a8] sm:$0xff]
    %v1457 = vld [vmem:[#allocation8 + $0x6b0] sm:$0xff]
    %v1458 = vld [vmem:[#allocation8 + $0x6b8] sm:$0xff]
    %v1459 = vld [vmem:[#allocation8 + $0x6c0] sm:$0xff]
    %v1460 = vld [vmem:[#allocation8 + $0x6c8] sm:$0xff]
    %v1461 = vld [vmem:[#allocation8 + $0x6d0] sm:$0xff]
    %v1462 = vld [vmem:[#allocation8 + $0x6d8] sm:$0xff]
    %v1463 = vld [vmem:[#allocation8 + $0x6e0] sm:$0xff]
    %v1464 = vld [vmem:[#allocation8 + $0x6e8] sm:$0xff]
    %v1465 = vld [vmem:[#allocation8 + $0x6f0] sm:$0xff]
    %v1466 = vld [vmem:[#allocation8 + $0x6f8] sm:$0xff]
    %v1467 = vld [vmem:[#allocation8 + $0x700] sm:$0xff]
    %v1468 = vld [vmem:[#allocation8 + $0x708] sm:$0xff]
    %v1469 = vld [vmem:[#allocation8 + $0x710] sm:$0xff]
    %v1470 = vld [vmem:[#allocation8 + $0x718] sm:$0xff]
    %v1471 = vld [vmem:[#allocation8 + $0x720] sm:$0xff]
    %v1472 = vld [vmem:[#allocation8 + $0x728] sm:$0xff]
    %v1473 = vld [vmem:[#allocation8 + $0x730] sm:$0xff]
    %v1474 = vld [vmem:[#allocation8 + $0x738] sm:$0xff]
    %v1475 = vld [vmem:[#allocation8 + $0x740] sm:$0xff]
    %v1476 = vld [vmem:[#allocation8 + $0x748] sm:$0xff]
    %v1477 = vld [vmem:[#allocation8 + $0x750] sm:$0xff]
    %v1478 = vld [vmem:[#allocation8 + $0x758] sm:$0xff]
    %v1479 = vld [vmem:[#allocation8 + $0x760] sm:$0xff]
    %v1480 = vld [vmem:[#allocation8 + $0x768] sm:$0xff]
    %v1481 = vld [vmem:[#allocation8 + $0x770] sm:$0xff]
    %v1482 = vld [vmem:[#allocation8 + $0x778] sm:$0xff]
    %v1483 = vld [vmem:[#allocation8 + $0x780] sm:$0xff]
    %v1484 = vld [vmem:[#allocation8 + $0x788] sm:$0xff]
    %v1485 = vld [vmem:[#allocation8 + $0x790] sm:$0xff]
    %v1486 = vld [vmem:[#allocation8 + $0x798] sm:$0xff]
    %v1487 = vld [vmem:[#allocation8 + $0x7a0] sm:$0xff]
    %v1488 = vld [vmem:[#allocation8 + $0x7a8] sm:$0xff]
    %v1489 = vld [vmem:[#allocation8 + $0x7b0] sm:$0xff]
    %v1490 = vld [vmem:[#allocation8 + $0x7b8] sm:$0xff]
    %v1491 = vld [vmem:[#allocation8 + $0x7c0] sm:$0xff]
    %v1492 = vld [vmem:[#allocation8 + $0x7c8] sm:$0xff]
    %v1493 = vld [vmem:[#allocation8 + $0x7d0] sm:$0xff]
    %v1494 = vld [vmem:[#allocation8 + $0x7d8] sm:$0xff]
    %v1495 = vld [vmem:[#allocation8 + $0x7e0] sm:$0xff]
    %v1496 = vld [vmem:[#allocation8 + $0x7e8] sm:$0xff]
    %v1497 = vld [vmem:[#allocation8 + $0x7f0] sm:$0xff]
    %v1498 = vld [vmem:[#allocation8 + $0x7f8] sm:$0xff]
    %v1499 = vld [vmem:[#allocation8 + $0x800] sm:$0xff]
    %v1500 = vld [vmem:[#allocation8 + $0x808] sm:$0xff]
    %v1501 = vld [vmem:[#allocation8 + $0x810] sm:$0xff]
    %v1502 = vld [vmem:[#allocation8 + $0x818] sm:$0xff]
    %v1503 = vld [vmem:[#allocation8 + $0x820] sm:$0xff]
    %v1504 = vld [vmem:[#allocation8 + $0x828] sm:$0xff]
    %v1505 = vld [vmem:[#allocation8 + $0x830] sm:$0xff]
    %v1506 = vld [vmem:[#allocation8 + $0x838] sm:$0xff]
    %v1507 = vld [vmem:[#allocation8 + $0x840] sm:$0xff]
    %v1508 = vld [vmem:[#allocation8 + $0x848] sm:$0xff]
    %v1509 = vld [vmem:[#allocation8 + $0x850] sm:$0xff]
    %v1510 = vld [vmem:[#allocation8 + $0x858] sm:$0xff]
    %v1511 = vld [vmem:[#allocation8 + $0x860] sm:$0xff]
    %v1512 = vld [vmem:[#allocation8 + $0x868] sm:$0xff]
    %v1513 = vld [vmem:[#allocation8 + $0x870] sm:$0xff]
    %v1514 = vld [vmem:[#allocation8 + $0x878] sm:$0xff]
    %v1515 = vld [vmem:[#allocation8 + $0x880] sm:$0xff]
    %v1516 = vld [vmem:[#allocation8 + $0x888] sm:$0xff]
    %v1517 = vld [vmem:[#allocation8 + $0x890] sm:$0xff]
    %v1518 = vld [vmem:[#allocation8 + $0x898] sm:$0xff]
    %v1519 = vld [vmem:[#allocation8 + $0x8a0] sm:$0xff]
    %v1520 = vld [vmem:[#allocation8 + $0x8a8] sm:$0xff]
    %v1521 = vld [vmem:[#allocation8 + $0x8b0] sm:$0xff]
    %v1522 = vld [vmem:[#allocation8 + $0x8b8] sm:$0xff]
    %v1523 = vld [vmem:[#allocation8 + $0x8c0] sm:$0xff]
    %v1524 = vld [vmem:[#allocation8 + $0x8c8] sm:$0xff]
    %v1525 = vld [vmem:[#allocation8 + $0x8d0] sm:$0xff]
    %v1526 = vld [vmem:[#allocation8 + $0x8d8] sm:$0xff]
    %v1527 = vld [vmem:[#allocation8 + $0x8e0] sm:$0xff]
    %v1528 = vld [vmem:[#allocation8 + $0x8e8] sm:$0xff]
    %v1529 = vld [vmem:[#allocation8 + $0x8f0] sm:$0xff]
    %v1530 = vld [vmem:[#allocation8 + $0x8f8] sm:$0xff]
    %v1531 = vld [vmem:[#allocation8 + $0x900] sm:$0xff]
    %v1532 = vld [vmem:[#allocation8 + $0x908] sm:$0xff]
    %v1533 = vld [vmem:[#allocation8 + $0x910] sm:$0xff]
    %v1534 = vld [vmem:[#allocation8 + $0x918] sm:$0xff]
    %v1535 = vld [vmem:[#allocation8 + $0x920] sm:$0xff]
    %v1536 = vld [vmem:[#allocation8 + $0x928] sm:$0xff]
    %v1537 = vld [vmem:[#allocation8 + $0x930] sm:$0xff]
    %v1538 = vld [vmem:[#allocation8 + $0x938] sm:$0xff]
    %v1539 = vld [vmem:[#allocation8 + $0x940] sm:$0xff]
    %v1540 = vld [vmem:[#allocation8 + $0x948] sm:$0xff]
    %v1541 = vld [vmem:[#allocation8 + $0x950] sm:$0xff]
    %v1542 = vld [vmem:[#allocation8 + $0x958] sm:$0xff]
    %v1543 = vld [vmem:[#allocation8 + $0x960] sm:$0xff]
    %v1544 = vld [vmem:[#allocation8 + $0x968] sm:$0xff]
    %v1545 = vld [vmem:[#allocation8 + $0x970] sm:$0xff]
    %v1546 = vld [vmem:[#allocation8 + $0x978] sm:$0xff]
    %v1547 = vld [vmem:[#allocation8 + $0x980] sm:$0xff]
    %v1548 = vld [vmem:[#allocation8 + $0x988] sm:$0xff]
    %v1549 = vld [vmem:[#allocation8 + $0x990] sm:$0xff]
    %v1550 = vld [vmem:[#allocation8 + $0x998] sm:$0xff]
    %v1551 = vld [vmem:[#allocation8 + $0x9a0] sm:$0xff]
    %v1552 = vld [vmem:[#allocation8 + $0x9a8] sm:$0xff]
    %v1553 = vld [vmem:[#allocation8 + $0x9b0] sm:$0xff]
    %v1554 = vld [vmem:[#allocation8 + $0x9b8] sm:$0xff]
    %v1555 = vld [vmem:[#allocation8 + $0x9c0] sm:$0xff]
    %v1556 = vld [vmem:[#allocation8 + $0x9c8] sm:$0xff]
    %v1557 = vld [vmem:[#allocation8 + $0x9d0] sm:$0xff]
    %v1558 = vld [vmem:[#allocation8 + $0x9d8] sm:$0xff]
    %v1559 = vld [vmem:[#allocation8 + $0x9e0] sm:$0xff]
    %v1560 = vld [vmem:[#allocation8 + $0x9e8] sm:$0xff]
    %v1561 = vld [vmem:[#allocation8 + $0x9f0] sm:$0xff]
    %v1562 = vld [vmem:[#allocation8 + $0x9f8] sm:$0xff]
    %v1563 = vld [vmem:[#allocation8 + $0xa00] sm:$0xff]
    %v1564 = vld [vmem:[#allocation8 + $0xa08] sm:$0xff]
    %v1565 = vld [vmem:[#allocation8 + $0xa10] sm:$0xff]
    %v1566 = vld [vmem:[#allocation8 + $0xa18] sm:$0xff]
    %v1567 = vld [vmem:[#allocation8 + $0xa20] sm:$0xff]
    %v1568 = vld [vmem:[#allocation8 + $0xa28] sm:$0xff]
    %v1569 = vld [vmem:[#allocation8 + $0xa30] sm:$0xff]
    %v1570 = vld [vmem:[#allocation8 + $0xa38] sm:$0xff]
    %v1571 = vld [vmem:[#allocation8 + $0xa40] sm:$0xff]
    %v1572 = vld [vmem:[#allocation8 + $0xa48] sm:$0xff]
    %v1573 = vld [vmem:[#allocation8 + $0xa50] sm:$0xff]
    %v1574 = vld [vmem:[#allocation8 + $0xa58] sm:$0xff]
    %v1575 = vld [vmem:[#allocation8 + $0xa60] sm:$0xff]
    %v1576 = vld [vmem:[#allocation8 + $0xa68] sm:$0xff]
    %v1577 = vld [vmem:[#allocation8 + $0xa70] sm:$0xff]
    %v1578 = vld [vmem:[#allocation8 + $0xa78] sm:$0xff]
    %v1579 = vld [vmem:[#allocation8 + $0xa80] sm:$0xff]
    %v1580 = vld [vmem:[#allocation8 + $0xa88] sm:$0xff]
    %v1581 = vld [vmem:[#allocation8 + $0xa90] sm:$0xff]
    %v1582 = vld [vmem:[#allocation8 + $0xa98] sm:$0xff]
    %v1583 = vld [vmem:[#allocation8 + $0xaa0] sm:$0xff]
    %v1584 = vld [vmem:[#allocation8 + $0xaa8] sm:$0xff]
    %v1585 = vld [vmem:[#allocation8 + $0xab0] sm:$0xff]
    %v1586 = vld [vmem:[#allocation8 + $0xab8] sm:$0xff]
    %v1587 = vld [vmem:[#allocation8 + $0xac0] sm:$0xff]
    %v1588 = vld [vmem:[#allocation8 + $0xac8] sm:$0xff]
    %v1589 = vld [vmem:[#allocation8 + $0xad0] sm:$0xff]
    %v1590 = vld [vmem:[#allocation8 + $0xad8] sm:$0xff]
    %v1591 = vld [vmem:[#allocation8 + $0xae0] sm:$0xff]
    %v1592 = vld [vmem:[#allocation8 + $0xae8] sm:$0xff]
    %v1593 = vld [vmem:[#allocation8 + $0xaf0] sm:$0xff]
    %v1594 = vld [vmem:[#allocation8 + $0xaf8] sm:$0xff]
    %v1595 = vld [vmem:[#allocation8 + $0xb00] sm:$0xff]
    %v1596 = vld [vmem:[#allocation8 + $0xb08] sm:$0xff]
    %v1597 = vld [vmem:[#allocation8 + $0xb10] sm:$0xff]
    %v1598 = vld [vmem:[#allocation8 + $0xb18] sm:$0xff]
    %v1599 = vld [vmem:[#allocation8 + $0xb20] sm:$0xff]
    %v1600 = vld [vmem:[#allocation8 + $0xb28] sm:$0xff]
    %v1601 = vld [vmem:[#allocation8 + $0xb30] sm:$0xff]
    %v1602 = vld [vmem:[#allocation8 + $0xb38] sm:$0xff]
    %v1603 = vld [vmem:[#allocation8 + $0xb40] sm:$0xff]
    %v1604 = vld [vmem:[#allocation8 + $0xb48] sm:$0xff]
    %v1605 = vld [vmem:[#allocation8 + $0xb50] sm:$0xff]
    %v1606 = vld [vmem:[#allocation8 + $0xb58] sm:$0xff]
    %v1607 = vld [vmem:[#allocation8 + $0xb60] sm:$0xff]
    %v1608 = vld [vmem:[#allocation8 + $0xb68] sm:$0xff]
    %v1609 = vld [vmem:[#allocation8 + $0xb70] sm:$0xff]
    %v1610 = vld [vmem:[#allocation8 + $0xb78] sm:$0xff]
    %v1611 = vld [vmem:[#allocation8 + $0xb80] sm:$0xff]
    %v1612 = vld [vmem:[#allocation8 + $0xb88] sm:$0xff]
    %v1613 = vld [vmem:[#allocation8 + $0xb90] sm:$0xff]
    %v1614 = vld [vmem:[#allocation8 + $0xb98] sm:$0xff]
    %v1615 = vld [vmem:[#allocation8 + $0xba0] sm:$0xff]
    %v1616 = vld [vmem:[#allocation8 + $0xba8] sm:$0xff]
    %v1617 = vld [vmem:[#allocation8 + $0xbb0] sm:$0xff]
    %v1618 = vld [vmem:[#allocation8 + $0xbb8] sm:$0xff]
    %v1619 = vld [vmem:[#allocation8 + $0xbc0] sm:$0xff]
    %v1620 = vld [vmem:[#allocation8 + $0xbc8] sm:$0xff]
    %v1621 = vld [vmem:[#allocation8 + $0xbd0] sm:$0xff]
    %v1622 = vld [vmem:[#allocation8 + $0xbd8] sm:$0xff]
    %v1623 = vld [vmem:[#allocation8 + $0xbe0] sm:$0xff]
    %v1624 = vld [vmem:[#allocation8 + $0xbe8] sm:$0xff]
    %v1625 = vld [vmem:[#allocation8 + $0xbf0] sm:$0xff]
    %v1626 = vld [vmem:[#allocation8 + $0xbf8] sm:$0xff]
    %v1627 = vld [vmem:[#allocation8 + $0xc00] sm:$0xff]
    %v1628 = vld [vmem:[#allocation8 + $0xc08] sm:$0xff]
    %v1629 = vld [vmem:[#allocation8 + $0xc10] sm:$0xff]
    %v1630 = vld [vmem:[#allocation8 + $0xc18] sm:$0xff]
    %v1631 = vld [vmem:[#allocation8 + $0xc20] sm:$0xff]
    %v1632 = vld [vmem:[#allocation8 + $0xc28] sm:$0xff]
    %v1633 = vld [vmem:[#allocation8 + $0xc30] sm:$0xff]
    %v1634 = vld [vmem:[#allocation8 + $0xc38] sm:$0xff]
    %v1635 = vld [vmem:[#allocation8 + $0xc40] sm:$0xff]
    %v1636 = vld [vmem:[#allocation8 + $0xc48] sm:$0xff]
    %v1637 = vld [vmem:[#allocation8 + $0xc50] sm:$0xff]
    %v1638 = vld [vmem:[#allocation8 + $0xc58] sm:$0xff]
    %v1639 = vld [vmem:[#allocation8 + $0xc60] sm:$0xff]
    %v1640 = vld [vmem:[#allocation8 + $0xc68] sm:$0xff]
    %v1641 = vld [vmem:[#allocation8 + $0xc70] sm:$0xff]
    %v1642 = vld [vmem:[#allocation8 + $0xc78] sm:$0xff]
    %v1643 = vld [vmem:[#allocation8 + $0xc80] sm:$0xff]
    %v1644 = vld [vmem:[#allocation8 + $0xc88] sm:$0xff]
    %v1645 = vld [vmem:[#allocation8 + $0xc90] sm:$0xff]
    %v1646 = vld [vmem:[#allocation8 + $0xc98] sm:$0xff]
    %v1647 = vld [vmem:[#allocation8 + $0xca0] sm:$0xff]
    %v1648 = vld [vmem:[#allocation8 + $0xca8] sm:$0xff]
    %v1649 = vld [vmem:[#allocation8 + $0xcb0] sm:$0xff]
    %v1650 = vld [vmem:[#allocation8 + $0xcb8] sm:$0xff]
    %v1651 = vld [vmem:[#allocation8 + $0xcc0] sm:$0xff]
    %v1652 = vld [vmem:[#allocation8 + $0xcc8] sm:$0xff]
    %v1653 = vld [vmem:[#allocation8 + $0xcd0] sm:$0xff]
    %v1654 = vld [vmem:[#allocation8 + $0xcd8] sm:$0xff]
    %v1655 = vld [vmem:[#allocation8 + $0xce0] sm:$0xff]
    %v1656 = vld [vmem:[#allocation8 + $0xce8] sm:$0xff]
    %v1657 = vld [vmem:[#allocation8 + $0xcf0] sm:$0xff]
    %v1658 = vld [vmem:[#allocation8 + $0xcf8] sm:$0xff]
    %v1659 = vld [vmem:[#allocation8 + $0xd00] sm:$0xff]
    %v1660 = vld [vmem:[#allocation8 + $0xd08] sm:$0xff]
    %v1661 = vld [vmem:[#allocation8 + $0xd10] sm:$0xff]
    %v1662 = vld [vmem:[#allocation8 + $0xd18] sm:$0xff]
    %v1663 = vld [vmem:[#allocation8 + $0xd20] sm:$0xff]
    %v1664 = vld [vmem:[#allocation8 + $0xd28] sm:$0xff]
    %v1665 = vld [vmem:[#allocation8 + $0xd30] sm:$0xff]
    %v1666 = vld [vmem:[#allocation8 + $0xd38] sm:$0xff]
    %v1667 = vld [vmem:[#allocation8 + $0xd40] sm:$0xff]
    %v1668 = vld [vmem:[#allocation8 + $0xd48] sm:$0xff]
    %v1669 = vld [vmem:[#allocation8 + $0xd50] sm:$0xff]
    %v1670 = vld [vmem:[#allocation8 + $0xd58] sm:$0xff]
    %v1671 = vld [vmem:[#allocation8 + $0xd60] sm:$0xff]
    %v1672 = vld [vmem:[#allocation8 + $0xd68] sm:$0xff]
    %v1673 = vld [vmem:[#allocation8 + $0xd70] sm:$0xff]
    %v1674 = vld [vmem:[#allocation8 + $0xd78] sm:$0xff]
    %v1675 = vld [vmem:[#allocation8 + $0xd80] sm:$0xff]
    %v1676 = vld [vmem:[#allocation8 + $0xd88] sm:$0xff]
    %v1677 = vld [vmem:[#allocation8 + $0xd90] sm:$0xff]
    %v1678 = vld [vmem:[#allocation8 + $0xd98] sm:$0xff]
    %v1679 = vld [vmem:[#allocation8 + $0xda0] sm:$0xff]
    %v1680 = vld [vmem:[#allocation8 + $0xda8] sm:$0xff]
    %v1681 = vld [vmem:[#allocation8 + $0xdb0] sm:$0xff]
    %v1682 = vld [vmem:[#allocation8 + $0xdb8] sm:$0xff]
    %v1683 = vld [vmem:[#allocation8 + $0xdc0] sm:$0xff]
    %v1684 = vld [vmem:[#allocation8 + $0xdc8] sm:$0xff]
    %v1685 = vld [vmem:[#allocation8 + $0xdd0] sm:$0xff]
    %v1686 = vld [vmem:[#allocation8 + $0xdd8] sm:$0xff]
    %v1687 = vld [vmem:[#allocation8 + $0xde0] sm:$0xff]
    %v1688 = vld [vmem:[#allocation8 + $0xde8] sm:$0xff]
    %v1689 = vld [vmem:[#allocation8 + $0xdf0] sm:$0xff]
    %v1690 = vld [vmem:[#allocation8 + $0xdf8] sm:$0xff]
    %v1691 = vld [vmem:[#allocation8 + $0xe00] sm:$0xff]
    %v1692 = vld [vmem:[#allocation8 + $0xe08] sm:$0xff]
    %v1693 = vld [vmem:[#allocation8 + $0xe10] sm:$0xff]
    %v1694 = vld [vmem:[#allocation8 + $0xe18] sm:$0xff]
    %v1695 = vld [vmem:[#allocation8 + $0xe20] sm:$0xff]
    %v1696 = vld [vmem:[#allocation8 + $0xe28] sm:$0xff]
    %v1697 = vld [vmem:[#allocation8 + $0xe30] sm:$0xff]
    %v1698 = vld [vmem:[#allocation8 + $0xe38] sm:$0xff]
    %v1699 = vld [vmem:[#allocation8 + $0xe40] sm:$0xff]
    %v1700 = vld [vmem:[#allocation8 + $0xe48] sm:$0xff]
    %v1701 = vld [vmem:[#allocation8 + $0xe50] sm:$0xff]
    %v1702 = vld [vmem:[#allocation8 + $0xe58] sm:$0xff]
    %v1703 = vld [vmem:[#allocation8 + $0xe60] sm:$0xff]
    %v1704 = vld [vmem:[#allocation8 + $0xe68] sm:$0xff]
    %v1705 = vld [vmem:[#allocation8 + $0xe70] sm:$0xff]
    %v1706 = vld [vmem:[#allocation8 + $0xe78] sm:$0xff]
    %v1707 = vld [vmem:[#allocation8 + $0xe80] sm:$0xff]
    %v1708 = vld [vmem:[#allocation8 + $0xe88] sm:$0xff]
    %v1709 = vld [vmem:[#allocation8 + $0xe90] sm:$0xff]
    %v1710 = vld [vmem:[#allocation8 + $0xe98] sm:$0xff]
    %v1711 = vld [vmem:[#allocation8 + $0xea0] sm:$0xff]
    %v1712 = vld [vmem:[#allocation8 + $0xea8] sm:$0xff]
    %v1713 = vld [vmem:[#allocation8 + $0xeb0] sm:$0xff]
    %v1714 = vld [vmem:[#allocation8 + $0xeb8] sm:$0xff]
    %v1715 = vld [vmem:[#allocation8 + $0xec0] sm:$0xff]
    %v1716 = vld [vmem:[#allocation8 + $0xec8] sm:$0xff]
    %v1717 = vld [vmem:[#allocation8 + $0xed0] sm:$0xff]
    %v1718 = vld [vmem:[#allocation8 + $0xed8] sm:$0xff]
    %v1719 = vld [vmem:[#allocation8 + $0xee0] sm:$0xff]
    %v1720 = vld [vmem:[#allocation8 + $0xee8] sm:$0xff]
    %v1721 = vld [vmem:[#allocation8 + $0xef0] sm:$0xff]
    %v1722 = vld [vmem:[#allocation8 + $0xef8] sm:$0xff]
    %v1723 = vld [vmem:[#allocation8 + $0xf00] sm:$0xff]
    %v1724 = vld [vmem:[#allocation8 + $0xf08] sm:$0xff]
    %v1725 = vld [vmem:[#allocation8 + $0xf10] sm:$0xff]
    %v1726 = vld [vmem:[#allocation8 + $0xf18] sm:$0xff]
    %v1727 = vld [vmem:[#allocation8 + $0xf20] sm:$0xff]
    %v1728 = vld [vmem:[#allocation8 + $0xf28] sm:$0xff]
    %v1729 = vld [vmem:[#allocation8 + $0xf30] sm:$0xff]
    %v1730 = vld [vmem:[#allocation8 + $0xf38] sm:$0xff]
    %v1731 = vld [vmem:[#allocation8 + $0xf40] sm:$0xff]
    %v1732 = vld [vmem:[#allocation8 + $0xf48] sm:$0xff]
    %v1733 = vld [vmem:[#allocation8 + $0xf50] sm:$0xff]
    %v1734 = vld [vmem:[#allocation8 + $0xf58] sm:$0xff]
    %v1735 = vld [vmem:[#allocation8 + $0xf60] sm:$0xff]
    %v1736 = vld [vmem:[#allocation8 + $0xf68] sm:$0xff]
    %v1737 = vld [vmem:[#allocation8 + $0xf70] sm:$0xff]
    %v1738 = vld [vmem:[#allocation8 + $0xf78] sm:$0xff]
    %v1739 = vld [vmem:[#allocation8 + $0xf80] sm:$0xff]
    %v1740 = vld [vmem:[#allocation8 + $0xf88] sm:$0xff]
    %v1741 = vld [vmem:[#allocation8 + $0xf90] sm:$0xff]
    %v1742 = vld [vmem:[#allocation8 + $0xf98] sm:$0xff]
    %v1743 = vld [vmem:[#allocation8 + $0xfa0] sm:$0xff]
    %v1744 = vld [vmem:[#allocation8 + $0xfa8] sm:$0xff]
    %v1745 = vld [vmem:[#allocation8 + $0xfb0] sm:$0xff]
    %v1746 = vld [vmem:[#allocation8 + $0xfb8] sm:$0xff]
    %v1747 = vld [vmem:[#allocation8 + $0xfc0] sm:$0xff]
    %v1748 = vld [vmem:[#allocation8 + $0xfc8] sm:$0xff]
    %v1749 = vld [vmem:[#allocation8 + $0xfd0] sm:$0xff]
    %v1750 = vld [vmem:[#allocation8 + $0xfd8] sm:$0xff]
    %v1751 = vld [vmem:[#allocation8 + $0xfe0] sm:$0xff]
    %v1752 = vld [vmem:[#allocation8 + $0xfe8] sm:$0xff]
    %v1753 = vld [vmem:[#allocation8 + $0xff0] sm:$0xff]
    %v1754 = vld [vmem:[#allocation8 + $0xff8] sm:$0xff]
    %1755 = vmatprep.subr.mxu0 %v1244
    %1756 = vmatpush1.msra.mxu0 %v1243
    %1757 = vmatprep.subr.mxu0 %v1252
    %1758 = vmatpush1.msra.mxu0 %v1251
    %1759 = vmatprep.subr.mxu0 %v1260
    %1760 = vmatpush1.msra.mxu0 %v1259
    %1761 = vmatprep.subr.mxu0 %v1268
    %1762 = vmatpush1.msra.mxu0 %v1267
    %1763 = vmatprep.subr.mxu0 %v1276
    %1764 = vmatpush1.msra.mxu0 %v1275
    %1765 = vmatprep.subr.mxu0 %v1284
    %1766 = vmatpush1.msra.mxu0 %v1283
    %1767 = vmatprep.subr.mxu0 %v1292
    %1768 = vmatpush1.msra.mxu0 %v1291
    %1769 = vmatprep.subr.mxu0 %v1300
    %1770 = vmatpush1.msra.mxu0 %v1299
    %1771 = vmatprep.subr.mxu0 %v1308
    %1772 = vmatpush1.msra.mxu0 %v1307
    %1773 = vmatprep.subr.mxu0 %v1316
    %1774 = vmatpush1.msra.mxu0 %v1315
    %1775 = vmatprep.subr.mxu0 %v1324
    %1776 = vmatpush1.msra.mxu0 %v1323
    %1777 = vmatprep.subr.mxu0 %v1332
    %1778 = vmatpush1.msra.mxu0 %v1331
    %1779 = vmatprep.subr.mxu0 %v1340
    %1780 = vmatpush1.msra.mxu0 %v1339
    %1781 = vmatprep.subr.mxu0 %v1348
    %1782 = vmatpush1.msra.mxu0 %v1347
    %1783 = vmatprep.subr.mxu0 %v1356
    %1784 = vmatpush1.msra.mxu0 %v1355
    %1785 = vmatprep.subr.mxu0 %v1364
    %1786 = vmatpush1.msra.mxu0 %v1363
    %1787 = vmatprep.subr.mxu0 %v1372
    %1788 = vmatpush1.msra.mxu0 %v1371
    %1789 = vmatprep.subr.mxu0 %v1380
    %1790 = vmatpush1.msra.mxu0 %v1379
    %1791 = vmatprep.subr.mxu0 %v1388
    %1792 = vmatpush1.msra.mxu0 %v1387
    %1793 = vmatprep.subr.mxu0 %v1396
    %1794 = vmatpush1.msra.mxu0 %v1395
    %1795 = vmatprep.subr.mxu0 %v1404
    %1796 = vmatpush1.msra.mxu0 %v1403
    %1797 = vmatprep.subr.mxu0 %v1412
    %1798 = vmatpush1.msra.mxu0 %v1411
    %1799 = vmatprep.subr.mxu0 %v1420
    %1800 = vmatpush1.msra.mxu0 %v1419
    %1801 = vmatprep.subr.mxu0 %v1428
    %1802 = vmatpush1.msra.mxu0 %v1427
    %1803 = vmatprep.subr.mxu0 %v1436
    %1804 = vmatpush1.msra.mxu0 %v1435
    %1805 = vmatprep.subr.mxu0 %v1444
    %1806 = vmatpush1.msra.mxu0 %v1443
    %1807 = vmatprep.subr.mxu0 %v1452
    %1808 = vmatpush1.msra.mxu0 %v1451
    %1809 = vmatprep.subr.mxu0 %v1460
    %1810 = vmatpush1.msra.mxu0 %v1459
    %1811 = vmatprep.subr.mxu0 %v1468
    %1812 = vmatpush1.msra.mxu0 %v1467
    %1813 = vmatprep.subr.mxu0 %v1476
    %1814 = vmatpush1.msra.mxu0 %v1475
    %1815 = vmatprep.subr.mxu0 %v1484
    %1816 = vmatpush1.msra.mxu0 %v1483
    %1817 = vmatprep.subr.mxu0 %v1492
    %1818 = vmatpush1.msra.mxu0 %v1491
    %1819 = vmatprep.mubr.f32.mxu0 %v1240
    %1820 = vmatmul.mubr.f32.gmra.mrb[0].mxu0 %v1239
    %v1821 = vpop.f32.mrb[0].mxu0
    %v1822 = vadd.f32 0.0, %v1821
    %v1823 = vpop.f32.mrb[0].mxu0
    %v1824 = vadd.f32 0.0, %v1823
    %1825 = vdwg.mxu0
    %1826 = vmatprep.subr.mxu0 %v1500
    %1827 = vmatpush1.msra.mxu0 %v1499
    %1828 = vmatprep.subr.mxu0 %v1508
    %1829 = vmatpush1.msra.mxu0 %v1507
    %1830 = vmatprep.subr.mxu0 %v1516
    %1831 = vmatpush1.msra.mxu0 %v1515
    %1832 = vmatprep.subr.mxu0 %v1524
    %1833 = vmatpush1.msra.mxu0 %v1523
    %1834 = vmatprep.subr.mxu0 %v1532
    %1835 = vmatpush1.msra.mxu0 %v1531
    %1836 = vmatprep.subr.mxu0 %v1540
    %1837 = vmatpush1.msra.mxu0 %v1539
    %1838 = vmatprep.subr.mxu0 %v1548
    %1839 = vmatpush1.msra.mxu0 %v1547
    %1840 = vmatprep.subr.mxu0 %v1556
    %1841 = vmatpush1.msra.mxu0 %v1555
    %1842 = vmatprep.subr.mxu0 %v1564
    %1843 = vmatpush1.msra.mxu0 %v1563
    %1844 = vmatprep.subr.mxu0 %v1572
    %1845 = vmatpush1.msra.mxu0 %v1571
    %1846 = vmatprep.subr.mxu0 %v1580
    %1847 = vmatpush1.msra.mxu0 %v1579
    %1848 = vmatprep.subr.mxu0 %v1588
    %1849 = vmatpush1.msra.mxu0 %v1587
    %1850 = vmatprep.subr.mxu0 %v1596
    %1851 = vmatpush1.msra.mxu0 %v1595
    %1852 = vmatprep.subr.mxu0 %v1604
    %1853 = vmatpush1.msra.mxu0 %v1603
    %1854 = vmatprep.subr.mxu0 %v1612
    %1855 = vmatpush1.msra.mxu0 %v1611
    %1856 = vmatprep.subr.mxu0 %v1620
    %1857 = vmatpush1.msra.mxu0 %v1619
    %1858 = vmatprep.subr.mxu0 %v1628
    %1859 = vmatpush1.msra.mxu0 %v1627
    %1860 = vmatprep.subr.mxu0 %v1636
    %1861 = vmatpush1.msra.mxu0 %v1635
    %1862 = vmatprep.subr.mxu0 %v1644
    %1863 = vmatpush1.msra.mxu0 %v1643
    %1864 = vmatprep.subr.mxu0 %v1652
    %1865 = vmatpush1.msra.mxu0 %v1651
    %1866 = vmatprep.subr.mxu0 %v1660
    %1867 = vmatpush1.msra.mxu0 %v1659
    %1868 = vmatprep.subr.mxu0 %v1668
    %1869 = vmatpush1.msra.mxu0 %v1667
    %1870 = vmatprep.subr.mxu0 %v1676
    %1871 = vmatpush1.msra.mxu0 %v1675
    %1872 = vmatprep.subr.mxu0 %v1684
    %1873 = vmatpush1.msra.mxu0 %v1683
    %1874 = vmatprep.subr.mxu0 %v1692
    %1875 = vmatpush1.msra.mxu0 %v1691
    %1876 = vmatprep.subr.mxu0 %v1700
    %1877 = vmatpush1.msra.mxu0 %v1699
    %1878 = vmatprep.subr.mxu0 %v1708
    %1879 = vmatpush1.msra.mxu0 %v1707
    %1880 = vmatprep.subr.mxu0 %v1716
    %1881 = vmatpush1.msra.mxu0 %v1715
    %1882 = vmatprep.subr.mxu0 %v1724
    %1883 = vmatpush1.msra.mxu0 %v1723
    %1884 = vmatprep.subr.mxu0 %v1732
    %1885 = vmatpush1.msra.mxu0 %v1731
    %1886 = vmatprep.subr.mxu0 %v1740
    %1887 = vmatpush1.msra.mxu0 %v1739
    %1888 = vmatprep.subr.mxu0 %v1748
    %1889 = vmatpush1.msra.mxu0 %v1747
    %1890 = vmatprep.mubr.f32.mxu0 %v1242
    %1891 = vmatmul.mubr.f32.gmra.mrb[0].mxu0 %v1241
    %v1892 = vpop.f32.mrb[0].mxu0
    %v1893 = vadd.f32 %v1822, %v1892
    %v1894 = vpop.f32.mrb[0].mxu0
    %v1895 = vadd.f32 %v1824, %v1894
    %1896 = vdwg.mxu0
    %1897 = vmatprep.subr.mxu0 %v1246
    %1898 = vmatpush1.msra.mxu0 %v1245
    %1899 = vmatprep.subr.mxu0 %v1254
    %1900 = vmatpush1.msra.mxu0 %v1253
    %1901 = vmatprep.subr.mxu0 %v1262
    %1902 = vmatpush1.msra.mxu0 %v1261
    %1903 = vmatprep.subr.mxu0 %v1270
    %1904 = vmatpush1.msra.mxu0 %v1269
    %1905 = vmatprep.subr.mxu0 %v1278
    %1906 = vmatpush1.msra.mxu0 %v1277
    %1907 = vmatprep.subr.mxu0 %v1286
    %1908 = vmatpush1.msra.mxu0 %v1285
    %1909 = vmatprep.subr.mxu0 %v1294
    %1910 = vmatpush1.msra.mxu0 %v1293
    %1911 = vmatprep.subr.mxu0 %v1302
    %1912 = vmatpush1.msra.mxu0 %v1301
    %1913 = vmatprep.subr.mxu0 %v1310
    %1914 = vmatpush1.msra.mxu0 %v1309
    %1915 = vmatprep.subr.mxu0 %v1318
    %1916 = vmatpush1.msra.mxu0 %v1317
    %1917 = vmatprep.subr.mxu0 %v1326
    %1918 = vmatpush1.msra.mxu0 %v1325
    %1919 = vmatprep.subr.mxu0 %v1334
    %1920 = vmatpush1.msra.mxu0 %v1333
    %1921 = vmatprep.subr.mxu0 %v1342
    %1922 = vmatpush1.msra.mxu0 %v1341
    %1923 = vmatprep.subr.mxu0 %v1350
    %1924 = vmatpush1.msra.mxu0 %v1349
    %1925 = vmatprep.subr.mxu0 %v1358
    %1926 = vmatpush1.msra.mxu0 %v1357
    %1927 = vmatprep.subr.mxu0 %v1366
    %1928 = vmatpush1.msra.mxu0 %v1365
    %1929 = vmatprep.subr.mxu0 %v1374
    %1930 = vmatpush1.msra.mxu0 %v1373
    %1931 = vmatprep.subr.mxu0 %v1382
    %1932 = vmatpush1.msra.mxu0 %v1381
    %1933 = vmatprep.subr.mxu0 %v1390
    %1934 = vmatpush1.msra.mxu0 %v1389
    %1935 = vmatprep.subr.mxu0 %v1398
    %1936 = vmatpush1.msra.mxu0 %v1397
    %1937 = vmatprep.subr.mxu0 %v1406
    %1938 = vmatpush1.msra.mxu0 %v1405
    %1939 = vmatprep.subr.mxu0 %v1414
    %1940 = vmatpush1.msra.mxu0 %v1413
    %1941 = vmatprep.subr.mxu0 %v1422
    %1942 = vmatpush1.msra.mxu0 %v1421
    %1943 = vmatprep.subr.mxu0 %v1430
    %1944 = vmatpush1.msra.mxu0 %v1429
    %1945 = vmatprep.subr.mxu0 %v1438
    %1946 = vmatpush1.msra.mxu0 %v1437
    %1947 = vmatprep.subr.mxu0 %v1446
    %1948 = vmatpush1.msra.mxu0 %v1445
    %1949 = vmatprep.subr.mxu0 %v1454
    %1950 = vmatpush1.msra.mxu0 %v1453
    %1951 = vmatprep.subr.mxu0 %v1462
    %1952 = vmatpush1.msra.mxu0 %v1461
    %1953 = vmatprep.subr.mxu0 %v1470
    %1954 = vmatpush1.msra.mxu0 %v1469
    %1955 = vmatprep.subr.mxu0 %v1478
    %1956 = vmatpush1.msra.mxu0 %v1477
    %1957 = vmatprep.subr.mxu0 %v1486
    %1958 = vmatpush1.msra.mxu0 %v1485
    %1959 = vmatprep.subr.mxu0 %v1494
    %1960 = vmatpush1.msra.mxu0 %v1493
    %1961 = vmatprep.mubr.f32.mxu0 %v1240
    %1962 = vmatmul.mubr.f32.gmra.mrb[0].mxu0 %v1239
    %v1963 = vpop.f32.mrb[0].mxu0
    %v1964 = vadd.f32 0.0, %v1963
    %v1965 = vpop.f32.mrb[0].mxu0
    %v1966 = vadd.f32 0.0, %v1965
    %1967 = vdwg.mxu0
    %1968 = vmatprep.subr.mxu0 %v1502
    %1969 = vmatpush1.msra.mxu0 %v1501
    %1970 = vmatprep.subr.mxu0 %v1510
    %1971 = vmatpush1.msra.mxu0 %v1509
    %1972 = vmatprep.subr.mxu0 %v1518
    %1973 = vmatpush1.msra.mxu0 %v1517
    %1974 = vmatprep.subr.mxu0 %v1526
    %1975 = vmatpush1.msra.mxu0 %v1525
    %1976 = vmatprep.subr.mxu0 %v1534
    %1977 = vmatpush1.msra.mxu0 %v1533
    %1978 = vmatprep.subr.mxu0 %v1542
    %1979 = vmatpush1.msra.mxu0 %v1541
    %1980 = vmatprep.subr.mxu0 %v1550
    %1981 = vmatpush1.msra.mxu0 %v1549
    %1982 = vmatprep.subr.mxu0 %v1558
    %1983 = vmatpush1.msra.mxu0 %v1557
    %1984 = vmatprep.subr.mxu0 %v1566
    %1985 = vmatpush1.msra.mxu0 %v1565
    %1986 = vmatprep.subr.mxu0 %v1574
    %1987 = vmatpush1.msra.mxu0 %v1573
    %1988 = vmatprep.subr.mxu0 %v1582
    %1989 = vmatpush1.msra.mxu0 %v1581
    %1990 = vmatprep.subr.mxu0 %v1590
    %1991 = vmatpush1.msra.mxu0 %v1589
    %1992 = vmatprep.subr.mxu0 %v1598
    %1993 = vmatpush1.msra.mxu0 %v1597
    %1994 = vmatprep.subr.mxu0 %v1606
    %1995 = vmatpush1.msra.mxu0 %v1605
    %1996 = vmatprep.subr.mxu0 %v1614
    %1997 = vmatpush1.msra.mxu0 %v1613
    %1998 = vmatprep.subr.mxu0 %v1622
    %1999 = vmatpush1.msra.mxu0 %v1621
    %2000 = vmatprep.subr.mxu0 %v1630
    %2001 = vmatpush1.msra.mxu0 %v1629
    %2002 = vmatprep.subr.mxu0 %v1638
    %2003 = vmatpush1.msra.mxu0 %v1637
    %2004 = vmatprep.subr.mxu0 %v1646
    %2005 = vmatpush1.msra.mxu0 %v1645
    %2006 = vmatprep.subr.mxu0 %v1654
    %2007 = vmatpush1.msra.mxu0 %v1653
    %2008 = vmatprep.subr.mxu0 %v1662
    %2009 = vmatpush1.msra.mxu0 %v1661
    %2010 = vmatprep.subr.mxu0 %v1670
    %2011 = vmatpush1.msra.mxu0 %v1669
    %2012 = vmatprep.subr.mxu0 %v1678
    %2013 = vmatpush1.msra.mxu0 %v1677
    %2014 = vmatprep.subr.mxu0 %v1686
    %2015 = vmatpush1.msra.mxu0 %v1685
    %2016 = vmatprep.subr.mxu0 %v1694
    %2017 = vmatpush1.msra.mxu0 %v1693
    %2018 = vmatprep.subr.mxu0 %v1702
    %2019 = vmatpush1.msra.mxu0 %v1701
    %2020 = vmatprep.subr.mxu0 %v1710
    %2021 = vmatpush1.msra.mxu0 %v1709
    %2022 = vmatprep.subr.mxu0 %v1718
    %2023 = vmatpush1.msra.mxu0 %v1717
    %2024 = vmatprep.subr.mxu0 %v1726
    %2025 = vmatpush1.msra.mxu0 %v1725
    %2026 = vmatprep.subr.mxu0 %v1734
    %2027 = vmatpush1.msra.mxu0 %v1733
    %2028 = vmatprep.subr.mxu0 %v1742
    %2029 = vmatpush1.msra.mxu0 %v1741
    %2030 = vmatprep.subr.mxu0 %v1750
    %2031 = vmatpush1.msra.mxu0 %v1749
    %2032 = vmatprep.mubr.f32.mxu0 %v1242
    %2033 = vmatmul.mubr.f32.gmra.mrb[0].mxu0 %v1241
    %v2034 = vpop.f32.mrb[0].mxu0
    %v2035 = vadd.f32 %v1964, %v2034
    %v2036 = vpop.f32.mrb[0].mxu0
    %v2037 = vadd.f32 %v1966, %v2036
    %2038 = vdwg.mxu0
    %2039 = vmatprep.subr.mxu0 %v1248
    %2040 = vmatpush1.msra.mxu0 %v1247
    %2041 = vmatprep.subr.mxu0 %v1256
    %2042 = vmatpush1.msra.mxu0 %v1255
    %2043 = vmatprep.subr.mxu0 %v1264
    %2044 = vmatpush1.msra.mxu0 %v1263
    %2045 = vmatprep.subr.mxu0 %v1272
    %2046 = vmatpush1.msra.mxu0 %v1271
    %2047 = vmatprep.subr.mxu0 %v1280
    %2048 = vmatpush1.msra.mxu0 %v1279
    %2049 = vmatprep.subr.mxu0 %v1288
    %2050 = vmatpush1.msra.mxu0 %v1287
    %2051 = vmatprep.subr.mxu0 %v1296
    %2052 = vmatpush1.msra.mxu0 %v1295
    %2053 = vmatprep.subr.mxu0 %v1304
    %2054 = vmatpush1.msra.mxu0 %v1303
    %2055 = vmatprep.subr.mxu0 %v1312
    %2056 = vmatpush1.msra.mxu0 %v1311
    %2057 = vmatprep.subr.mxu0 %v1320
    %2058 = vmatpush1.msra.mxu0 %v1319
    %2059 = vmatprep.subr.mxu0 %v1328
    %2060 = vmatpush1.msra.mxu0 %v1327
    %2061 = vmatprep.subr.mxu0 %v1336
    %2062 = vmatpush1.msra.mxu0 %v1335
    %2063 = vmatprep.subr.mxu0 %v1344
    %2064 = vmatpush1.msra.mxu0 %v1343
    %2065 = vmatprep.subr.mxu0 %v1352
    %2066 = vmatpush1.msra.mxu0 %v1351
    %2067 = vmatprep.subr.mxu0 %v1360
    %2068 = vmatpush1.msra.mxu0 %v1359
    %2069 = vmatprep.subr.mxu0 %v1368
    %2070 = vmatpush1.msra.mxu0 %v1367
    %2071 = vmatprep.subr.mxu0 %v1376
    %2072 = vmatpush1.msra.mxu0 %v1375
    %2073 = vmatprep.subr.mxu0 %v1384
    %2074 = vmatpush1.msra.mxu0 %v1383
    %2075 = vmatprep.subr.mxu0 %v1392
    %2076 = vmatpush1.msra.mxu0 %v1391
    %2077 = vmatprep.subr.mxu0 %v1400
    %2078 = vmatpush1.msra.mxu0 %v1399
    %2079 = vmatprep.subr.mxu0 %v1408
    %2080 = vmatpush1.msra.mxu0 %v1407
    %2081 = vmatprep.subr.mxu0 %v1416
    %2082 = vmatpush1.msra.mxu0 %v1415
    %2083 = vmatprep.subr.mxu0 %v1424
    %2084 = vmatpush1.msra.mxu0 %v1423
    %2085 = vmatprep.subr.mxu0 %v1432
    %2086 = vmatpush1.msra.mxu0 %v1431
    %2087 = vmatprep.subr.mxu0 %v1440
    %2088 = vmatpush1.msra.mxu0 %v1439
    %2089 = vmatprep.subr.mxu0 %v1448
    %2090 = vmatpush1.msra.mxu0 %v1447
    %2091 = vmatprep.subr.mxu0 %v1456
    %2092 = vmatpush1.msra.mxu0 %v1455
    %2093 = vmatprep.subr.mxu0 %v1464
    %2094 = vmatpush1.msra.mxu0 %v1463
    %2095 = vmatprep.subr.mxu0 %v1472
    %2096 = vmatpush1.msra.mxu0 %v1471
    %2097 = vmatprep.subr.mxu0 %v1480
    %2098 = vmatpush1.msra.mxu0 %v1479
    %2099 = vmatprep.subr.mxu0 %v1488
    %2100 = vmatpush1.msra.mxu0 %v1487
    %2101 = vmatprep.subr.mxu0 %v1496
    %2102 = vmatpush1.msra.mxu0 %v1495
    %2103 = vmatprep.mubr.f32.mxu0 %v1240
    %2104 = vmatmul.mubr.f32.gmra.mrb[0].mxu0 %v1239
    %v2105 = vpop.f32.mrb[0].mxu0
    %v2106 = vadd.f32 0.0, %v2105
    %v2107 = vpop.f32.mrb[0].mxu0
    %v2108 = vadd.f32 0.0, %v2107
    %2109 = vdwg.mxu0
    %2110 = vmatprep.subr.mxu0 %v1504
    %2111 = vmatpush1.msra.mxu0 %v1503
    %2112 = vmatprep.subr.mxu0 %v1512
    %2113 = vmatpush1.msra.mxu0 %v1511
    %2114 = vmatprep.subr.mxu0 %v1520
    %2115 = vmatpush1.msra.mxu0 %v1519
    %2116 = vmatprep.subr.mxu0 %v1528
    %2117 = vmatpush1.msra.mxu0 %v1527
    %2118 = vmatprep.subr.mxu0 %v1536
    %2119 = vmatpush1.msra.mxu0 %v1535
    %2120 = vmatprep.subr.mxu0 %v1544
    %2121 = vmatpush1.msra.mxu0 %v1543
    %2122 = vmatprep.subr.mxu0 %v1552
    %2123 = vmatpush1.msra.mxu0 %v1551
    %2124 = vmatprep.subr.mxu0 %v1560
    %2125 = vmatpush1.msra.mxu0 %v1559
    %2126 = vmatprep.subr.mxu0 %v1568
    %2127 = vmatpush1.msra.mxu0 %v1567
    %2128 = vmatprep.subr.mxu0 %v1576
    %2129 = vmatpush1.msra.mxu0 %v1575
    %2130 = vmatprep.subr.mxu0 %v1584
    %2131 = vmatpush1.msra.mxu0 %v1583
    %2132 = vmatprep.subr.mxu0 %v1592
    %2133 = vmatpush1.msra.mxu0 %v1591
    %2134 = vmatprep.subr.mxu0 %v1600
    %2135 = vmatpush1.msra.mxu0 %v1599
    %2136 = vmatprep.subr.mxu0 %v1608
    %2137 = vmatpush1.msra.mxu0 %v1607
    %2138 = vmatprep.subr.mxu0 %v1616
    %2139 = vmatpush1.msra.mxu0 %v1615
    %2140 = vmatprep.subr.mxu0 %v1624
    %2141 = vmatpush1.msra.mxu0 %v1623
    %2142 = vmatprep.subr.mxu0 %v1632
    %2143 = vmatpush1.msra.mxu0 %v1631
    %2144 = vmatprep.subr.mxu0 %v1640
    %2145 = vmatpush1.msra.mxu0 %v1639
    %2146 = vmatprep.subr.mxu0 %v1648
    %2147 = vmatpush1.msra.mxu0 %v1647
    %2148 = vmatprep.subr.mxu0 %v1656
    %2149 = vmatpush1.msra.mxu0 %v1655
    %2150 = vmatprep.subr.mxu0 %v1664
    %2151 = vmatpush1.msra.mxu0 %v1663
    %2152 = vmatprep.subr.mxu0 %v1672
    %2153 = vmatpush1.msra.mxu0 %v1671
    %2154 = vmatprep.subr.mxu0 %v1680
    %2155 = vmatpush1.msra.mxu0 %v1679
    %2156 = vmatprep.subr.mxu0 %v1688
    %2157 = vmatpush1.msra.mxu0 %v1687
    %2158 = vmatprep.subr.mxu0 %v1696
    %2159 = vmatpush1.msra.mxu0 %v1695
    %2160 = vmatprep.subr.mxu0 %v1704
    %2161 = vmatpush1.msra.mxu0 %v1703
    %2162 = vmatprep.subr.mxu0 %v1712
    %2163 = vmatpush1.msra.mxu0 %v1711
    %2164 = vmatprep.subr.mxu0 %v1720
    %2165 = vmatpush1.msra.mxu0 %v1719
    %2166 = vmatprep.subr.mxu0 %v1728
    %2167 = vmatpush1.msra.mxu0 %v1727
    %2168 = vmatprep.subr.mxu0 %v1736
    %2169 = vmatpush1.msra.mxu0 %v1735
    %2170 = vmatprep.subr.mxu0 %v1744
    %2171 = vmatpush1.msra.mxu0 %v1743
    %2172 = vmatprep.subr.mxu0 %v1752
    %2173 = vmatpush1.msra.mxu0 %v1751
    %2174 = vmatprep.mubr.f32.mxu0 %v1242
    %2175 = vmatmul.mubr.f32.gmra.mrb[0].mxu0 %v1241
    %v2176 = vpop.f32.mrb[0].mxu0
    %v2177 = vadd.f32 %v2106, %v2176
    %v2178 = vpop.f32.mrb[0].mxu0
    %v2179 = vadd.f32 %v2108, %v2178
    %2180 = vdwg.mxu0
    %2181 = vmatprep.subr.mxu0 %v1250
    %2182 = vmatpush1.msra.mxu0 %v1249
    %2183 = vmatprep.subr.mxu0 %v1258
    %2184 = vmatpush1.msra.mxu0 %v1257
    %2185 = vmatprep.subr.mxu0 %v1266
    %2186 = vmatpush1.msra.mxu0 %v1265
    %2187 = vmatprep.subr.mxu0 %v1274
    %2188 = vmatpush1.msra.mxu0 %v1273
    %2189 = vmatprep.subr.mxu0 %v1282
    %2190 = vmatpush1.msra.mxu0 %v1281
    %2191 = vmatprep.subr.mxu0 %v1290
    %2192 = vmatpush1.msra.mxu0 %v1289
    %2193 = vmatprep.subr.mxu0 %v1298
    %2194 = vmatpush1.msra.mxu0 %v1297
    %2195 = vmatprep.subr.mxu0 %v1306
    %2196 = vmatpush1.msra.mxu0 %v1305
    %2197 = vmatprep.subr.mxu0 %v1314
    %2198 = vmatpush1.msra.mxu0 %v1313
    %2199 = vmatprep.subr.mxu0 %v1322
    %2200 = vmatpush1.msra.mxu0 %v1321
    %2201 = vmatprep.subr.mxu0 %v1330
    %2202 = vmatpush1.msra.mxu0 %v1329
    %2203 = vmatprep.subr.mxu0 %v1338
    %2204 = vmatpush1.msra.mxu0 %v1337
    %2205 = vmatprep.subr.mxu0 %v1346
    %2206 = vmatpush1.msra.mxu0 %v1345
    %2207 = vmatprep.subr.mxu0 %v1354
    %2208 = vmatpush1.msra.mxu0 %v1353
    %2209 = vmatprep.subr.mxu0 %v1362
    %2210 = vmatpush1.msra.mxu0 %v1361
    %2211 = vmatprep.subr.mxu0 %v1370
    %2212 = vmatpush1.msra.mxu0 %v1369
    %2213 = vmatprep.subr.mxu0 %v1378
    %2214 = vmatpush1.msra.mxu0 %v1377
    %2215 = vmatprep.subr.mxu0 %v1386
    %2216 = vmatpush1.msra.mxu0 %v1385
    %2217 = vmatprep.subr.mxu0 %v1394
    %2218 = vmatpush1.msra.mxu0 %v1393
    %2219 = vmatprep.subr.mxu0 %v1402
    %2220 = vmatpush1.msra.mxu0 %v1401
    %2221 = vmatprep.subr.mxu0 %v1410
    %2222 = vmatpush1.msra.mxu0 %v1409
    %2223 = vmatprep.subr.mxu0 %v1418
    %2224 = vmatpush1.msra.mxu0 %v1417
    %2225 = vmatprep.subr.mxu0 %v1426
    %2226 = vmatpush1.msra.mxu0 %v1425
    %2227 = vmatprep.subr.mxu0 %v1434
    %2228 = vmatpush1.msra.mxu0 %v1433
    %2229 = vmatprep.subr.mxu0 %v1442
    %2230 = vmatpush1.msra.mxu0 %v1441
    %2231 = vmatprep.subr.mxu0 %v1450
    %2232 = vmatpush1.msra.mxu0 %v1449
    %2233 = vmatprep.subr.mxu0 %v1458
    %2234 = vmatpush1.msra.mxu0 %v1457
    %2235 = vmatprep.subr.mxu0 %v1466
    %2236 = vmatpush1.msra.mxu0 %v1465
    %2237 = vmatprep.subr.mxu0 %v1474
    %2238 = vmatpush1.msra.mxu0 %v1473
    %2239 = vmatprep.subr.mxu0 %v1482
    %2240 = vmatpush1.msra.mxu0 %v1481
    %2241 = vmatprep.subr.mxu0 %v1490
    %2242 = vmatpush1.msra.mxu0 %v1489
    %2243 = vmatprep.subr.mxu0 %v1498
    %2244 = vmatpush1.msra.mxu0 %v1497
    %2245 = vmatprep.mubr.f32.mxu0 %v1240
    %2246 = vmatmul.mubr.f32.gmra.mrb[0].mxu0 %v1239
    %v2247 = vpop.f32.mrb[0].mxu0
    %v2248 = vadd.f32 0.0, %v2247
    %v2249 = vpop.f32.mrb[0].mxu0
    %v2250 = vadd.f32 0.0, %v2249
    %2251 = vdwg.mxu0
    %2252 = vmatprep.subr.mxu0 %v1506
    %2253 = vmatpush1.msra.mxu0 %v1505
    %2254 = vmatprep.subr.mxu0 %v1514
    %2255 = vmatpush1.msra.mxu0 %v1513
    %2256 = vmatprep.subr.mxu0 %v1522
    %2257 = vmatpush1.msra.mxu0 %v1521
    %2258 = vmatprep.subr.mxu0 %v1530
    %2259 = vmatpush1.msra.mxu0 %v1529
    %2260 = vmatprep.subr.mxu0 %v1538
    %2261 = vmatpush1.msra.mxu0 %v1537
    %2262 = vmatprep.subr.mxu0 %v1546
    %2263 = vmatpush1.msra.mxu0 %v1545
    %2264 = vmatprep.subr.mxu0 %v1554
    %2265 = vmatpush1.msra.mxu0 %v1553
    %2266 = vmatprep.subr.mxu0 %v1562
    %2267 = vmatpush1.msra.mxu0 %v1561
    %2268 = vmatprep.subr.mxu0 %v1570
    %2269 = vmatpush1.msra.mxu0 %v1569
    %2270 = vmatprep.subr.mxu0 %v1578
    %2271 = vmatpush1.msra.mxu0 %v1577
    %2272 = vmatprep.subr.mxu0 %v1586
    %2273 = vmatpush1.msra.mxu0 %v1585
    %2274 = vmatprep.subr.mxu0 %v1594
    %2275 = vmatpush1.msra.mxu0 %v1593
    %2276 = vmatprep.subr.mxu0 %v1602
    %2277 = vmatpush1.msra.mxu0 %v1601
    %2278 = vmatprep.subr.mxu0 %v1610
    %2279 = vmatpush1.msra.mxu0 %v1609
    %2280 = vmatprep.subr.mxu0 %v1618
    %2281 = vmatpush1.msra.mxu0 %v1617
    %2282 = vmatprep.subr.mxu0 %v1626
    %2283 = vmatpush1.msra.mxu0 %v1625
    %2284 = vmatprep.subr.mxu0 %v1634
    %2285 = vmatpush1.msra.mxu0 %v1633
    %2286 = vmatprep.subr.mxu0 %v1642
    %2287 = vmatpush1.msra.mxu0 %v1641
    %2288 = vmatprep.subr.mxu0 %v1650
    %2289 = vmatpush1.msra.mxu0 %v1649
    %2290 = vmatprep.subr.mxu0 %v1658
    %2291 = vmatpush1.msra.mxu0 %v1657
    %2292 = vmatprep.subr.mxu0 %v1666
    %2293 = vmatpush1.msra.mxu0 %v1665
    %2294 = vmatprep.subr.mxu0 %v1674
    %2295 = vmatpush1.msra.mxu0 %v1673
    %2296 = vmatprep.subr.mxu0 %v1682
    %2297 = vmatpush1.msra.mxu0 %v1681
    %2298 = vmatprep.subr.mxu0 %v1690
    %2299 = vmatpush1.msra.mxu0 %v1689
    %2300 = vmatprep.subr.mxu0 %v1698
    %2301 = vmatpush1.msra.mxu0 %v1697
    %2302 = vmatprep.subr.mxu0 %v1706
    %2303 = vmatpush1.msra.mxu0 %v1705
    %2304 = vmatprep.subr.mxu0 %v1714
    %2305 = vmatpush1.msra.mxu0 %v1713
    %2306 = vmatprep.subr.mxu0 %v1722
    %2307 = vmatpush1.msra.mxu0 %v1721
    %2308 = vmatprep.subr.mxu0 %v1730
    %2309 = vmatpush1.msra.mxu0 %v1729
    %2310 = vmatprep.subr.mxu0 %v1738
    %2311 = vmatpush1.msra.mxu0 %v1737
    %2312 = vmatprep.subr.mxu0 %v1746
    %2313 = vmatpush1.msra.mxu0 %v1745
    %2314 = vmatprep.subr.mxu0 %v1754
    %2315 = vmatpush1.msra.mxu0 %v1753
    %2316 = vmatprep.mubr.f32.mxu0 %v1242
    %2317 = vmatmul.mubr.f32.gmra.mrb[0].mxu0 %v1241
    %v2318 = vpop.f32.mrb[0].mxu0
    %v2319 = vadd.f32 %v2248, %v2318
    %v2320 = vpop.f32.mrb[0].mxu0
    %v2321 = vadd.f32 %v2250, %v2320
    %2322 = vdwg.mxu0
    %vm2323 = vcmask 1041408
    %v2324 = vsel %vm2323, %v1893, 0.0
    %v2325 = vsel %vm2323, %v1895, 0.0
    %v2326 = vadd.f32 %v2324, %v2325
    %2327 = vadd.xlane.f32.xlu0 %v2326
    %v2328 = vpop.xlane.xlu0 %2327
    %v2329 = vrot.slane %v2328, 4
    %v2330 = vadd.f32 %v2328, %v2329
    %v2331 = vrot.slane %v2330, 2
    %v2332 = vadd.f32 %v2330, %v2331
    %v2333 = vrot.slane %v2332, 1
    %v2334 = vadd.f32 %v2332, %v2333
    %s2335 = vtos %v2334
    %v2336 = vstv %s2335
    %v2337 = vmul.f32 %v2336, 0.001953125
    %v2338 = vsub.f32 %v1893, %v2337
    %v2339 = vsub.f32 %v1895, %v2337
    %v2340 = vmul.f32 %v2338, %v2338
    %v2341 = vmul.f32 %v2339, %v2339
    %v2342 = vsel %vm2323, %v2340, 0.0
    %v2343 = vsel %vm2323, %v2341, 0.0
    %v2344 = vadd.f32 %v2342, %v2343
    %2345 = vadd.xlane.f32.xlu0 %v2344
    %v2346 = vpop.xlane.xlu0 %2345
    %v2347 = vrot.slane %v2346, 4
    %v2348 = vadd.f32 %v2346, %v2347
    %v2349 = vrot.slane %v2348, 2
    %v2350 = vadd.f32 %v2348, %v2349
    %v2351 = vrot.slane %v2350, 1
    %v2352 = vadd.f32 %v2350, %v2351
    %s2353 = vtos %v2352
    %v2354 = vstv %s2353
    %v2355 = vmul.f32 %v2354, 0.001953125
    %s2356 = sld [smem:[#allocation9]]
    %v2357 = vadd.f32 %v2355, 1e-05
    %v2358 = vrsqrt.pop %v2357
    %v2359 = vstv %s2356
    %v2360 = vmul.f32 %v2359, %v2358
    %v2361 = vmul.f32 %v2338, %v2360
    %v2362 = vmul.f32 %v2339, %v2360
    %s2363 = sld [smem:[#allocation10]]
    %v2364 = vstv %s2363
    %v2365 = vadd.f32 %v2361, %v2364
    %v2366 = vadd.f32 %v2362, %v2364
    %v2369 = vcombine.low %v2365, %v2366
    %v2371 = vunpack.c.l.s4 1983009808
    %v2372 = vunpack.c.0.s8 %v2371
    %v2373 = vlaneseq
    %v2374 = vshrl.u32 %v2373, 7
    %v2375 = vsub.s32 %v2372, %v2374
    %v2376 = vrot.slane %v2369, %v2375
    %2378 = vst [vmem:[#allocation12] sm:$0xf] %v2376
    %v2379 = vsel %vm2323, %v2035, 0.0
    %v2380 = vsel %vm2323, %v2037, 0.0
    %v2381 = vadd.f32 %v2379, %v2380
    %2382 = vadd.xlane.f32.xlu0 %v2381
    %v2383 = vpop.xlane.xlu0 %2382
    %v2384 = vrot.slane %v2383, 4
    %v2385 = vadd.f32 %v2383, %v2384
    %v2386 = vrot.slane %v2385, 2
    %v2387 = vadd.f32 %v2385, %v2386
    %v2388 = vrot.slane %v2387, 1
    %v2389 = vadd.f32 %v2387, %v2388
    %s2390 = vtos %v2389
    %v2391 = vstv %s2390
    %v2392 = vmul.f32 %v2391, 0.001953125
    %v2393 = vsub.f32 %v2035, %v2392
    %v2394 = vsub.f32 %v2037, %v2392
    %v2395 = vmul.f32 %v2393, %v2393
    %v2396 = vmul.f32 %v2394, %v2394
    %v2397 = vsel %vm2323, %v2395, 0.0
    %v2398 = vsel %vm2323, %v2396, 0.0
    %v2399 = vadd.f32 %v2397, %v2398
    %2400 = vadd.xlane.f32.xlu0 %v2399
    %v2401 = vpop.xlane.xlu0 %2400
    %v2402 = vrot.slane %v2401, 4
    %v2403 = vadd.f32 %v2401, %v2402
    %v2404 = vrot.slane %v2403, 2
    %v2405 = vadd.f32 %v2403, %v2404
    %v2406 = vrot.slane %v2405, 1
    %v2407 = vadd.f32 %v2405, %v2406
    %s2408 = vtos %v2407
    %v2409 = vstv %s2408
    %v2410 = vmul.f32 %v2409, 0.001953125
    %s2411 = sld [smem:[#allocation9 + $0x1]]
    %v2412 = vadd.f32 %v2410, 1e-05
    %v2413 = vrsqrt.pop %v2412
    %v2414 = vstv %s2411
    %v2415 = vmul.f32 %v2414, %v2413
    %v2416 = vmul.f32 %v2393, %v2415
    %v2417 = vmul.f32 %v2394, %v2415
    %s2418 = sld [smem:[#allocation10 + $0x1]]
    %v2419 = vstv %s2418
    %v2420 = vadd.f32 %v2416, %v2419
    %v2421 = vadd.f32 %v2417, %v2419
    %v2424 = vcombine.low %v2420, %v2421
    %v2426 = vunpack.c.l.s4 1983009808
    %v2427 = vunpack.c.0.s8 %v2426
    %v2428 = vlaneseq
    %v2429 = vshrl.u32 %v2428, 7
    %v2430 = vsub.s32 %v2427, %v2429
    %v2431 = vrot.slane %v2424, %v2430
    %2433 = vst [vmem:[#allocation12 + $0x4] sm:$0xf] %v2431
    %v2434 = vsel %vm2323, %v2177, 0.0
    %v2435 = vsel %vm2323, %v2179, 0.0
    %v2436 = vadd.f32 %v2434, %v2435
    %2437 = vadd.xlane.f32.xlu0 %v2436
    %v2438 = vpop.xlane.xlu0 %2437
    %v2439 = vrot.slane %v2438, 4
    %v2440 = vadd.f32 %v2438, %v2439
    %v2441 = vrot.slane %v2440, 2
    %v2442 = vadd.f32 %v2440, %v2441
    %v2443 = vrot.slane %v2442, 1
    %v2444 = vadd.f32 %v2442, %v2443
    %s2445 = vtos %v2444
    %v2446 = vstv %s2445
    %v2447 = vmul.f32 %v2446, 0.001953125
    %v2448 = vsub.f32 %v2177, %v2447
    %v2449 = vsub.f32 %v2179, %v2447
    %v2450 = vmul.f32 %v2448, %v2448
    %v2451 = vmul.f32 %v2449, %v2449
    %v2452 = vsel %vm2323, %v2450, 0.0
    %v2453 = vsel %vm2323, %v2451, 0.0
    %v2454 = vadd.f32 %v2452, %v2453
    %2455 = vadd.xlane.f32.xlu0 %v2454
    %v2456 = vpop.xlane.xlu0 %2455
    %v2457 = vrot.slane %v2456, 4
    %v2458 = vadd.f32 %v2456, %v2457
    %v2459 = vrot.slane %v2458, 2
    %v2460 = vadd.f32 %v2458, %v2459
    %v2461 = vrot.slane %v2460, 1
    %v2462 = vadd.f32 %v2460, %v2461
    %s2463 = vtos %v2462
    %v2464 = vstv %s2463
    %v2465 = vmul.f32 %v2464, 0.001953125
    %s2466 = sld [smem:[#allocation9 + $0x2]]
    %v2467 = vadd.f32 %v2465, 1e-05
    %v2468 = vrsqrt.pop %v2467
    %v2469 = vstv %s2466
    %v2470 = vmul.f32 %v2469, %v2468
    %v2471 = vmul.f32 %v2448, %v2470
    %v2472 = vmul.f32 %v2449, %v2470
    %s2473 = sld [smem:[#allocation10 + $0x2]]
    %v2474 = vstv %s2473
    %v2475 = vadd.f32 %v2471, %v2474
    %v2476 = vadd.f32 %v2472, %v2474
    %v2479 = vcombine.low %v2475, %v2476
    %v2481 = vunpack.c.l.s4 1983009808
    %v2482 = vunpack.c.0.s8 %v2481
    %v2483 = vlaneseq
    %v2484 = vshrl.u32 %v2483, 7
    %v2485 = vsub.s32 %v2482, %v2484
    %v2486 = vrot.slane %v2479, %v2485
    %2488 = vst [vmem:[#allocation12 + $0x8] sm:$0xf] %v2486
    %v2489 = vsel %vm2323, %v2319, 0.0
    %v2490 = vsel %vm2323, %v2321, 0.0
    %v2491 = vadd.f32 %v2489, %v2490
    %2492 = vadd.xlane.f32.xlu0 %v2491
    %v2493 = vpop.xlane.xlu0 %2492
    %v2494 = vrot.slane %v2493, 4
    %v2495 = vadd.f32 %v2493, %v2494
    %v2496 = vrot.slane %v2495, 2
    %v2497 = vadd.f32 %v2495, %v2496
    %v2498 = vrot.slane %v2497, 1
    %v2499 = vadd.f32 %v2497, %v2498
    %s2500 = vtos %v2499
    %v2501 = vstv %s2500
    %v2502 = vmul.f32 %v2501, 0.001953125
    %v2503 = vsub.f32 %v2319, %v2502
    %v2504 = vsub.f32 %v2321, %v2502
    %v2505 = vmul.f32 %v2503, %v2503
    %v2506 = vmul.f32 %v2504, %v2504
    %v2507 = vsel %vm2323, %v2505, 0.0
    %v2508 = vsel %vm2323, %v2506, 0.0
    %v2509 = vadd.f32 %v2507, %v2508
    %2510 = vadd.xlane.f32.xlu0 %v2509
    %v2511 = vpop.xlane.xlu0 %2510
    %v2512 = vrot.slane %v2511, 4
    %v2513 = vadd.f32 %v2511, %v2512
    %v2514 = vrot.slane %v2513, 2
    %v2515 = vadd.f32 %v2513, %v2514
    %v2516 = vrot.slane %v2515, 1
    %v2517 = vadd.f32 %v2515, %v2516
    %s2518 = vtos %v2517
    %v2519 = vstv %s2518
    %v2520 = vmul.f32 %v2519, 0.001953125
    %s2521 = sld [smem:[#allocation9 + $0x3]]
    %v2522 = vadd.f32 %v2520, 1e-05
    %v2523 = vrsqrt.pop %v2522
    %v2524 = vstv %s2521
    %v2525 = vmul.f32 %v2524, %v2523
    %v2526 = vmul.f32 %v2503, %v2525
    %v2527 = vmul.f32 %v2504, %v2525
    %s2528 = sld [smem:[#allocation10 + $0x3]]
    %v2529 = vstv %s2528
    %v2530 = vadd.f32 %v2526, %v2529
    %v2531 = vadd.f32 %v2527, %v2529
    %v2534 = vcombine.low %v2530, %v2531
    %v2536 = vunpack.c.l.s4 1983009808
    %v2537 = vunpack.c.0.s8 %v2536
    %v2538 = vlaneseq
    %v2539 = vshrl.u32 %v2538, 7
    %v2540 = vsub.s32 %v2537, %v2539
    %v2541 = vrot.slane %v2534, %v2540
    %2543 = vst [vmem:[#allocation12 + $0xc] sm:$0xf] %v2541
    // Predicated region
    $region42: #{tpu_custom_call.1} parent=1 // pred_check
      _
    $region43: #{tpu_custom_call.1} parent=1 // pred_check_branch
      %2545 = sbr.rel (0) target = $region45
    $region44: #{tpu_custom_call.1} parent=1 // pred_region
      %s2547 = ssub.s32 256, 256
      %2548 = vsyncadd [#allocation4], %s2547
      %s2550 = sshll.u32 [#allocation12], 4
      %s2551 = int_to_ptr.vmem [resolvable:$true] %s2550
      %2553 = dma.vmem_to_hbm [thread:$0]  %s2551, 256, %s5, [#allocation4]
    $region45: #{tpu_custom_call.1} parent=1 // pred_fallthru
      _
    // Predicated region
    $region46: #{tpu_custom_call.1} parent=1 // pred_check
      _
    $region47: #{tpu_custom_call.1} parent=1 // pred_check_branch
      %2555 = sbr.rel (0) target = $region49
    $region48: #{tpu_custom_call.1} parent=1 // pred_region
      %s2557 = ssub.s32 128, 128
      %2558 = vsyncadd [#allocation14], %s2557
      %s2560 = sshll.u32 [#allocation13], 4
      %s2561 = int_to_ptr.vmem [resolvable:$true] %s2560
      %2563 = dma.vmem_to_hbm [thread:$0]  %s2561, 128, %s6, [#allocation14]
    $region49: #{tpu_custom_call.1} parent=1 // pred_fallthru
      _
    // Predicated region
    $region50: #{tpu_custom_call.1} parent=1 // pred_check
      _
    $region51: #{tpu_custom_call.1} parent=1 // pred_check_branch
      %2565 = sbr.rel (0) target = $region53
    $region52: #{tpu_custom_call.1} parent=1 // pred_region
      %2566 = dma.done [#allocation4], 256
    $region53: #{tpu_custom_call.1} parent=1 // pred_fallthru
      _
    // Predicated region
    $region54: #{tpu_custom_call.1} parent=1 // pred_check
      _
    $region55: #{tpu_custom_call.1} parent=1 // pred_check_branch
      %2568 = sbr.rel (0) target = $region57
    $region56: #{tpu_custom_call.1} parent=1 // pred_region
      %2569 = dma.done [#allocation14], 128
    $region57: #{tpu_custom_call.1} parent=1 // pred_fallthru
      _
    %2570 = vsyncpa [#allocation3], 1
    %2571 = vsyncpa [#allocation7], 1
    %2572 = vsyncpa [#allocation4], 1
    %2573 = vsyncpa [#allocation14], 1
    %2574 = vsyncpa [#allocation5], 1
    %2575 = vsyncpa [#allocation11], 1

</llo_original>
